<compile_context>
chip_gen: v7x
topology: tpu7x:2x2x1
jax: 0.10.0
libtpu: 0.0.40
codegen_flags: <defaults>
</compile_context>

<pallas_src>
import functools
import math

import jax
import jax.numpy as jnp
import numpy as np
from jax.experimental import pallas as pl
from jax.experimental.pallas import tpu as pltpu


# ---------------------------------------------------------------------------
# Fused decoder-layer kernel: the whole (small) batch in one invocation
# ---------------------------------------------------------------------------
def _decoder_layer_kernel(
    # inputs
    x_ref, enc_ref,                              # (B*S, dim) decoder / encoder slabs
    m1_ref, m2_ref,                              # (B, S, S) int32 masks (1 == masked)
    wqkv1_ref, bqkv1_ref,                        # self-attn fused QKV projection
    wz1_ref, bz1_ref, g1_ref, beta1_ref,         # self-attn out proj + LayerNorm
    wq2_ref, bq2_ref, wkv2_ref, bkv2_ref,        # cross-attn Q proj + fused KV proj
    wz2_ref, bz2_ref, g2_ref, beta2_ref,         # cross-attn out proj + LayerNorm
    fc1w_ref, fc1b_ref, fc2w_ref, fc2b_ref,      # FFN
    g3_ref, beta3_ref,                           # FFN LayerNorm
    # outputs
    atten1_ref, atten2_ref, out_ref,             # (B*S, head*S) x2, (B*S, dim)
    # scratch
    ctx_ref,                                     # (B*head*S, d_k) stacked contexts
    *, batch, seq, head, d_k, eps):
  hdk = head * d_k
  neg = jnp.float32(-1e9)

  def mha(q_all, k_all, v_all, mask_ref, wz_ref, bz_ref):
    """q/k/v: (B*S, head*d_k), head-contiguous columns (torch head-split quirk
    and the 1/sqrt(d_k) scale are pre-folded into the projection weights)."""
    atten_rows = []
    for b in range(batch):                       # B*head = 8 unrolled iterations
      r0 = b * seq
      maskb = mask_ref[b] != 0                   # (S, S) bool
      head_attn = []
      for h in range(head):
        c0 = h * d_k
        qh = q_all[r0:r0 + seq, c0:c0 + d_k]
        kh = k_all[r0:r0 + seq, c0:c0 + d_k]
        vh = v_all[r0:r0 + seq, c0:c0 + d_k]
        # q @ k^T via dot_general contracting last dims (no transpose copy)
        scores = jax.lax.dot_general(
            qh, kh, (((1,), (1,)), ((), ())),
            preferred_element_type=jnp.float32)
        # exact masked_fill_ semantics (fully-masked rows -> uniform softmax)
        scores = jnp.where(maskb, neg, scores)
        smax = jnp.max(scores, axis=-1, keepdims=True)
        e = jnp.exp(scores - smax)
        attn = e * pl.reciprocal(jnp.sum(e, axis=-1, keepdims=True), approx=True)
        head_attn.append(attn)
        # stack contexts head-major: scratch row (b*head + h)*S + s
        ctx_ref[(b * head + h) * seq:(b * head + h + 1) * seq, :] = jnp.dot(
            attn, vh, preferred_element_type=jnp.float32)
      # lane-dense attention slab: row b*S + s, columns [h*S : (h+1)*S]
      atten_rows.append(jnp.concatenate(head_attn, axis=1))
    atten_wide = jnp.concatenate(atten_rows, axis=0)          # (B*S, head*S)

    # torch quirk: context (head, S, d_k) re-read row-major as (S, head*d_k).
    # Column block j of that view is the strided row set {s*head + j} of the
    # head-major stack -> a sublane-strided read, then ONE matmul against wz.
    merged = jnp.concatenate(
        [jnp.concatenate(
            [ctx_ref[pl.ds(b * head * seq + j, seq, stride=head), :]
             for j in range(head)], axis=1)
         for b in range(batch)], axis=0)                      # (B*S, head*d_k)
    z = jnp.dot(merged, wz_ref[...],
                preferred_element_type=jnp.float32) + bz_ref[...]
    return atten_wide, z

  def add_layernorm(x, res, g_ref, b_ref):
    y = x + res
    mu = jnp.mean(y, axis=-1, keepdims=True)
    d = y - mu
    var = jnp.mean(d * d, axis=-1, keepdims=True)
    return d * jax.lax.rsqrt(var + eps) * g_ref[...] + b_ref[...]

  x = x_ref[...]                                              # (B*S, dim)
  enc = enc_ref[...]                                          # (B*S, dim)

  # ---- masked self-attention (fused QKV projection, scale pre-folded) ----
  qkv1 = jnp.dot(x, wqkv1_ref[...],
                 preferred_element_type=jnp.float32) + bqkv1_ref[...]
  a1, z1 = mha(qkv1[:, 0 * hdk:1 * hdk], qkv1[:, 1 * hdk:2 * hdk],
               qkv1[:, 2 * hdk:3 * hdk], m1_ref, wz1_ref, bz1_ref)
  atten1_ref[...] = a1
  h1 = add_layernorm(z1, x, g1_ref, beta1_ref)

  # ---- encoder-decoder cross attention (fused KV projection) ----
  q2 = jnp.dot(h1, wq2_ref[...],
               preferred_element_type=jnp.float32) + bq2_ref[...]
  kv2 = jnp.dot(enc, wkv2_ref[...],
                preferred_element_type=jnp.float32) + bkv2_ref[...]
  a2, z2 = mha(q2, kv2[:, :hdk], kv2[:, hdk:], m2_ref, wz2_ref, bz2_ref)
  atten2_ref[...] = a2
  h2 = add_layernorm(z2, h1, g2_ref, beta2_ref)

  # ---- FFN (no activation in the reference module) ----
  t1 = jnp.dot(h2, fc1w_ref[...],
               preferred_element_type=jnp.float32) + fc1b_ref[...]
  t2 = jnp.dot(t1, fc2w_ref[...],
               preferred_element_type=jnp.float32) + fc2b_ref[...]
  out_ref[...] = add_layernorm(t2, h2, g3_ref, beta3_ref)


# ---------------------------------------------------------------------------
# Wrapper: fold torch layout quirks + 1/sqrt(d_k) into weights, launch kernel
# ---------------------------------------------------------------------------
def _head_perm(head, d_k):
  # new column (h*d_k + d) <- old column (d*head + h): folds the torch
  # .view(B, S, d_k, head).permute(0, 3, 1, 2) head split into the weights.
  perm = (np.arange(d_k)[None, :] * head + np.arange(head)[:, None]).reshape(-1)
  return jnp.asarray(perm, dtype=jnp.int32)


@functools.partial(jax.jit, static_argnames=("head", "d_k"))
def decoder_layer(params, dec_input, enc_output, dec_self_mask, enc_dec_mask,
                  head, d_k):
  B, S, dim = dec_input.shape
  assert enc_output.shape == (B, S, dim)   # reference module implies equal seq lens
  hdk = head * d_k
  sa, ca, ff = params["self_attn"], params["enc_attn"], params["ffn"]
  internal = ff["fc1_w"].shape[1]
  perm = _head_perm(head, d_k)
  inv_sqrt_dk = jnp.float32(1.0 / math.sqrt(d_k))

  # fold layout quirk (column permutation) + 1/sqrt(d_k) into Q; fuse QKV / KV
  wqkv1 = jnp.concatenate(
      [sa["Wq_w"][:, perm] * inv_sqrt_dk, sa["Wk_w"][:, perm], sa["Wv_w"][:, perm]],
      axis=1)
  bqkv1 = jnp.concatenate(
      [sa["Wq_b"][perm] * inv_sqrt_dk, sa["Wk_b"][perm], sa["Wv_b"][perm]]
  ).reshape(1, 3 * hdk)
  wq2 = ca["Wq_w"][:, perm] * inv_sqrt_dk
  bq2 = (ca["Wq_b"][perm] * inv_sqrt_dk).reshape(1, hdk)
  wkv2 = jnp.concatenate([ca["Wk_w"][:, perm], ca["Wv_w"][:, perm]], axis=1)
  bkv2 = jnp.concatenate([ca["Wk_b"][perm], ca["Wv_b"][perm]]).reshape(1, 2 * hdk)

  # flatten batch into rows; masks stay general (B, S, S) like the torch module
  x2d = dec_input.reshape(B * S, dim)
  enc2d = enc_output.reshape(B * S, dim)
  m1 = dec_self_mask.astype(jnp.int32)
  m2 = enc_dec_mask.astype(jnp.int32)

  kernel = functools.partial(_decoder_layer_kernel,
                             batch=B, seq=S, head=head, d_k=d_k, eps=1e-5)

  a1w, a2w, out2d = pl.pallas_call(
      kernel,
      out_shape=(
          jax.ShapeDtypeStruct((B * S, head * S), jnp.float32),
          jax.ShapeDtypeStruct((B * S, head * S), jnp.float32),
          jax.ShapeDtypeStruct((B * S, dim), jnp.float32),
      ),
      scratch_shapes=[pltpu.VMEM((B * head * S, d_k), jnp.float32)],
  )(x2d, enc2d, m1, m2,
    wqkv1, bqkv1,
    sa["Wz_w"], sa["Wz_b"].reshape(1, dim),
    sa["ln_g"].reshape(1, dim), sa["ln_b"].reshape(1, dim),
    wq2, bq2, wkv2, bkv2,
    ca["Wz_w"], ca["Wz_b"].reshape(1, dim),
    ca["ln_g"].reshape(1, dim), ca["ln_b"].reshape(1, dim),
    ff["fc1_w"], ff["fc1_b"].reshape(1, internal),
    ff["fc2_w"], ff["fc2_b"].reshape(1, dim),
    ff["ln_g"].reshape(1, dim), ff["ln_b"].reshape(1, dim))

  # unpack the lane-dense attention slabs: (B*S, head*S) -> (B, head, S, S)
  atten1 = a1w.reshape(B, S, head, S).transpose(0, 2, 1, 3)
  atten2 = a2w.reshape(B, S, head, S).transpose(0, 2, 1, 3)
  return atten1, atten2, out2d.reshape(B, S, dim)


# ---------------------------------------------------------------------------
# Plain-JAX mirror of the PyTorch module (self-check only)
# ---------------------------------------------------------------------------
def _reference_decoder_layer(params, dec_input, enc_output, dec_self_mask,
                             enc_dec_mask, head, d_k):
  def layernorm(y, g, b, eps=1e-5):
    mu = y.mean(axis=-1, keepdims=True)
    var = ((y - mu) ** 2).mean(axis=-1, keepdims=True)
    return (y - mu) / jnp.sqrt(var + eps) * g + b

  def mha(p, q, k, v, mask):
    B, S, _ = q.shape
    residual = q
    Q = jnp.dot(q, p["Wq_w"]) + p["Wq_b"]
    K = jnp.dot(k, p["Wk_w"]) + p["Wk_b"]
    V = jnp.dot(v, p["Wv_w"]) + p["Wv_b"]
    Q = Q.reshape(B, S, d_k, head).transpose(0, 3, 1, 2)
    K = K.reshape(B, S, d_k, head).transpose(0, 3, 1, 2)
    V = V.reshape(B, S, d_k, head).transpose(0, 3, 1, 2)
    scores = jnp.einsum("bhqd,bhkd->bhqk", Q, K) / np.sqrt(d_k)
    scores = jnp.where(mask[:, None, :, :], jnp.float32(-1e9), scores)
    atten = jax.nn.softmax(scores, axis=-1)
    ctx = jnp.einsum("bhqk,bhkd->bhqd", atten, V)
    ctx = ctx.reshape(B, S, head * d_k)          # torch .view memory-order merge
    Z = jnp.dot(ctx, p["Wz_w"]) + p["Wz_b"]
    return atten, layernorm(Z + residual, p["ln_g"], p["ln_b"])

  def ffn(p, x):
    t = jnp.dot(x, p["fc1_w"]) + p["fc1_b"]
    t = jnp.dot(t, p["fc2_w"]) + p["fc2_b"]
    return layernorm(t + x, p["ln_g"], p["ln_b"])

  a1, h1 = mha(params["self_attn"], dec_input, dec_input, dec_input, dec_self_mask)
  a2, h2 = mha(params["enc_attn"], h1, enc_output, enc_output, enc_dec_mask)
  return a1, a2, ffn(params["ffn"], h2)


# ---------------------------------------------------------------------------
# Deterministic parameter construction
# ---------------------------------------------------------------------------
def init_mha_params(key, dim, head, d_k):
  ks = jax.random.split(key, 4)
  hd = head * d_k
  scale = 0.02
  return {
      "Wq_w": scale * jax.random.normal(ks[0], (dim, hd), jnp.float32),
      "Wq_b": jnp.zeros((hd,), jnp.float32),
      "Wk_w": scale * jax.random.normal(ks[1], (dim, hd), jnp.float32),
      "Wk_b": jnp.zeros((hd,), jnp.float32),
      "Wv_w": scale * jax.random.normal(ks[2], (dim, hd), jnp.float32),
      "Wv_b": jnp.zeros((hd,), jnp.float32),
      "Wz_w": scale * jax.random.normal(ks[3], (hd, dim), jnp.float32),
      "Wz_b": jnp.zeros((dim,), jnp.float32),
      "ln_g": jnp.ones((dim,), jnp.float32),
      "ln_b": jnp.zeros((dim,), jnp.float32),
  }


def init_ffn_params(key, dim, internal=1024):
  k1, k2 = jax.random.split(key)
  scale = 0.02
  return {
      "fc1_w": scale * jax.random.normal(k1, (dim, internal), jnp.float32),
      "fc1_b": jnp.zeros((internal,), jnp.float32),
      "fc2_w": scale * jax.random.normal(k2, (internal, dim), jnp.float32),
      "fc2_b": jnp.zeros((dim,), jnp.float32),
      "ln_g": jnp.ones((dim,), jnp.float32),
      "ln_b": jnp.zeros((dim,), jnp.float32),
  }


def init_decoder_layer_params(key, dim, head, d_k):
  k1, k2, k3 = jax.random.split(key, 3)
  return {
      "self_attn": init_mha_params(k1, dim, head, d_k),
      "enc_attn": init_mha_params(k2, dim, head, d_k),
      "ffn": init_ffn_params(k3, dim),
  }


# ---------------------------------------------------------------------------
if __name__ == "__main__":
  head, dim, d_k = 4, 32, 8
  batch, seq = 2, 8

  key = jax.random.PRNGKey(0)
  kp, kd, ke = jax.random.split(key, 3)
  params = init_decoder_layer_params(kp, dim, head, d_k)

  dec_input = jax.random.normal(kd, (batch, seq, dim), jnp.float32)
  enc_output = jax.random.normal(ke, (batch, seq, dim), jnp.float32)

  # causal mask for decoder self-attention (True == masked out)
  causal = jnp.triu(jnp.ones((seq, seq), jnp.bool_), k=1)
  dec_self_mask = jnp.broadcast_to(causal, (batch, seq, seq))
  # no padding in this synthetic example
  enc_dec_mask = jnp.zeros((batch, seq, seq), jnp.bool_)

  dec_self_attn, dec_enc_attn, out = decoder_layer(
      params, dec_input, enc_output, dec_self_mask, enc_dec_mask,
      head=head, d_k=d_k)
  jax.block_until_ready((dec_self_attn, dec_enc_attn, out))

  assert dec_self_attn.shape == (batch, head, seq, seq)
  assert dec_enc_attn.shape == (batch, head, seq, seq)
  assert out.shape == (batch, seq, dim)

  # numerical self-check against a plain-JAX mirror of the torch reference
  r1, r2, rout = _reference_decoder_layer(
      params, dec_input, enc_output, dec_self_mask, enc_dec_mask, head, d_k)
  np.testing.assert_allclose(np.asarray(dec_self_attn), np.asarray(r1), atol=2e-2, rtol=0)
  np.testing.assert_allclose(np.asarray(dec_enc_attn), np.asarray(r2), atol=2e-2, rtol=0)
  np.testing.assert_allclose(np.asarray(out), np.asarray(rout), atol=2e-2, rtol=0)

  print("KERNEL_OK")
</pallas_src>

<mosaic_0001>
module attributes {stable_mosaic.version = 11 : i64} {
  func.func @_decoder_layer_kernel(%arg0: memref<16x32xf32, #tpu.memory_space<vmem>>, %arg1: memref<16x32xf32, #tpu.memory_space<vmem>>, %arg2: memref<2x8x8xi32, #tpu.memory_space<vmem>>, %arg3: memref<2x8x8xi32, #tpu.memory_space<vmem>>, %arg4: memref<32x96xf32, #tpu.memory_space<vmem>>, %arg5: memref<1x96xf32, #tpu.memory_space<vmem>>, %arg6: memref<32x32xf32, #tpu.memory_space<vmem>>, %arg7: memref<1x32xf32, #tpu.memory_space<vmem>>, %arg8: memref<1x32xf32, #tpu.memory_space<vmem>>, %arg9: memref<1x32xf32, #tpu.memory_space<vmem>>, %arg10: memref<32x32xf32, #tpu.memory_space<vmem>>, %arg11: memref<1x32xf32, #tpu.memory_space<vmem>>, %arg12: memref<32x64xf32, #tpu.memory_space<vmem>>, %arg13: memref<1x64xf32, #tpu.memory_space<vmem>>, %arg14: memref<32x32xf32, #tpu.memory_space<vmem>>, %arg15: memref<1x32xf32, #tpu.memory_space<vmem>>, %arg16: memref<1x32xf32, #tpu.memory_space<vmem>>, %arg17: memref<1x32xf32, #tpu.memory_space<vmem>>, %arg18: memref<32x1024xf32, #tpu.memory_space<vmem>>, %arg19: memref<1x1024xf32, #tpu.memory_space<vmem>>, %arg20: memref<1024x32xf32, #tpu.memory_space<vmem>>, %arg21: memref<1x32xf32, #tpu.memory_space<vmem>>, %arg22: memref<1x32xf32, #tpu.memory_space<vmem>>, %arg23: memref<1x32xf32, #tpu.memory_space<vmem>>, %arg24: memref<16x32xf32, #tpu.memory_space<vmem>>, %arg25: memref<16x32xf32, #tpu.memory_space<vmem>>, %arg26: memref<16x32xf32, #tpu.memory_space<vmem>>, %arg27: memref<64x8xf32, #tpu.memory_space<vmem>>) attributes {dimension_semantics = [], scalar_prefetch = 0 : i64, scratch_operands = 1 : i64, tpu.core_type = #tpu.core_type<tc>} {
    %c0 = arith.constant 0 : index
    %c0_0 = arith.constant 0 : index
    %0 = vector.load %arg0[%c0, %c0_0] : memref<16x32xf32, #tpu.memory_space<vmem>>, vector<16x32xf32>
    %c0_1 = arith.constant 0 : index
    %c0_2 = arith.constant 0 : index
    %1 = vector.load %arg1[%c0_1, %c0_2] : memref<16x32xf32, #tpu.memory_space<vmem>>, vector<16x32xf32>
    %c0_3 = arith.constant 0 : index
    %c0_4 = arith.constant 0 : index
    %2 = vector.load %arg4[%c0_3, %c0_4] : memref<32x96xf32, #tpu.memory_space<vmem>>, vector<32x96xf32>
    %cst = arith.constant dense<0.000000e+00> : vector<16x96xf32>
    %3 = tpu.matmul %0, %2, %cst {dimension_numbers = #tpu.dot_dimension_numbers<[1], [0], [0], [1], [0, 0, 1, 1], [], []>} : vector<16x32xf32>, vector<32x96xf32>, vector<16x96xf32> -> vector<16x96xf32>
    %c0_5 = arith.constant 0 : index
    %c0_6 = arith.constant 0 : index
    %4 = vector.load %arg5[%c0_5, %c0_6] : memref<1x96xf32, #tpu.memory_space<vmem>>, vector<1x96xf32>
    %5 = vector.broadcast %4 : vector<1x96xf32> to vector<16x96xf32>
    %6 = arith.addf %3, %5 : vector<16x96xf32>
    %7 = vector.extract_strided_slice %6 {offsets = [0, 0], sizes = [16, 32], strides = [1, 1]} : vector<16x96xf32> to vector<16x32xf32>
    %8 = vector.extract_strided_slice %6 {offsets = [0, 32], sizes = [16, 32], strides = [1, 1]} : vector<16x96xf32> to vector<16x32xf32>
    %9 = vector.extract_strided_slice %6 {offsets = [0, 64], sizes = [16, 32], strides = [1, 1]} : vector<16x96xf32> to vector<16x32xf32>
    %c0_7 = arith.constant 0 : index
    %c0_8 = arith.constant 0 : index
    %c0_9 = arith.constant 0 : index
    %10 = vector.load %arg2[%c0_7, %c0_8, %c0_9] : memref<2x8x8xi32, #tpu.memory_space<vmem>>, vector<1x8x8xi32>
    %11 = vector.shape_cast %10 : vector<1x8x8xi32> to vector<8x8xi32>
    %c0_i32 = arith.constant 0 : i32
    %12 = vector.broadcast %c0_i32 : i32 to vector<8x8xi32>
    %13 = arith.cmpi ne, %11, %12 : vector<8x8xi32>
    %14 = vector.extract_strided_slice %7 {offsets = [0, 0], sizes = [8, 8], strides = [1, 1]} : vector<16x32xf32> to vector<8x8xf32>
    %15 = vector.extract_strided_slice %8 {offsets = [0, 0], sizes = [8, 8], strides = [1, 1]} : vector<16x32xf32> to vector<8x8xf32>
    %16 = vector.extract_strided_slice %9 {offsets = [0, 0], sizes = [8, 8], strides = [1, 1]} : vector<16x32xf32> to vector<8x8xf32>
    %cst_10 = arith.constant dense<0.000000e+00> : vector<8x8xf32>
    %17 = tpu.matmul %14, %15, %cst_10 {dimension_numbers = #tpu.dot_dimension_numbers<[1], [1], [0], [0], [0, 0, 1, 0], [], []>} : vector<8x8xf32>, vector<8x8xf32>, vector<8x8xf32> -> vector<8x8xf32>
    %cst_11 = arith.constant -1.000000e+09 : f32
    %18 = vector.broadcast %cst_11 : f32 to vector<8x8xf32>
    %19 = arith.select %13, %18, %17 : vector<8x8xi1>, vector<8x8xf32>
    %cst_12 = arith.constant dense<0xFF800000> : vector<8xf32>
    %20 = vector.multi_reduction <maximumf>, %19, %cst_12 [1] : vector<8x8xf32> to vector<8xf32>
    %21 = vector.shape_cast %20 : vector<8xf32> to vector<8x1xf32>
    %22 = vector.broadcast %21 : vector<8x1xf32> to vector<8x8xf32>
    %23 = arith.subf %19, %22 : vector<8x8xf32>
    %24 = math.exp %23 : vector<8x8xf32>
    %cst_13 = arith.constant dense<0.000000e+00> : vector<8xf32>
    %25 = vector.multi_reduction <add>, %24, %cst_13 [1] : vector<8x8xf32> to vector<8xf32>
    %26 = vector.shape_cast %25 : vector<8xf32> to vector<8x1xf32>
    %27 = tpu.reciprocal %26 {approx = true} : vector<8x1xf32> -> vector<8x1xf32>
    %28 = vector.broadcast %27 : vector<8x1xf32> to vector<8x8xf32>
    %29 = arith.mulf %24, %28 : vector<8x8xf32>
    %cst_14 = arith.constant dense<0.000000e+00> : vector<8x8xf32>
    %30 = tpu.matmul %29, %16, %cst_14 {dimension_numbers = #tpu.dot_dimension_numbers<[1], [0], [0], [1], [0, 0, 1, 1], [], []>} : vector<8x8xf32>, vector<8x8xf32>, vector<8x8xf32> -> vector<8x8xf32>
    %c0_15 = arith.constant 0 : index
    %c0_16 = arith.constant 0 : index
    %31 = vector.load %arg27[%c0_15, %c0_16] : memref<64x8xf32, #tpu.memory_space<vmem>>, vector<8x8xf32>
    tpu.vector_store %arg27[%c0_15, %c0_16], %30 {strides = array<i32>} : memref<64x8xf32, #tpu.memory_space<vmem>>, vector<8x8xf32>,
    %32 = vector.extract_strided_slice %7 {offsets = [0, 8], sizes = [8, 8], strides = [1, 1]} : vector<16x32xf32> to vector<8x8xf32>
    %33 = vector.extract_strided_slice %8 {offsets = [0, 8], sizes = [8, 8], strides = [1, 1]} : vector<16x32xf32> to vector<8x8xf32>
    %34 = vector.extract_strided_slice %9 {offsets = [0, 8], sizes = [8, 8], strides = [1, 1]} : vector<16x32xf32> to vector<8x8xf32>
    %cst_17 = arith.constant dense<0.000000e+00> : vector<8x8xf32>
    %35 = tpu.matmul %32, %33, %cst_17 {dimension_numbers = #tpu.dot_dimension_numbers<[1], [1], [0], [0], [0, 0, 1, 0], [], []>} : vector<8x8xf32>, vector<8x8xf32>, vector<8x8xf32> -> vector<8x8xf32>
    %cst_18 = arith.constant -1.000000e+09 : f32
    %36 = vector.broadcast %cst_18 : f32 to vector<8x8xf32>
    %37 = arith.select %13, %36, %35 : vector<8x8xi1>, vector<8x8xf32>
    %cst_19 = arith.constant dense<0xFF800000> : vector<8xf32>
    %38 = vector.multi_reduction <maximumf>, %37, %cst_19 [1] : vector<8x8xf32> to vector<8xf32>
    %39 = vector.shape_cast %38 : vector<8xf32> to vector<8x1xf32>
    %40 = vector.broadcast %39 : vector<8x1xf32> to vector<8x8xf32>
    %41 = arith.subf %37, %40 : vector<8x8xf32>
    %42 = math.exp %41 : vector<8x8xf32>
    %cst_20 = arith.constant dense<0.000000e+00> : vector<8xf32>
    %43 = vector.multi_reduction <add>, %42, %cst_20 [1] : vector<8x8xf32> to vector<8xf32>
    %44 = vector.shape_cast %43 : vector<8xf32> to vector<8x1xf32>
    %45 = tpu.reciprocal %44 {approx = true} : vector<8x1xf32> -> vector<8x1xf32>
    %46 = vector.broadcast %45 : vector<8x1xf32> to vector<8x8xf32>
    %47 = arith.mulf %42, %46 : vector<8x8xf32>
    %cst_21 = arith.constant dense<0.000000e+00> : vector<8x8xf32>
    %48 = tpu.matmul %47, %34, %cst_21 {dimension_numbers = #tpu.dot_dimension_numbers<[1], [0], [0], [1], [0, 0, 1, 1], [], []>} : vector<8x8xf32>, vector<8x8xf32>, vector<8x8xf32> -> vector<8x8xf32>
    %c8 = arith.constant 8 : index
    %c0_22 = arith.constant 0 : index
    %49 = vector.load %arg27[%c8, %c0_22] : memref<64x8xf32, #tpu.memory_space<vmem>>, vector<8x8xf32>
    tpu.vector_store %arg27[%c8, %c0_22], %48 {strides = array<i32>} : memref<64x8xf32, #tpu.memory_space<vmem>>, vector<8x8xf32>,
    %50 = vector.extract_strided_slice %7 {offsets = [0, 16], sizes = [8, 8], strides = [1, 1]} : vector<16x32xf32> to vector<8x8xf32>
    %51 = vector.extract_strided_slice %8 {offsets = [0, 16], sizes = [8, 8], strides = [1, 1]} : vector<16x32xf32> to vector<8x8xf32>
    %52 = vector.extract_strided_slice %9 {offsets = [0, 16], sizes = [8, 8], strides = [1, 1]} : vector<16x32xf32> to vector<8x8xf32>
    %cst_23 = arith.constant dense<0.000000e+00> : vector<8x8xf32>
    %53 = tpu.matmul %50, %51, %cst_23 {dimension_numbers = #tpu.dot_dimension_numbers<[1], [1], [0], [0], [0, 0, 1, 0], [], []>} : vector<8x8xf32>, vector<8x8xf32>, vector<8x8xf32> -> vector<8x8xf32>
    %cst_24 = arith.constant -1.000000e+09 : f32
    %54 = vector.broadcast %cst_24 : f32 to vector<8x8xf32>
    %55 = arith.select %13, %54, %53 : vector<8x8xi1>, vector<8x8xf32>
    %cst_25 = arith.constant dense<0xFF800000> : vector<8xf32>
    %56 = vector.multi_reduction <maximumf>, %55, %cst_25 [1] : vector<8x8xf32> to vector<8xf32>
    %57 = vector.shape_cast %56 : vector<8xf32> to vector<8x1xf32>
    %58 = vector.broadcast %57 : vector<8x1xf32> to vector<8x8xf32>
    %59 = arith.subf %55, %58 : vector<8x8xf32>
    %60 = math.exp %59 : vector<8x8xf32>
    %cst_26 = arith.constant dense<0.000000e+00> : vector<8xf32>
    %61 = vector.multi_reduction <add>, %60, %cst_26 [1] : vector<8x8xf32> to vector<8xf32>
    %62 = vector.shape_cast %61 : vector<8xf32> to vector<8x1xf32>
    %63 = tpu.reciprocal %62 {approx = true} : vector<8x1xf32> -> vector<8x1xf32>
    %64 = vector.broadcast %63 : vector<8x1xf32> to vector<8x8xf32>
    %65 = arith.mulf %60, %64 : vector<8x8xf32>
    %cst_27 = arith.constant dense<0.000000e+00> : vector<8x8xf32>
    %66 = tpu.matmul %65, %52, %cst_27 {dimension_numbers = #tpu.dot_dimension_numbers<[1], [0], [0], [1], [0, 0, 1, 1], [], []>} : vector<8x8xf32>, vector<8x8xf32>, vector<8x8xf32> -> vector<8x8xf32>
    %c16 = arith.constant 16 : index
    %c0_28 = arith.constant 0 : index
    %67 = vector.load %arg27[%c16, %c0_28] : memref<64x8xf32, #tpu.memory_space<vmem>>, vector<8x8xf32>
    tpu.vector_store %arg27[%c16, %c0_28], %66 {strides = array<i32>} : memref<64x8xf32, #tpu.memory_space<vmem>>, vector<8x8xf32>,
    %68 = vector.extract_strided_slice %7 {offsets = [0, 24], sizes = [8, 8], strides = [1, 1]} : vector<16x32xf32> to vector<8x8xf32>
    %69 = vector.extract_strided_slice %8 {offsets = [0, 24], sizes = [8, 8], strides = [1, 1]} : vector<16x32xf32> to vector<8x8xf32>
    %70 = vector.extract_strided_slice %9 {offsets = [0, 24], sizes = [8, 8], strides = [1, 1]} : vector<16x32xf32> to vector<8x8xf32>
    %cst_29 = arith.constant dense<0.000000e+00> : vector<8x8xf32>
    %71 = tpu.matmul %68, %69, %cst_29 {dimension_numbers = #tpu.dot_dimension_numbers<[1], [1], [0], [0], [0, 0, 1, 0], [], []>} : vector<8x8xf32>, vector<8x8xf32>, vector<8x8xf32> -> vector<8x8xf32>
    %cst_30 = arith.constant -1.000000e+09 : f32
    %72 = vector.broadcast %cst_30 : f32 to vector<8x8xf32>
    %73 = arith.select %13, %72, %71 : vector<8x8xi1>, vector<8x8xf32>
    %cst_31 = arith.constant dense<0xFF800000> : vector<8xf32>
    %74 = vector.multi_reduction <maximumf>, %73, %cst_31 [1] : vector<8x8xf32> to vector<8xf32>
    %75 = vector.shape_cast %74 : vector<8xf32> to vector<8x1xf32>
    %76 = vector.broadcast %75 : vector<8x1xf32> to vector<8x8xf32>
    %77 = arith.subf %73, %76 : vector<8x8xf32>
    %78 = math.exp %77 : vector<8x8xf32>
    %cst_32 = arith.constant dense<0.000000e+00> : vector<8xf32>
    %79 = vector.multi_reduction <add>, %78, %cst_32 [1] : vector<8x8xf32> to vector<8xf32>
    %80 = vector.shape_cast %79 : vector<8xf32> to vector<8x1xf32>
    %81 = tpu.reciprocal %80 {approx = true} : vector<8x1xf32> -> vector<8x1xf32>
    %82 = vector.broadcast %81 : vector<8x1xf32> to vector<8x8xf32>
    %83 = arith.mulf %78, %82 : vector<8x8xf32>
    %cst_33 = arith.constant dense<0.000000e+00> : vector<8x8xf32>
    %84 = tpu.matmul %83, %70, %cst_33 {dimension_numbers = #tpu.dot_dimension_numbers<[1], [0], [0], [1], [0, 0, 1, 1], [], []>} : vector<8x8xf32>, vector<8x8xf32>, vector<8x8xf32> -> vector<8x8xf32>
    %c24 = arith.constant 24 : index
    %c0_34 = arith.constant 0 : index
    %85 = vector.load %arg27[%c24, %c0_34] : memref<64x8xf32, #tpu.memory_space<vmem>>, vector<8x8xf32>
    tpu.vector_store %arg27[%c24, %c0_34], %84 {strides = array<i32>} : memref<64x8xf32, #tpu.memory_space<vmem>>, vector<8x8xf32>,
    %86 = tpu.concatenate %29, %47, %65, %83 in 1 : vector<8x8xf32>, vector<8x8xf32>, vector<8x8xf32>, vector<8x8xf32> -> vector<8x32xf32>
    %c1 = arith.constant 1 : index
    %c0_35 = arith.constant 0 : index
    %c0_36 = arith.constant 0 : index
    %87 = vector.load %arg2[%c1, %c0_35, %c0_36] : memref<2x8x8xi32, #tpu.memory_space<vmem>>, vector<1x8x8xi32>
    %88 = vector.shape_cast %87 : vector<1x8x8xi32> to vector<8x8xi32>
    %c0_i32_37 = arith.constant 0 : i32
    %89 = vector.broadcast %c0_i32_37 : i32 to vector<8x8xi32>
    %90 = arith.cmpi ne, %88, %89 : vector<8x8xi32>
    %91 = vector.extract_strided_slice %7 {offsets = [8, 0], sizes = [8, 8], strides = [1, 1]} : vector<16x32xf32> to vector<8x8xf32>
    %92 = vector.extract_strided_slice %8 {offsets = [8, 0], sizes = [8, 8], strides = [1, 1]} : vector<16x32xf32> to vector<8x8xf32>
    %93 = vector.extract_strided_slice %9 {offsets = [8, 0], sizes = [8, 8], strides = [1, 1]} : vector<16x32xf32> to vector<8x8xf32>
    %cst_38 = arith.constant dense<0.000000e+00> : vector<8x8xf32>
    %94 = tpu.matmul %91, %92, %cst_38 {dimension_numbers = #tpu.dot_dimension_numbers<[1], [1], [0], [0], [0, 0, 1, 0], [], []>} : vector<8x8xf32>, vector<8x8xf32>, vector<8x8xf32> -> vector<8x8xf32>
    %cst_39 = arith.constant -1.000000e+09 : f32
    %95 = vector.broadcast %cst_39 : f32 to vector<8x8xf32>
    %96 = arith.select %90, %95, %94 : vector<8x8xi1>, vector<8x8xf32>
    %cst_40 = arith.constant dense<0xFF800000> : vector<8xf32>
    %97 = vector.multi_reduction <maximumf>, %96, %cst_40 [1] : vector<8x8xf32> to vector<8xf32>
    %98 = vector.shape_cast %97 : vector<8xf32> to vector<8x1xf32>
    %99 = vector.broadcast %98 : vector<8x1xf32> to vector<8x8xf32>
    %100 = arith.subf %96, %99 : vector<8x8xf32>
    %101 = math.exp %100 : vector<8x8xf32>
    %cst_41 = arith.constant dense<0.000000e+00> : vector<8xf32>
    %102 = vector.multi_reduction <add>, %101, %cst_41 [1] : vector<8x8xf32> to vector<8xf32>
    %103 = vector.shape_cast %102 : vector<8xf32> to vector<8x1xf32>
    %104 = tpu.reciprocal %103 {approx = true} : vector<8x1xf32> -> vector<8x1xf32>
    %105 = vector.broadcast %104 : vector<8x1xf32> to vector<8x8xf32>
    %106 = arith.mulf %101, %105 : vector<8x8xf32>
    %cst_42 = arith.constant dense<0.000000e+00> : vector<8x8xf32>
    %107 = tpu.matmul %106, %93, %cst_42 {dimension_numbers = #tpu.dot_dimension_numbers<[1], [0], [0], [1], [0, 0, 1, 1], [], []>} : vector<8x8xf32>, vector<8x8xf32>, vector<8x8xf32> -> vector<8x8xf32>
    %c32 = arith.constant 32 : index
    %c0_43 = arith.constant 0 : index
    %108 = vector.load %arg27[%c32, %c0_43] : memref<64x8xf32, #tpu.memory_space<vmem>>, vector<8x8xf32>
    tpu.vector_store %arg27[%c32, %c0_43], %107 {strides = array<i32>} : memref<64x8xf32, #tpu.memory_space<vmem>>, vector<8x8xf32>,
    %109 = vector.extract_strided_slice %7 {offsets = [8, 8], sizes = [8, 8], strides = [1, 1]} : vector<16x32xf32> to vector<8x8xf32>
    %110 = vector.extract_strided_slice %8 {offsets = [8, 8], sizes = [8, 8], strides = [1, 1]} : vector<16x32xf32> to vector<8x8xf32>
    %111 = vector.extract_strided_slice %9 {offsets = [8, 8], sizes = [8, 8], strides = [1, 1]} : vector<16x32xf32> to vector<8x8xf32>
    %cst_44 = arith.constant dense<0.000000e+00> : vector<8x8xf32>
    %112 = tpu.matmul %109, %110, %cst_44 {dimension_numbers = #tpu.dot_dimension_numbers<[1], [1], [0], [0], [0, 0, 1, 0], [], []>} : vector<8x8xf32>, vector<8x8xf32>, vector<8x8xf32> -> vector<8x8xf32>
    %cst_45 = arith.constant -1.000000e+09 : f32
    %113 = vector.broadcast %cst_45 : f32 to vector<8x8xf32>
    %114 = arith.select %90, %113, %112 : vector<8x8xi1>, vector<8x8xf32>
    %cst_46 = arith.constant dense<0xFF800000> : vector<8xf32>
    %115 = vector.multi_reduction <maximumf>, %114, %cst_46 [1] : vector<8x8xf32> to vector<8xf32>
    %116 = vector.shape_cast %115 : vector<8xf32> to vector<8x1xf32>
    %117 = vector.broadcast %116 : vector<8x1xf32> to vector<8x8xf32>
    %118 = arith.subf %114, %117 : vector<8x8xf32>
    %119 = math.exp %118 : vector<8x8xf32>
    %cst_47 = arith.constant dense<0.000000e+00> : vector<8xf32>
    %120 = vector.multi_reduction <add>, %119, %cst_47 [1] : vector<8x8xf32> to vector<8xf32>
    %121 = vector.shape_cast %120 : vector<8xf32> to vector<8x1xf32>
    %122 = tpu.reciprocal %121 {approx = true} : vector<8x1xf32> -> vector<8x1xf32>
    %123 = vector.broadcast %122 : vector<8x1xf32> to vector<8x8xf32>
    %124 = arith.mulf %119, %123 : vector<8x8xf32>
    %cst_48 = arith.constant dense<0.000000e+00> : vector<8x8xf32>
    %125 = tpu.matmul %124, %111, %cst_48 {dimension_numbers = #tpu.dot_dimension_numbers<[1], [0], [0], [1], [0, 0, 1, 1], [], []>} : vector<8x8xf32>, vector<8x8xf32>, vector<8x8xf32> -> vector<8x8xf32>
    %c40 = arith.constant 40 : index
    %c0_49 = arith.constant 0 : index
    %126 = vector.load %arg27[%c40, %c0_49] : memref<64x8xf32, #tpu.memory_space<vmem>>, vector<8x8xf32>
    tpu.vector_store %arg27[%c40, %c0_49], %125 {strides = array<i32>} : memref<64x8xf32, #tpu.memory_space<vmem>>, vector<8x8xf32>,
    %127 = vector.extract_strided_slice %7 {offsets = [8, 16], sizes = [8, 8], strides = [1, 1]} : vector<16x32xf32> to vector<8x8xf32>
    %128 = vector.extract_strided_slice %8 {offsets = [8, 16], sizes = [8, 8], strides = [1, 1]} : vector<16x32xf32> to vector<8x8xf32>
    %129 = vector.extract_strided_slice %9 {offsets = [8, 16], sizes = [8, 8], strides = [1, 1]} : vector<16x32xf32> to vector<8x8xf32>
    %cst_50 = arith.constant dense<0.000000e+00> : vector<8x8xf32>
    %130 = tpu.matmul %127, %128, %cst_50 {dimension_numbers = #tpu.dot_dimension_numbers<[1], [1], [0], [0], [0, 0, 1, 0], [], []>} : vector<8x8xf32>, vector<8x8xf32>, vector<8x8xf32> -> vector<8x8xf32>
    %cst_51 = arith.constant -1.000000e+09 : f32
    %131 = vector.broadcast %cst_51 : f32 to vector<8x8xf32>
    %132 = arith.select %90, %131, %130 : vector<8x8xi1>, vector<8x8xf32>
    %cst_52 = arith.constant dense<0xFF800000> : vector<8xf32>
    %133 = vector.multi_reduction <maximumf>, %132, %cst_52 [1] : vector<8x8xf32> to vector<8xf32>
    %134 = vector.shape_cast %133 : vector<8xf32> to vector<8x1xf32>
    %135 = vector.broadcast %134 : vector<8x1xf32> to vector<8x8xf32>
    %136 = arith.subf %132, %135 : vector<8x8xf32>
    %137 = math.exp %136 : vector<8x8xf32>
    %cst_53 = arith.constant dense<0.000000e+00> : vector<8xf32>
    %138 = vector.multi_reduction <add>, %137, %cst_53 [1] : vector<8x8xf32> to vector<8xf32>
    %139 = vector.shape_cast %138 : vector<8xf32> to vector<8x1xf32>
    %140 = tpu.reciprocal %139 {approx = true} : vector<8x1xf32> -> vector<8x1xf32>
    %141 = vector.broadcast %140 : vector<8x1xf32> to vector<8x8xf32>
    %142 = arith.mulf %137, %141 : vector<8x8xf32>
    %cst_54 = arith.constant dense<0.000000e+00> : vector<8x8xf32>
    %143 = tpu.matmul %142, %129, %cst_54 {dimension_numbers = #tpu.dot_dimension_numbers<[1], [0], [0], [1], [0, 0, 1, 1], [], []>} : vector<8x8xf32>, vector<8x8xf32>, vector<8x8xf32> -> vector<8x8xf32>
    %c48 = arith.constant 48 : index
    %c0_55 = arith.constant 0 : index
    %144 = vector.load %arg27[%c48, %c0_55] : memref<64x8xf32, #tpu.memory_space<vmem>>, vector<8x8xf32>
    tpu.vector_store %arg27[%c48, %c0_55], %143 {strides = array<i32>} : memref<64x8xf32, #tpu.memory_space<vmem>>, vector<8x8xf32>,
    %145 = vector.extract_strided_slice %7 {offsets = [8, 24], sizes = [8, 8], strides = [1, 1]} : vector<16x32xf32> to vector<8x8xf32>
    %146 = vector.extract_strided_slice %8 {offsets = [8, 24], sizes = [8, 8], strides = [1, 1]} : vector<16x32xf32> to vector<8x8xf32>
    %147 = vector.extract_strided_slice %9 {offsets = [8, 24], sizes = [8, 8], strides = [1, 1]} : vector<16x32xf32> to vector<8x8xf32>
    %cst_56 = arith.constant dense<0.000000e+00> : vector<8x8xf32>
    %148 = tpu.matmul %145, %146, %cst_56 {dimension_numbers = #tpu.dot_dimension_numbers<[1], [1], [0], [0], [0, 0, 1, 0], [], []>} : vector<8x8xf32>, vector<8x8xf32>, vector<8x8xf32> -> vector<8x8xf32>
    %cst_57 = arith.constant -1.000000e+09 : f32
    %149 = vector.broadcast %cst_57 : f32 to vector<8x8xf32>
    %150 = arith.select %90, %149, %148 : vector<8x8xi1>, vector<8x8xf32>
    %cst_58 = arith.constant dense<0xFF800000> : vector<8xf32>
    %151 = vector.multi_reduction <maximumf>, %150, %cst_58 [1] : vector<8x8xf32> to vector<8xf32>
    %152 = vector.shape_cast %151 : vector<8xf32> to vector<8x1xf32>
    %153 = vector.broadcast %152 : vector<8x1xf32> to vector<8x8xf32>
    %154 = arith.subf %150, %153 : vector<8x8xf32>
    %155 = math.exp %154 : vector<8x8xf32>
    %cst_59 = arith.constant dense<0.000000e+00> : vector<8xf32>
    %156 = vector.multi_reduction <add>, %155, %cst_59 [1] : vector<8x8xf32> to vector<8xf32>
    %157 = vector.shape_cast %156 : vector<8xf32> to vector<8x1xf32>
    %158 = tpu.reciprocal %157 {approx = true} : vector<8x1xf32> -> vector<8x1xf32>
    %159 = vector.broadcast %158 : vector<8x1xf32> to vector<8x8xf32>
    %160 = arith.mulf %155, %159 : vector<8x8xf32>
    %cst_60 = arith.constant dense<0.000000e+00> : vector<8x8xf32>
    %161 = tpu.matmul %160, %147, %cst_60 {dimension_numbers = #tpu.dot_dimension_numbers<[1], [0], [0], [1], [0, 0, 1, 1], [], []>} : vector<8x8xf32>, vector<8x8xf32>, vector<8x8xf32> -> vector<8x8xf32>
    %c56 = arith.constant 56 : index
    %c0_61 = arith.constant 0 : index
    %162 = vector.load %arg27[%c56, %c0_61] : memref<64x8xf32, #tpu.memory_space<vmem>>, vector<8x8xf32>
    tpu.vector_store %arg27[%c56, %c0_61], %161 {strides = array<i32>} : memref<64x8xf32, #tpu.memory_space<vmem>>, vector<8x8xf32>,
    %163 = tpu.concatenate %106, %124, %142, %160 in 1 : vector<8x8xf32>, vector<8x8xf32>, vector<8x8xf32>, vector<8x8xf32> -> vector<8x32xf32>
    %164 = tpu.concatenate %86, %163 in 0 : vector<8x32xf32>, vector<8x32xf32> -> vector<16x32xf32>
    %c0_62 = arith.constant 0 : index
    %c0_63 = arith.constant 0 : index
    %165 = tpu.strided_load %arg27[%c0_62, %c0_63] {strides = array<i32: 4, 1>} : memref<64x8xf32, #tpu.memory_space<vmem>>, vector<8x8xf32>
    %c1_64 = arith.constant 1 : index
    %c0_65 = arith.constant 0 : index
    %166 = tpu.strided_load %arg27[%c1_64, %c0_65] {strides = array<i32: 4, 1>} : memref<64x8xf32, #tpu.memory_space<vmem>>, vector<8x8xf32>
    %c2 = arith.constant 2 : index
    %c0_66 = arith.constant 0 : index
    %167 = tpu.strided_load %arg27[%c2, %c0_66] {strides = array<i32: 4, 1>} : memref<64x8xf32, #tpu.memory_space<vmem>>, vector<8x8xf32>
    %c3 = arith.constant 3 : index
    %c0_67 = arith.constant 0 : index
    %168 = tpu.strided_load %arg27[%c3, %c0_67] {strides = array<i32: 4, 1>} : memref<64x8xf32, #tpu.memory_space<vmem>>, vector<8x8xf32>
    %169 = tpu.concatenate %165, %166, %167, %168 in 1 : vector<8x8xf32>, vector<8x8xf32>, vector<8x8xf32>, vector<8x8xf32> -> vector<8x32xf32>
    %c32_68 = arith.constant 32 : index
    %c0_69 = arith.constant 0 : index
    %170 = tpu.strided_load %arg27[%c32_68, %c0_69] {strides = array<i32: 4, 1>} : memref<64x8xf32, #tpu.memory_space<vmem>>, vector<8x8xf32>
    %c33 = arith.constant 33 : index
    %c0_70 = arith.constant 0 : index
    %171 = tpu.strided_load %arg27[%c33, %c0_70] {strides = array<i32: 4, 1>} : memref<64x8xf32, #tpu.memory_space<vmem>>, vector<8x8xf32>
    %c34 = arith.constant 34 : index
    %c0_71 = arith.constant 0 : index
    %172 = tpu.strided_load %arg27[%c34, %c0_71] {strides = array<i32: 4, 1>} : memref<64x8xf32, #tpu.memory_space<vmem>>, vector<8x8xf32>
    %c35 = arith.constant 35 : index
    %c0_72 = arith.constant 0 : index
    %173 = tpu.strided_load %arg27[%c35, %c0_72] {strides = array<i32: 4, 1>} : memref<64x8xf32, #tpu.memory_space<vmem>>, vector<8x8xf32>
    %174 = tpu.concatenate %170, %171, %172, %173 in 1 : vector<8x8xf32>, vector<8x8xf32>, vector<8x8xf32>, vector<8x8xf32> -> vector<8x32xf32>
    %175 = tpu.concatenate %169, %174 in 0 : vector<8x32xf32>, vector<8x32xf32> -> vector<16x32xf32>
    %c0_73 = arith.constant 0 : index
    %c0_74 = arith.constant 0 : index
    %176 = vector.load %arg6[%c0_73, %c0_74] : memref<32x32xf32, #tpu.memory_space<vmem>>, vector<32x32xf32>
    %cst_75 = arith.constant dense<0.000000e+00> : vector<16x32xf32>
    %177 = tpu.matmul %175, %176, %cst_75 {dimension_numbers = #tpu.dot_dimension_numbers<[1], [0], [0], [1], [0, 0, 1, 1], [], []>} : vector<16x32xf32>, vector<32x32xf32>, vector<16x32xf32> -> vector<16x32xf32>
    %c0_76 = arith.constant 0 : index
    %c0_77 = arith.constant 0 : index
    %178 = vector.load %arg7[%c0_76, %c0_77] : memref<1x32xf32, #tpu.memory_space<vmem>>, vector<1x32xf32>
    %179 = vector.broadcast %178 : vector<1x32xf32> to vector<16x32xf32>
    %180 = arith.addf %177, %179 : vector<16x32xf32>
    %c0_78 = arith.constant 0 : index
    %c0_79 = arith.constant 0 : index
    %181 = vector.load %arg24[%c0_78, %c0_79] : memref<16x32xf32, #tpu.memory_space<vmem>>, vector<16x32xf32>
    tpu.vector_store %arg24[%c0_78, %c0_79], %164 {strides = array<i32>} : memref<16x32xf32, #tpu.memory_space<vmem>>, vector<16x32xf32>,
    %182 = arith.addf %180, %0 : vector<16x32xf32>
    %cst_80 = arith.constant dense<0.000000e+00> : vector<16xf32>
    %183 = vector.multi_reduction <add>, %182, %cst_80 [1] : vector<16x32xf32> to vector<16xf32>
    %184 = vector.shape_cast %183 : vector<16xf32> to vector<16x1xf32>
    %cst_81 = arith.constant 3.200000e+01 : f32
    %185 = vector.broadcast %cst_81 : f32 to vector<16x1xf32>
    %186 = arith.divf %184, %185 : vector<16x1xf32>
    %187 = vector.broadcast %186 : vector<16x1xf32> to vector<16x32xf32>
    %188 = arith.subf %182, %187 : vector<16x32xf32>
    %189 = arith.mulf %188, %188 : vector<16x32xf32>
    %cst_82 = arith.constant dense<0.000000e+00> : vector<16xf32>
    %190 = vector.multi_reduction <add>, %189, %cst_82 [1] : vector<16x32xf32> to vector<16xf32>
    %191 = vector.shape_cast %190 : vector<16xf32> to vector<16x1xf32>
    %cst_83 = arith.constant 3.200000e+01 : f32
    %192 = vector.broadcast %cst_83 : f32 to vector<16x1xf32>
    %193 = arith.divf %191, %192 : vector<16x1xf32>
    %cst_84 = arith.constant 9.99999974E-6 : f32
    %194 = vector.broadcast %cst_84 : f32 to vector<16x1xf32>
    %195 = arith.addf %193, %194 : vector<16x1xf32>
    %196 = math.rsqrt %195 : vector<16x1xf32>
    %197 = vector.broadcast %196 : vector<16x1xf32> to vector<16x32xf32>
    %198 = arith.mulf %188, %197 : vector<16x32xf32>
    %c0_85 = arith.constant 0 : index
    %c0_86 = arith.constant 0 : index
    %199 = vector.load %arg8[%c0_85, %c0_86] : memref<1x32xf32, #tpu.memory_space<vmem>>, vector<1x32xf32>
    %200 = vector.broadcast %199 : vector<1x32xf32> to vector<16x32xf32>
    %201 = arith.mulf %198, %200 : vector<16x32xf32>
    %c0_87 = arith.constant 0 : index
    %c0_88 = arith.constant 0 : index
    %202 = vector.load %arg9[%c0_87, %c0_88] : memref<1x32xf32, #tpu.memory_space<vmem>>, vector<1x32xf32>
    %203 = vector.broadcast %202 : vector<1x32xf32> to vector<16x32xf32>
    %204 = arith.addf %201, %203 : vector<16x32xf32>
    %c0_89 = arith.constant 0 : index
    %c0_90 = arith.constant 0 : index
    %205 = vector.load %arg10[%c0_89, %c0_90] : memref<32x32xf32, #tpu.memory_space<vmem>>, vector<32x32xf32>
    %cst_91 = arith.constant dense<0.000000e+00> : vector<16x32xf32>
    %206 = tpu.matmul %204, %205, %cst_91 {dimension_numbers = #tpu.dot_dimension_numbers<[1], [0], [0], [1], [0, 0, 1, 1], [], []>} : vector<16x32xf32>, vector<32x32xf32>, vector<16x32xf32> -> vector<16x32xf32>
    %c0_92 = arith.constant 0 : index
    %c0_93 = arith.constant 0 : index
    %207 = vector.load %arg11[%c0_92, %c0_93] : memref<1x32xf32, #tpu.memory_space<vmem>>, vector<1x32xf32>
    %208 = vector.broadcast %207 : vector<1x32xf32> to vector<16x32xf32>
    %209 = arith.addf %206, %208 : vector<16x32xf32>
    %c0_94 = arith.constant 0 : index
    %c0_95 = arith.constant 0 : index
    %210 = vector.load %arg12[%c0_94, %c0_95] : memref<32x64xf32, #tpu.memory_space<vmem>>, vector<32x64xf32>
    %cst_96 = arith.constant dense<0.000000e+00> : vector<16x64xf32>
    %211 = tpu.matmul %1, %210, %cst_96 {dimension_numbers = #tpu.dot_dimension_numbers<[1], [0], [0], [1], [0, 0, 1, 1], [], []>} : vector<16x32xf32>, vector<32x64xf32>, vector<16x64xf32> -> vector<16x64xf32>
    %c0_97 = arith.constant 0 : index
    %c0_98 = arith.constant 0 : index
    %212 = vector.load %arg13[%c0_97, %c0_98] : memref<1x64xf32, #tpu.memory_space<vmem>>, vector<1x64xf32>
    %213 = vector.broadcast %212 : vector<1x64xf32> to vector<16x64xf32>
    %214 = arith.addf %211, %213 : vector<16x64xf32>
    %215 = vector.extract_strided_slice %214 {offsets = [0, 0], sizes = [16, 32], strides = [1, 1]} : vector<16x64xf32> to vector<16x32xf32>
    %216 = vector.extract_strided_slice %214 {offsets = [0, 32], sizes = [16, 32], strides = [1, 1]} : vector<16x64xf32> to vector<16x32xf32>
    %c0_99 = arith.constant 0 : index
    %c0_100 = arith.constant 0 : index
    %c0_101 = arith.constant 0 : index
    %217 = vector.load %arg3[%c0_99, %c0_100, %c0_101] : memref<2x8x8xi32, #tpu.memory_space<vmem>>, vector<1x8x8xi32>
    %218 = vector.shape_cast %217 : vector<1x8x8xi32> to vector<8x8xi32>
    %c0_i32_102 = arith.constant 0 : i32
    %219 = vector.broadcast %c0_i32_102 : i32 to vector<8x8xi32>
    %220 = arith.cmpi ne, %218, %219 : vector<8x8xi32>
    %221 = vector.extract_strided_slice %209 {offsets = [0, 0], sizes = [8, 8], strides = [1, 1]} : vector<16x32xf32> to vector<8x8xf32>
    %222 = vector.extract_strided_slice %215 {offsets = [0, 0], sizes = [8, 8], strides = [1, 1]} : vector<16x32xf32> to vector<8x8xf32>
    %223 = vector.extract_strided_slice %216 {offsets = [0, 0], sizes = [8, 8], strides = [1, 1]} : vector<16x32xf32> to vector<8x8xf32>
    %cst_103 = arith.constant dense<0.000000e+00> : vector<8x8xf32>
    %224 = tpu.matmul %221, %222, %cst_103 {dimension_numbers = #tpu.dot_dimension_numbers<[1], [1], [0], [0], [0, 0, 1, 0], [], []>} : vector<8x8xf32>, vector<8x8xf32>, vector<8x8xf32> -> vector<8x8xf32>
    %cst_104 = arith.constant -1.000000e+09 : f32
    %225 = vector.broadcast %cst_104 : f32 to vector<8x8xf32>
    %226 = arith.select %220, %225, %224 : vector<8x8xi1>, vector<8x8xf32>
    %cst_105 = arith.constant dense<0xFF800000> : vector<8xf32>
    %227 = vector.multi_reduction <maximumf>, %226, %cst_105 [1] : vector<8x8xf32> to vector<8xf32>
    %228 = vector.shape_cast %227 : vector<8xf32> to vector<8x1xf32>
    %229 = vector.broadcast %228 : vector<8x1xf32> to vector<8x8xf32>
    %230 = arith.subf %226, %229 : vector<8x8xf32>
    %231 = math.exp %230 : vector<8x8xf32>
    %cst_106 = arith.constant dense<0.000000e+00> : vector<8xf32>
    %232 = vector.multi_reduction <add>, %231, %cst_106 [1] : vector<8x8xf32> to vector<8xf32>
    %233 = vector.shape_cast %232 : vector<8xf32> to vector<8x1xf32>
    %234 = tpu.reciprocal %233 {approx = true} : vector<8x1xf32> -> vector<8x1xf32>
    %235 = vector.broadcast %234 : vector<8x1xf32> to vector<8x8xf32>
    %236 = arith.mulf %231, %235 : vector<8x8xf32>
    %cst_107 = arith.constant dense<0.000000e+00> : vector<8x8xf32>
    %237 = tpu.matmul %236, %223, %cst_107 {dimension_numbers = #tpu.dot_dimension_numbers<[1], [0], [0], [1], [0, 0, 1, 1], [], []>} : vector<8x8xf32>, vector<8x8xf32>, vector<8x8xf32> -> vector<8x8xf32>
    %c0_108 = arith.constant 0 : index
    %c0_109 = arith.constant 0 : index
    %238 = vector.load %arg27[%c0_108, %c0_109] : memref<64x8xf32, #tpu.memory_space<vmem>>, vector<8x8xf32>
    tpu.vector_store %arg27[%c0_108, %c0_109], %237 {strides = array<i32>} : memref<64x8xf32, #tpu.memory_space<vmem>>, vector<8x8xf32>,
    %239 = vector.extract_strided_slice %209 {offsets = [0, 8], sizes = [8, 8], strides = [1, 1]} : vector<16x32xf32> to vector<8x8xf32>
    %240 = vector.extract_strided_slice %215 {offsets = [0, 8], sizes = [8, 8], strides = [1, 1]} : vector<16x32xf32> to vector<8x8xf32>
    %241 = vector.extract_strided_slice %216 {offsets = [0, 8], sizes = [8, 8], strides = [1, 1]} : vector<16x32xf32> to vector<8x8xf32>
    %cst_110 = arith.constant dense<0.000000e+00> : vector<8x8xf32>
    %242 = tpu.matmul %239, %240, %cst_110 {dimension_numbers = #tpu.dot_dimension_numbers<[1], [1], [0], [0], [0, 0, 1, 0], [], []>} : vector<8x8xf32>, vector<8x8xf32>, vector<8x8xf32> -> vector<8x8xf32>
    %cst_111 = arith.constant -1.000000e+09 : f32
    %243 = vector.broadcast %cst_111 : f32 to vector<8x8xf32>
    %244 = arith.select %220, %243, %242 : vector<8x8xi1>, vector<8x8xf32>
    %cst_112 = arith.constant dense<0xFF800000> : vector<8xf32>
    %245 = vector.multi_reduction <maximumf>, %244, %cst_112 [1] : vector<8x8xf32> to vector<8xf32>
    %246 = vector.shape_cast %245 : vector<8xf32> to vector<8x1xf32>
    %247 = vector.broadcast %246 : vector<8x1xf32> to vector<8x8xf32>
    %248 = arith.subf %244, %247 : vector<8x8xf32>
    %249 = math.exp %248 : vector<8x8xf32>
    %cst_113 = arith.constant dense<0.000000e+00> : vector<8xf32>
    %250 = vector.multi_reduction <add>, %249, %cst_113 [1] : vector<8x8xf32> to vector<8xf32>
    %251 = vector.shape_cast %250 : vector<8xf32> to vector<8x1xf32>
    %252 = tpu.reciprocal %251 {approx = true} : vector<8x1xf32> -> vector<8x1xf32>
    %253 = vector.broadcast %252 : vector<8x1xf32> to vector<8x8xf32>
    %254 = arith.mulf %249, %253 : vector<8x8xf32>
    %cst_114 = arith.constant dense<0.000000e+00> : vector<8x8xf32>
    %255 = tpu.matmul %254, %241, %cst_114 {dimension_numbers = #tpu.dot_dimension_numbers<[1], [0], [0], [1], [0, 0, 1, 1], [], []>} : vector<8x8xf32>, vector<8x8xf32>, vector<8x8xf32> -> vector<8x8xf32>
    %c8_115 = arith.constant 8 : index
    %c0_116 = arith.constant 0 : index
    %256 = vector.load %arg27[%c8_115, %c0_116] : memref<64x8xf32, #tpu.memory_space<vmem>>, vector<8x8xf32>
    tpu.vector_store %arg27[%c8_115, %c0_116], %255 {strides = array<i32>} : memref<64x8xf32, #tpu.memory_space<vmem>>, vector<8x8xf32>,
    %257 = vector.extract_strided_slice %209 {offsets = [0, 16], sizes = [8, 8], strides = [1, 1]} : vector<16x32xf32> to vector<8x8xf32>
    %258 = vector.extract_strided_slice %215 {offsets = [0, 16], sizes = [8, 8], strides = [1, 1]} : vector<16x32xf32> to vector<8x8xf32>
    %259 = vector.extract_strided_slice %216 {offsets = [0, 16], sizes = [8, 8], strides = [1, 1]} : vector<16x32xf32> to vector<8x8xf32>
    %cst_117 = arith.constant dense<0.000000e+00> : vector<8x8xf32>
    %260 = tpu.matmul %257, %258, %cst_117 {dimension_numbers = #tpu.dot_dimension_numbers<[1], [1], [0], [0], [0, 0, 1, 0], [], []>} : vector<8x8xf32>, vector<8x8xf32>, vector<8x8xf32> -> vector<8x8xf32>
    %cst_118 = arith.constant -1.000000e+09 : f32
    %261 = vector.broadcast %cst_118 : f32 to vector<8x8xf32>
    %262 = arith.select %220, %261, %260 : vector<8x8xi1>, vector<8x8xf32>
    %cst_119 = arith.constant dense<0xFF800000> : vector<8xf32>
    %263 = vector.multi_reduction <maximumf>, %262, %cst_119 [1] : vector<8x8xf32> to vector<8xf32>
    %264 = vector.shape_cast %263 : vector<8xf32> to vector<8x1xf32>
    %265 = vector.broadcast %264 : vector<8x1xf32> to vector<8x8xf32>
    %266 = arith.subf %262, %265 : vector<8x8xf32>
    %267 = math.exp %266 : vector<8x8xf32>
    %cst_120 = arith.constant dense<0.000000e+00> : vector<8xf32>
    %268 = vector.multi_reduction <add>, %267, %cst_120 [1] : vector<8x8xf32> to vector<8xf32>
    %269 = vector.shape_cast %268 : vector<8xf32> to vector<8x1xf32>
    %270 = tpu.reciprocal %269 {approx = true} : vector<8x1xf32> -> vector<8x1xf32>
    %271 = vector.broadcast %270 : vector<8x1xf32> to vector<8x8xf32>
    %272 = arith.mulf %267, %271 : vector<8x8xf32>
    %cst_121 = arith.constant dense<0.000000e+00> : vector<8x8xf32>
    %273 = tpu.matmul %272, %259, %cst_121 {dimension_numbers = #tpu.dot_dimension_numbers<[1], [0], [0], [1], [0, 0, 1, 1], [], []>} : vector<8x8xf32>, vector<8x8xf32>, vector<8x8xf32> -> vector<8x8xf32>
    %c16_122 = arith.constant 16 : index
    %c0_123 = arith.constant 0 : index
    %274 = vector.load %arg27[%c16_122, %c0_123] : memref<64x8xf32, #tpu.memory_space<vmem>>, vector<8x8xf32>
    tpu.vector_store %arg27[%c16_122, %c0_123], %273 {strides = array<i32>} : memref<64x8xf32, #tpu.memory_space<vmem>>, vector<8x8xf32>,
    %275 = vector.extract_strided_slice %209 {offsets = [0, 24], sizes = [8, 8], strides = [1, 1]} : vector<16x32xf32> to vector<8x8xf32>
    %276 = vector.extract_strided_slice %215 {offsets = [0, 24], sizes = [8, 8], strides = [1, 1]} : vector<16x32xf32> to vector<8x8xf32>
    %277 = vector.extract_strided_slice %216 {offsets = [0, 24], sizes = [8, 8], strides = [1, 1]} : vector<16x32xf32> to vector<8x8xf32>
    %cst_124 = arith.constant dense<0.000000e+00> : vector<8x8xf32>
    %278 = tpu.matmul %275, %276, %cst_124 {dimension_numbers = #tpu.dot_dimension_numbers<[1], [1], [0], [0], [0, 0, 1, 0], [], []>} : vector<8x8xf32>, vector<8x8xf32>, vector<8x8xf32> -> vector<8x8xf32>
    %cst_125 = arith.constant -1.000000e+09 : f32
    %279 = vector.broadcast %cst_125 : f32 to vector<8x8xf32>
    %280 = arith.select %220, %279, %278 : vector<8x8xi1>, vector<8x8xf32>
    %cst_126 = arith.constant dense<0xFF800000> : vector<8xf32>
    %281 = vector.multi_reduction <maximumf>, %280, %cst_126 [1] : vector<8x8xf32> to vector<8xf32>
    %282 = vector.shape_cast %281 : vector<8xf32> to vector<8x1xf32>
    %283 = vector.broadcast %282 : vector<8x1xf32> to vector<8x8xf32>
    %284 = arith.subf %280, %283 : vector<8x8xf32>
    %285 = math.exp %284 : vector<8x8xf32>
    %cst_127 = arith.constant dense<0.000000e+00> : vector<8xf32>
    %286 = vector.multi_reduction <add>, %285, %cst_127 [1] : vector<8x8xf32> to vector<8xf32>
    %287 = vector.shape_cast %286 : vector<8xf32> to vector<8x1xf32>
    %288 = tpu.reciprocal %287 {approx = true} : vector<8x1xf32> -> vector<8x1xf32>
    %289 = vector.broadcast %288 : vector<8x1xf32> to vector<8x8xf32>
    %290 = arith.mulf %285, %289 : vector<8x8xf32>
    %cst_128 = arith.constant dense<0.000000e+00> : vector<8x8xf32>
    %291 = tpu.matmul %290, %277, %cst_128 {dimension_numbers = #tpu.dot_dimension_numbers<[1], [0], [0], [1], [0, 0, 1, 1], [], []>} : vector<8x8xf32>, vector<8x8xf32>, vector<8x8xf32> -> vector<8x8xf32>
    %c24_129 = arith.constant 24 : index
    %c0_130 = arith.constant 0 : index
    %292 = vector.load %arg27[%c24_129, %c0_130] : memref<64x8xf32, #tpu.memory_space<vmem>>, vector<8x8xf32>
    tpu.vector_store %arg27[%c24_129, %c0_130], %291 {strides = array<i32>} : memref<64x8xf32, #tpu.memory_space<vmem>>, vector<8x8xf32>,
    %293 = tpu.concatenate %236, %254, %272, %290 in 1 : vector<8x8xf32>, vector<8x8xf32>, vector<8x8xf32>, vector<8x8xf32> -> vector<8x32xf32>
    %c1_131 = arith.constant 1 : index
    %c0_132 = arith.constant 0 : index
    %c0_133 = arith.constant 0 : index
    %294 = vector.load %arg3[%c1_131, %c0_132, %c0_133] : memref<2x8x8xi32, #tpu.memory_space<vmem>>, vector<1x8x8xi32>
    %295 = vector.shape_cast %294 : vector<1x8x8xi32> to vector<8x8xi32>
    %c0_i32_134 = arith.constant 0 : i32
    %296 = vector.broadcast %c0_i32_134 : i32 to vector<8x8xi32>
    %297 = arith.cmpi ne, %295, %296 : vector<8x8xi32>
    %298 = vector.extract_strided_slice %209 {offsets = [8, 0], sizes = [8, 8], strides = [1, 1]} : vector<16x32xf32> to vector<8x8xf32>
    %299 = vector.extract_strided_slice %215 {offsets = [8, 0], sizes = [8, 8], strides = [1, 1]} : vector<16x32xf32> to vector<8x8xf32>
    %300 = vector.extract_strided_slice %216 {offsets = [8, 0], sizes = [8, 8], strides = [1, 1]} : vector<16x32xf32> to vector<8x8xf32>
    %cst_135 = arith.constant dense<0.000000e+00> : vector<8x8xf32>
    %301 = tpu.matmul %298, %299, %cst_135 {dimension_numbers = #tpu.dot_dimension_numbers<[1], [1], [0], [0], [0, 0, 1, 0], [], []>} : vector<8x8xf32>, vector<8x8xf32>, vector<8x8xf32> -> vector<8x8xf32>
    %cst_136 = arith.constant -1.000000e+09 : f32
    %302 = vector.broadcast %cst_136 : f32 to vector<8x8xf32>
    %303 = arith.select %297, %302, %301 : vector<8x8xi1>, vector<8x8xf32>
    %cst_137 = arith.constant dense<0xFF800000> : vector<8xf32>
    %304 = vector.multi_reduction <maximumf>, %303, %cst_137 [1] : vector<8x8xf32> to vector<8xf32>
    %305 = vector.shape_cast %304 : vector<8xf32> to vector<8x1xf32>
    %306 = vector.broadcast %305 : vector<8x1xf32> to vector<8x8xf32>
    %307 = arith.subf %303, %306 : vector<8x8xf32>
    %308 = math.exp %307 : vector<8x8xf32>
    %cst_138 = arith.constant dense<0.000000e+00> : vector<8xf32>
    %309 = vector.multi_reduction <add>, %308, %cst_138 [1] : vector<8x8xf32> to vector<8xf32>
    %310 = vector.shape_cast %309 : vector<8xf32> to vector<8x1xf32>
    %311 = tpu.reciprocal %310 {approx = true} : vector<8x1xf32> -> vector<8x1xf32>
    %312 = vector.broadcast %311 : vector<8x1xf32> to vector<8x8xf32>
    %313 = arith.mulf %308, %312 : vector<8x8xf32>
    %cst_139 = arith.constant dense<0.000000e+00> : vector<8x8xf32>
    %314 = tpu.matmul %313, %300, %cst_139 {dimension_numbers = #tpu.dot_dimension_numbers<[1], [0], [0], [1], [0, 0, 1, 1], [], []>} : vector<8x8xf32>, vector<8x8xf32>, vector<8x8xf32> -> vector<8x8xf32>
    %c32_140 = arith.constant 32 : index
    %c0_141 = arith.constant 0 : index
    %315 = vector.load %arg27[%c32_140, %c0_141] : memref<64x8xf32, #tpu.memory_space<vmem>>, vector<8x8xf32>
    tpu.vector_store %arg27[%c32_140, %c0_141], %314 {strides = array<i32>} : memref<64x8xf32, #tpu.memory_space<vmem>>, vector<8x8xf32>,
    %316 = vector.extract_strided_slice %209 {offsets = [8, 8], sizes = [8, 8], strides = [1, 1]} : vector<16x32xf32> to vector<8x8xf32>
    %317 = vector.extract_strided_slice %215 {offsets = [8, 8], sizes = [8, 8], strides = [1, 1]} : vector<16x32xf32> to vector<8x8xf32>
    %318 = vector.extract_strided_slice %216 {offsets = [8, 8], sizes = [8, 8], strides = [1, 1]} : vector<16x32xf32> to vector<8x8xf32>
    %cst_142 = arith.constant dense<0.000000e+00> : vector<8x8xf32>
    %319 = tpu.matmul %316, %317, %cst_142 {dimension_numbers = #tpu.dot_dimension_numbers<[1], [1], [0], [0], [0, 0, 1, 0], [], []>} : vector<8x8xf32>, vector<8x8xf32>, vector<8x8xf32> -> vector<8x8xf32>
    %cst_143 = arith.constant -1.000000e+09 : f32
    %320 = vector.broadcast %cst_143 : f32 to vector<8x8xf32>
    %321 = arith.select %297, %320, %319 : vector<8x8xi1>, vector<8x8xf32>
    %cst_144 = arith.constant dense<0xFF800000> : vector<8xf32>
    %322 = vector.multi_reduction <maximumf>, %321, %cst_144 [1] : vector<8x8xf32> to vector<8xf32>
    %323 = vector.shape_cast %322 : vector<8xf32> to vector<8x1xf32>
    %324 = vector.broadcast %323 : vector<8x1xf32> to vector<8x8xf32>
    %325 = arith.subf %321, %324 : vector<8x8xf32>
    %326 = math.exp %325 : vector<8x8xf32>
    %cst_145 = arith.constant dense<0.000000e+00> : vector<8xf32>
    %327 = vector.multi_reduction <add>, %326, %cst_145 [1] : vector<8x8xf32> to vector<8xf32>
    %328 = vector.shape_cast %327 : vector<8xf32> to vector<8x1xf32>
    %329 = tpu.reciprocal %328 {approx = true} : vector<8x1xf32> -> vector<8x1xf32>
    %330 = vector.broadcast %329 : vector<8x1xf32> to vector<8x8xf32>
    %331 = arith.mulf %326, %330 : vector<8x8xf32>
    %cst_146 = arith.constant dense<0.000000e+00> : vector<8x8xf32>
    %332 = tpu.matmul %331, %318, %cst_146 {dimension_numbers = #tpu.dot_dimension_numbers<[1], [0], [0], [1], [0, 0, 1, 1], [], []>} : vector<8x8xf32>, vector<8x8xf32>, vector<8x8xf32> -> vector<8x8xf32>
    %c40_147 = arith.constant 40 : index
    %c0_148 = arith.constant 0 : index
    %333 = vector.load %arg27[%c40_147, %c0_148] : memref<64x8xf32, #tpu.memory_space<vmem>>, vector<8x8xf32>
    tpu.vector_store %arg27[%c40_147, %c0_148], %332 {strides = array<i32>} : memref<64x8xf32, #tpu.memory_space<vmem>>, vector<8x8xf32>,
    %334 = vector.extract_strided_slice %209 {offsets = [8, 16], sizes = [8, 8], strides = [1, 1]} : vector<16x32xf32> to vector<8x8xf32>
    %335 = vector.extract_strided_slice %215 {offsets = [8, 16], sizes = [8, 8], strides = [1, 1]} : vector<16x32xf32> to vector<8x8xf32>
    %336 = vector.extract_strided_slice %216 {offsets = [8, 16], sizes = [8, 8], strides = [1, 1]} : vector<16x32xf32> to vector<8x8xf32>
    %cst_149 = arith.constant dense<0.000000e+00> : vector<8x8xf32>
    %337 = tpu.matmul %334, %335, %cst_149 {dimension_numbers = #tpu.dot_dimension_numbers<[1], [1], [0], [0], [0, 0, 1, 0], [], []>} : vector<8x8xf32>, vector<8x8xf32>, vector<8x8xf32> -> vector<8x8xf32>
    %cst_150 = arith.constant -1.000000e+09 : f32
    %338 = vector.broadcast %cst_150 : f32 to vector<8x8xf32>
    %339 = arith.select %297, %338, %337 : vector<8x8xi1>, vector<8x8xf32>
    %cst_151 = arith.constant dense<0xFF800000> : vector<8xf32>
    %340 = vector.multi_reduction <maximumf>, %339, %cst_151 [1] : vector<8x8xf32> to vector<8xf32>
    %341 = vector.shape_cast %340 : vector<8xf32> to vector<8x1xf32>
    %342 = vector.broadcast %341 : vector<8x1xf32> to vector<8x8xf32>
    %343 = arith.subf %339, %342 : vector<8x8xf32>
    %344 = math.exp %343 : vector<8x8xf32>
    %cst_152 = arith.constant dense<0.000000e+00> : vector<8xf32>
    %345 = vector.multi_reduction <add>, %344, %cst_152 [1] : vector<8x8xf32> to vector<8xf32>
    %346 = vector.shape_cast %345 : vector<8xf32> to vector<8x1xf32>
    %347 = tpu.reciprocal %346 {approx = true} : vector<8x1xf32> -> vector<8x1xf32>
    %348 = vector.broadcast %347 : vector<8x1xf32> to vector<8x8xf32>
    %349 = arith.mulf %344, %348 : vector<8x8xf32>
    %cst_153 = arith.constant dense<0.000000e+00> : vector<8x8xf32>
    %350 = tpu.matmul %349, %336, %cst_153 {dimension_numbers = #tpu.dot_dimension_numbers<[1], [0], [0], [1], [0, 0, 1, 1], [], []>} : vector<8x8xf32>, vector<8x8xf32>, vector<8x8xf32> -> vector<8x8xf32>
    %c48_154 = arith.constant 48 : index
    %c0_155 = arith.constant 0 : index
    %351 = vector.load %arg27[%c48_154, %c0_155] : memref<64x8xf32, #tpu.memory_space<vmem>>, vector<8x8xf32>
    tpu.vector_store %arg27[%c48_154, %c0_155], %350 {strides = array<i32>} : memref<64x8xf32, #tpu.memory_space<vmem>>, vector<8x8xf32>,
    %352 = vector.extract_strided_slice %209 {offsets = [8, 24], sizes = [8, 8], strides = [1, 1]} : vector<16x32xf32> to vector<8x8xf32>
    %353 = vector.extract_strided_slice %215 {offsets = [8, 24], sizes = [8, 8], strides = [1, 1]} : vector<16x32xf32> to vector<8x8xf32>
    %354 = vector.extract_strided_slice %216 {offsets = [8, 24], sizes = [8, 8], strides = [1, 1]} : vector<16x32xf32> to vector<8x8xf32>
    %cst_156 = arith.constant dense<0.000000e+00> : vector<8x8xf32>
    %355 = tpu.matmul %352, %353, %cst_156 {dimension_numbers = #tpu.dot_dimension_numbers<[1], [1], [0], [0], [0, 0, 1, 0], [], []>} : vector<8x8xf32>, vector<8x8xf32>, vector<8x8xf32> -> vector<8x8xf32>
    %cst_157 = arith.constant -1.000000e+09 : f32
    %356 = vector.broadcast %cst_157 : f32 to vector<8x8xf32>
    %357 = arith.select %297, %356, %355 : vector<8x8xi1>, vector<8x8xf32>
    %cst_158 = arith.constant dense<0xFF800000> : vector<8xf32>
    %358 = vector.multi_reduction <maximumf>, %357, %cst_158 [1] : vector<8x8xf32> to vector<8xf32>
    %359 = vector.shape_cast %358 : vector<8xf32> to vector<8x1xf32>
    %360 = vector.broadcast %359 : vector<8x1xf32> to vector<8x8xf32>
    %361 = arith.subf %357, %360 : vector<8x8xf32>
    %362 = math.exp %361 : vector<8x8xf32>
    %cst_159 = arith.constant dense<0.000000e+00> : vector<8xf32>
    %363 = vector.multi_reduction <add>, %362, %cst_159 [1] : vector<8x8xf32> to vector<8xf32>
    %364 = vector.shape_cast %363 : vector<8xf32> to vector<8x1xf32>
    %365 = tpu.reciprocal %364 {approx = true} : vector<8x1xf32> -> vector<8x1xf32>
    %366 = vector.broadcast %365 : vector<8x1xf32> to vector<8x8xf32>
    %367 = arith.mulf %362, %366 : vector<8x8xf32>
    %cst_160 = arith.constant dense<0.000000e+00> : vector<8x8xf32>
    %368 = tpu.matmul %367, %354, %cst_160 {dimension_numbers = #tpu.dot_dimension_numbers<[1], [0], [0], [1], [0, 0, 1, 1], [], []>} : vector<8x8xf32>, vector<8x8xf32>, vector<8x8xf32> -> vector<8x8xf32>
    %c56_161 = arith.constant 56 : index
    %c0_162 = arith.constant 0 : index
    %369 = vector.load %arg27[%c56_161, %c0_162] : memref<64x8xf32, #tpu.memory_space<vmem>>, vector<8x8xf32>
    tpu.vector_store %arg27[%c56_161, %c0_162], %368 {strides = array<i32>} : memref<64x8xf32, #tpu.memory_space<vmem>>, vector<8x8xf32>,
    %370 = tpu.concatenate %313, %331, %349, %367 in 1 : vector<8x8xf32>, vector<8x8xf32>, vector<8x8xf32>, vector<8x8xf32> -> vector<8x32xf32>
    %371 = tpu.concatenate %293, %370 in 0 : vector<8x32xf32>, vector<8x32xf32> -> vector<16x32xf32>
    %c0_163 = arith.constant 0 : index
    %c0_164 = arith.constant 0 : index
    %372 = tpu.strided_load %arg27[%c0_163, %c0_164] {strides = array<i32: 4, 1>} : memref<64x8xf32, #tpu.memory_space<vmem>>, vector<8x8xf32>
    %c1_165 = arith.constant 1 : index
    %c0_166 = arith.constant 0 : index
    %373 = tpu.strided_load %arg27[%c1_165, %c0_166] {strides = array<i32: 4, 1>} : memref<64x8xf32, #tpu.memory_space<vmem>>, vector<8x8xf32>
    %c2_167 = arith.constant 2 : index
    %c0_168 = arith.constant 0 : index
    %374 = tpu.strided_load %arg27[%c2_167, %c0_168] {strides = array<i32: 4, 1>} : memref<64x8xf32, #tpu.memory_space<vmem>>, vector<8x8xf32>
    %c3_169 = arith.constant 3 : index
    %c0_170 = arith.constant 0 : index
    %375 = tpu.strided_load %arg27[%c3_169, %c0_170] {strides = array<i32: 4, 1>} : memref<64x8xf32, #tpu.memory_space<vmem>>, vector<8x8xf32>
    %376 = tpu.concatenate %372, %373, %374, %375 in 1 : vector<8x8xf32>, vector<8x8xf32>, vector<8x8xf32>, vector<8x8xf32> -> vector<8x32xf32>
    %c32_171 = arith.constant 32 : index
    %c0_172 = arith.constant 0 : index
    %377 = tpu.strided_load %arg27[%c32_171, %c0_172] {strides = array<i32: 4, 1>} : memref<64x8xf32, #tpu.memory_space<vmem>>, vector<8x8xf32>
    %c33_173 = arith.constant 33 : index
    %c0_174 = arith.constant 0 : index
    %378 = tpu.strided_load %arg27[%c33_173, %c0_174] {strides = array<i32: 4, 1>} : memref<64x8xf32, #tpu.memory_space<vmem>>, vector<8x8xf32>
    %c34_175 = arith.constant 34 : index
    %c0_176 = arith.constant 0 : index
    %379 = tpu.strided_load %arg27[%c34_175, %c0_176] {strides = array<i32: 4, 1>} : memref<64x8xf32, #tpu.memory_space<vmem>>, vector<8x8xf32>
    %c35_177 = arith.constant 35 : index
    %c0_178 = arith.constant 0 : index
    %380 = tpu.strided_load %arg27[%c35_177, %c0_178] {strides = array<i32: 4, 1>} : memref<64x8xf32, #tpu.memory_space<vmem>>, vector<8x8xf32>
    %381 = tpu.concatenate %377, %378, %379, %380 in 1 : vector<8x8xf32>, vector<8x8xf32>, vector<8x8xf32>, vector<8x8xf32> -> vector<8x32xf32>
    %382 = tpu.concatenate %376, %381 in 0 : vector<8x32xf32>, vector<8x32xf32> -> vector<16x32xf32>
    %c0_179 = arith.constant 0 : index
    %c0_180 = arith.constant 0 : index
    %383 = vector.load %arg14[%c0_179, %c0_180] : memref<32x32xf32, #tpu.memory_space<vmem>>, vector<32x32xf32>
    %cst_181 = arith.constant dense<0.000000e+00> : vector<16x32xf32>
    %384 = tpu.matmul %382, %383, %cst_181 {dimension_numbers = #tpu.dot_dimension_numbers<[1], [0], [0], [1], [0, 0, 1, 1], [], []>} : vector<16x32xf32>, vector<32x32xf32>, vector<16x32xf32> -> vector<16x32xf32>
    %c0_182 = arith.constant 0 : index
    %c0_183 = arith.constant 0 : index
    %385 = vector.load %arg15[%c0_182, %c0_183] : memref<1x32xf32, #tpu.memory_space<vmem>>, vector<1x32xf32>
    %386 = vector.broadcast %385 : vector<1x32xf32> to vector<16x32xf32>
    %387 = arith.addf %384, %386 : vector<16x32xf32>
    %c0_184 = arith.constant 0 : index
    %c0_185 = arith.constant 0 : index
    %388 = vector.load %arg25[%c0_184, %c0_185] : memref<16x32xf32, #tpu.memory_space<vmem>>, vector<16x32xf32>
    tpu.vector_store %arg25[%c0_184, %c0_185], %371 {strides = array<i32>} : memref<16x32xf32, #tpu.memory_space<vmem>>, vector<16x32xf32>,
    %389 = arith.addf %387, %204 : vector<16x32xf32>
    %cst_186 = arith.constant dense<0.000000e+00> : vector<16xf32>
    %390 = vector.multi_reduction <add>, %389, %cst_186 [1] : vector<16x32xf32> to vector<16xf32>
    %391 = vector.shape_cast %390 : vector<16xf32> to vector<16x1xf32>
    %cst_187 = arith.constant 3.200000e+01 : f32
    %392 = vector.broadcast %cst_187 : f32 to vector<16x1xf32>
    %393 = arith.divf %391, %392 : vector<16x1xf32>
    %394 = vector.broadcast %393 : vector<16x1xf32> to vector<16x32xf32>
    %395 = arith.subf %389, %394 : vector<16x32xf32>
    %396 = arith.mulf %395, %395 : vector<16x32xf32>
    %cst_188 = arith.constant dense<0.000000e+00> : vector<16xf32>
    %397 = vector.multi_reduction <add>, %396, %cst_188 [1] : vector<16x32xf32> to vector<16xf32>
    %398 = vector.shape_cast %397 : vector<16xf32> to vector<16x1xf32>
    %cst_189 = arith.constant 3.200000e+01 : f32
    %399 = vector.broadcast %cst_189 : f32 to vector<16x1xf32>
    %400 = arith.divf %398, %399 : vector<16x1xf32>
    %cst_190 = arith.constant 9.99999974E-6 : f32
    %401 = vector.broadcast %cst_190 : f32 to vector<16x1xf32>
    %402 = arith.addf %400, %401 : vector<16x1xf32>
    %403 = math.rsqrt %402 : vector<16x1xf32>
    %404 = vector.broadcast %403 : vector<16x1xf32> to vector<16x32xf32>
    %405 = arith.mulf %395, %404 : vector<16x32xf32>
    %c0_191 = arith.constant 0 : index
    %c0_192 = arith.constant 0 : index
    %406 = vector.load %arg16[%c0_191, %c0_192] : memref<1x32xf32, #tpu.memory_space<vmem>>, vector<1x32xf32>
    %407 = vector.broadcast %406 : vector<1x32xf32> to vector<16x32xf32>
    %408 = arith.mulf %405, %407 : vector<16x32xf32>
    %c0_193 = arith.constant 0 : index
    %c0_194 = arith.constant 0 : index
    %409 = vector.load %arg17[%c0_193, %c0_194] : memref<1x32xf32, #tpu.memory_space<vmem>>, vector<1x32xf32>
    %410 = vector.broadcast %409 : vector<1x32xf32> to vector<16x32xf32>
    %411 = arith.addf %408, %410 : vector<16x32xf32>
    %c0_195 = arith.constant 0 : index
    %c0_196 = arith.constant 0 : index
    %412 = vector.load %arg18[%c0_195, %c0_196] : memref<32x1024xf32, #tpu.memory_space<vmem>>, vector<32x1024xf32>
    %cst_197 = arith.constant dense<0.000000e+00> : vector<16x1024xf32>
    %413 = tpu.matmul %411, %412, %cst_197 {dimension_numbers = #tpu.dot_dimension_numbers<[1], [0], [0], [1], [0, 0, 1, 1], [], []>} : vector<16x32xf32>, vector<32x1024xf32>, vector<16x1024xf32> -> vector<16x1024xf32>
    %c0_198 = arith.constant 0 : index
    %c0_199 = arith.constant 0 : index
    %414 = vector.load %arg19[%c0_198, %c0_199] : memref<1x1024xf32, #tpu.memory_space<vmem>>, vector<1x1024xf32>
    %415 = vector.broadcast %414 : vector<1x1024xf32> to vector<16x1024xf32>
    %416 = arith.addf %413, %415 : vector<16x1024xf32>
    %c0_200 = arith.constant 0 : index
    %c0_201 = arith.constant 0 : index
    %417 = vector.load %arg20[%c0_200, %c0_201] : memref<1024x32xf32, #tpu.memory_space<vmem>>, vector<1024x32xf32>
    %cst_202 = arith.constant dense<0.000000e+00> : vector<16x32xf32>
    %418 = tpu.matmul %416, %417, %cst_202 {dimension_numbers = #tpu.dot_dimension_numbers<[1], [0], [0], [1], [0, 0, 1, 1], [], []>} : vector<16x1024xf32>, vector<1024x32xf32>, vector<16x32xf32> -> vector<16x32xf32>
    %c0_203 = arith.constant 0 : index
    %c0_204 = arith.constant 0 : index
    %419 = vector.load %arg21[%c0_203, %c0_204] : memref<1x32xf32, #tpu.memory_space<vmem>>, vector<1x32xf32>
    %420 = vector.broadcast %419 : vector<1x32xf32> to vector<16x32xf32>
    %421 = arith.addf %418, %420 : vector<16x32xf32>
    %422 = arith.addf %421, %411 : vector<16x32xf32>
    %cst_205 = arith.constant dense<0.000000e+00> : vector<16xf32>
    %423 = vector.multi_reduction <add>, %422, %cst_205 [1] : vector<16x32xf32> to vector<16xf32>
    %424 = vector.shape_cast %423 : vector<16xf32> to vector<16x1xf32>
    %cst_206 = arith.constant 3.200000e+01 : f32
    %425 = vector.broadcast %cst_206 : f32 to vector<16x1xf32>
    %426 = arith.divf %424, %425 : vector<16x1xf32>
    %427 = vector.broadcast %426 : vector<16x1xf32> to vector<16x32xf32>
    %428 = arith.subf %422, %427 : vector<16x32xf32>
    %429 = arith.mulf %428, %428 : vector<16x32xf32>
    %cst_207 = arith.constant dense<0.000000e+00> : vector<16xf32>
    %430 = vector.multi_reduction <add>, %429, %cst_207 [1] : vector<16x32xf32> to vector<16xf32>
    %431 = vector.shape_cast %430 : vector<16xf32> to vector<16x1xf32>
    %cst_208 = arith.constant 3.200000e+01 : f32
    %432 = vector.broadcast %cst_208 : f32 to vector<16x1xf32>
    %433 = arith.divf %431, %432 : vector<16x1xf32>
    %cst_209 = arith.constant 9.99999974E-6 : f32
    %434 = vector.broadcast %cst_209 : f32 to vector<16x1xf32>
    %435 = arith.addf %433, %434 : vector<16x1xf32>
    %436 = math.rsqrt %435 : vector<16x1xf32>
    %437 = vector.broadcast %436 : vector<16x1xf32> to vector<16x32xf32>
    %438 = arith.mulf %428, %437 : vector<16x32xf32>
    %c0_210 = arith.constant 0 : index
    %c0_211 = arith.constant 0 : index
    %439 = vector.load %arg22[%c0_210, %c0_211] : memref<1x32xf32, #tpu.memory_space<vmem>>, vector<1x32xf32>
    %440 = vector.broadcast %439 : vector<1x32xf32> to vector<16x32xf32>
    %441 = arith.mulf %438, %440 : vector<16x32xf32>
    %c0_212 = arith.constant 0 : index
    %c0_213 = arith.constant 0 : index
    %442 = vector.load %arg23[%c0_212, %c0_213] : memref<1x32xf32, #tpu.memory_space<vmem>>, vector<1x32xf32>
    %443 = vector.broadcast %442 : vector<1x32xf32> to vector<16x32xf32>
    %444 = arith.addf %441, %443 : vector<16x32xf32>
    %c0_214 = arith.constant 0 : index
    %c0_215 = arith.constant 0 : index
    %445 = vector.load %arg26[%c0_214, %c0_215] : memref<16x32xf32, #tpu.memory_space<vmem>>, vector<16x32xf32>
    tpu.vector_store %arg26[%c0_214, %c0_215], %444 {strides = array<i32>} : memref<16x32xf32, #tpu.memory_space<vmem>>, vector<16x32xf32>,
    return
  }
}

</mosaic_0001>

<llo_original>
// kernel: decoder_layer.1
$region0: #{decoder_layer.1}
  #allocation0 [shape = 'u32[]', space=smem, size = 0x4, offset = 0x4, fixed_abs, tag = 'smem constant byte address 0x4 - core index']
  #allocation1 [shape = 'u32[144,128]{1,0:T(1,128)}', space=vmem, size = 0x12000, scoped, tag = 'internal scratch']
  #allocation2 [shape = 'f32[64,8]{1,0:T(8,128)}', space=vmem, size = 0x8000, scoped, tag = 'scratch operand']
  %s0 = inlined_call_operand.vmem [shape: f32[16,32], index: 0, kind: input, shape index: {}]
  %s1 = inlined_call_operand.vmem [shape: f32[16,32], index: 1, kind: input, shape index: {}]
  %s2 = inlined_call_operand.vmem [shape: s32[2,8,8], index: 2, kind: input, shape index: {}]
  %s3 = inlined_call_operand.vmem [shape: s32[2,8,8], index: 3, kind: input, shape index: {}]
  %s4 = inlined_call_operand.vmem [shape: f32[32,96], index: 4, kind: input, shape index: {}]
  %s5 = inlined_call_operand.vmem [shape: f32[1,96], index: 5, kind: input, shape index: {}]
  %s6 = inlined_call_operand.vmem [shape: f32[32,32], index: 6, kind: input, shape index: {}]
  %s7 = inlined_call_operand.vmem [shape: f32[1,32], index: 7, kind: input, shape index: {}]
  %s8 = inlined_call_operand.vmem [shape: f32[1,32], index: 8, kind: input, shape index: {}]
  %s9 = inlined_call_operand.vmem [shape: f32[1,32], index: 9, kind: input, shape index: {}]
  %s10 = inlined_call_operand.vmem [shape: f32[32,32], index: 10, kind: input, shape index: {}]
  %s11 = inlined_call_operand.vmem [shape: f32[1,32], index: 11, kind: input, shape index: {}]
  %s12 = inlined_call_operand.vmem [shape: f32[32,64], index: 12, kind: input, shape index: {}]
  %s13 = inlined_call_operand.vmem [shape: f32[1,64], index: 13, kind: input, shape index: {}]
  %s14 = inlined_call_operand.vmem [shape: f32[32,32], index: 14, kind: input, shape index: {}]
  %s15 = inlined_call_operand.vmem [shape: f32[1,32], index: 15, kind: input, shape index: {}]
  %s16 = inlined_call_operand.vmem [shape: f32[1,32], index: 16, kind: input, shape index: {}]
  %s17 = inlined_call_operand.vmem [shape: f32[1,32], index: 17, kind: input, shape index: {}]
  %s18 = inlined_call_operand.vmem [shape: f32[32,1024], index: 18, kind: input, shape index: {}]
  %s19 = inlined_call_operand.vmem [shape: f32[1,1024], index: 19, kind: input, shape index: {}]
  %s20 = inlined_call_operand.vmem [shape: f32[1024,32], index: 20, kind: input, shape index: {}]
  %s21 = inlined_call_operand.vmem [shape: f32[1,32], index: 21, kind: input, shape index: {}]
  %s22 = inlined_call_operand.vmem [shape: f32[1,32], index: 22, kind: input, shape index: {}]
  %s23 = inlined_call_operand.vmem [shape: f32[1,32], index: 23, kind: input, shape index: {}]
  %s24 = inlined_call_operand.vmem [shape: f32[16,32], index: 24, kind: output, shape index: {0}]
  %s25 = inlined_call_operand.vmem [shape: f32[16,32], index: 25, kind: output, shape index: {1}]
  %s26 = inlined_call_operand.hbm [shape: f32[16,32], index: 26, kind: output, shape index: {2}]
  %27 = xla_tuple %s24, %s25, %s26
  %s28 = sld [smem:[#allocation0]]
  $region122: #{decoder_layer.1} parent=0
    _
  %s30 = ssub.s32 1, %s28
  %s31 = scalar_select 0, %s30, %s28
  $region1: #{decoder_layer.1} parent=0
    #allocation3 [shape = 'u8[8192]{0}', space=vmem, size = 0x2000, scoped, tag = 'output window, operand 2, single buffered']
    #allocation4 [shape = 's32[1]{0}', space=sflag, size = 0x4, scoped, tag = 'scoped memory for decoder_layer.1']
    %32 = vsyncpa [#allocation4], 0
    // Predicated region
    $region2: #{decoder_layer.1} parent=1 // pred_check
      _
    $region3: #{decoder_layer.1} parent=1 // pred_check_branch
      %34 = sbr.rel (0) target = $region5
    $region4: #{decoder_layer.1} parent=1 // pred_region
      _
    $region5: #{decoder_layer.1} parent=1 // pred_fallthru
      _
    // Predicated region
    $region6: #{decoder_layer.1} parent=1 // pred_check
      _
    $region7: #{decoder_layer.1} parent=1 // pred_check_branch
      %36 = sbr.rel (0) target = $region9
    $region8: #{decoder_layer.1} parent=1 // pred_region
      _
    $region9: #{decoder_layer.1} parent=1 // pred_fallthru
      _
    // Predicated region
    $region10: #{decoder_layer.1} parent=1 // pred_check
      _
    $region11: #{decoder_layer.1} parent=1 // pred_check_branch
      %38 = sbr.rel (0) target = $region13
    $region12: #{decoder_layer.1} parent=1 // pred_region
      _
    $region13: #{decoder_layer.1} parent=1 // pred_fallthru
      _
    // Predicated region
    $region14: #{decoder_layer.1} parent=1 // pred_check
      _
    $region15: #{decoder_layer.1} parent=1 // pred_check_branch
      %40 = sbr.rel (0) target = $region17
    $region16: #{decoder_layer.1} parent=1 // pred_region
      _
    $region17: #{decoder_layer.1} parent=1 // pred_fallthru
      _
    // Predicated region
    $region18: #{decoder_layer.1} parent=1 // pred_check
      _
    $region19: #{decoder_layer.1} parent=1 // pred_check_branch
      %42 = sbr.rel (0) target = $region21
    $region20: #{decoder_layer.1} parent=1 // pred_region
      _
    $region21: #{decoder_layer.1} parent=1 // pred_fallthru
      _
    // Predicated region
    $region22: #{decoder_layer.1} parent=1 // pred_check
      _
    $region23: #{decoder_layer.1} parent=1 // pred_check_branch
      %44 = sbr.rel (0) target = $region25
    $region24: #{decoder_layer.1} parent=1 // pred_region
      _
    $region25: #{decoder_layer.1} parent=1 // pred_fallthru
      _
    // Predicated region
    $region26: #{decoder_layer.1} parent=1 // pred_check
      _
    $region27: #{decoder_layer.1} parent=1 // pred_check_branch
      %46 = sbr.rel (0) target = $region29
    $region28: #{decoder_layer.1} parent=1 // pred_region
      _
    $region29: #{decoder_layer.1} parent=1 // pred_fallthru
      _
    // Predicated region
    $region30: #{decoder_layer.1} parent=1 // pred_check
      _
    $region31: #{decoder_layer.1} parent=1 // pred_check_branch
      %48 = sbr.rel (0) target = $region33
    $region32: #{decoder_layer.1} parent=1 // pred_region
      _
    $region33: #{decoder_layer.1} parent=1 // pred_fallthru
      _
    // Predicated region
    $region34: #{decoder_layer.1} parent=1 // pred_check
      _
    $region35: #{decoder_layer.1} parent=1 // pred_check_branch
      %50 = sbr.rel (0) target = $region37
    $region36: #{decoder_layer.1} parent=1 // pred_region
      _
    $region37: #{decoder_layer.1} parent=1 // pred_fallthru
      _
    // Predicated region
    $region38: #{decoder_layer.1} parent=1 // pred_check
      _
    $region39: #{decoder_layer.1} parent=1 // pred_check_branch
      %52 = sbr.rel (0) target = $region41
    $region40: #{decoder_layer.1} parent=1 // pred_region
      _
    $region41: #{decoder_layer.1} parent=1 // pred_fallthru
      _
    // Predicated region
    $region42: #{decoder_layer.1} parent=1 // pred_check
      _
    $region43: #{decoder_layer.1} parent=1 // pred_check_branch
      %54 = sbr.rel (0) target = $region45
    $region44: #{decoder_layer.1} parent=1 // pred_region
      _
    $region45: #{decoder_layer.1} parent=1 // pred_fallthru
      _
    // Predicated region
    $region46: #{decoder_layer.1} parent=1 // pred_check
      _
    $region47: #{decoder_layer.1} parent=1 // pred_check_branch
      %56 = sbr.rel (0) target = $region49
    $region48: #{decoder_layer.1} parent=1 // pred_region
      _
    $region49: #{decoder_layer.1} parent=1 // pred_fallthru
      _
    // Predicated region
    $region50: #{decoder_layer.1} parent=1 // pred_check
      _
    $region51: #{decoder_layer.1} parent=1 // pred_check_branch
      %58 = sbr.rel (0) target = $region53
    $region52: #{decoder_layer.1} parent=1 // pred_region
      _
    $region53: #{decoder_layer.1} parent=1 // pred_fallthru
      _
    // Predicated region
    $region54: #{decoder_layer.1} parent=1 // pred_check
      _
    $region55: #{decoder_layer.1} parent=1 // pred_check_branch
      %60 = sbr.rel (0) target = $region57
    $region56: #{decoder_layer.1} parent=1 // pred_region
      _
    $region57: #{decoder_layer.1} parent=1 // pred_fallthru
      _
    // Predicated region
    $region58: #{decoder_layer.1} parent=1 // pred_check
      _
    $region59: #{decoder_layer.1} parent=1 // pred_check_branch
      %62 = sbr.rel (0) target = $region61
    $region60: #{decoder_layer.1} parent=1 // pred_region
      _
    $region61: #{decoder_layer.1} parent=1 // pred_fallthru
      _
    // Predicated region
    $region62: #{decoder_layer.1} parent=1 // pred_check
      _
    $region63: #{decoder_layer.1} parent=1 // pred_check_branch
      %64 = sbr.rel (0) target = $region65
    $region64: #{decoder_layer.1} parent=1 // pred_region
      _
    $region65: #{decoder_layer.1} parent=1 // pred_fallthru
      _
    // Predicated region
    $region66: #{decoder_layer.1} parent=1 // pred_check
      _
    $region67: #{decoder_layer.1} parent=1 // pred_check_branch
      %66 = sbr.rel (0) target = $region69
    $region68: #{decoder_layer.1} parent=1 // pred_region
      _
    $region69: #{decoder_layer.1} parent=1 // pred_fallthru
      _
    // Predicated region
    $region70: #{decoder_layer.1} parent=1 // pred_check
      _
    $region71: #{decoder_layer.1} parent=1 // pred_check_branch
      %68 = sbr.rel (0) target = $region73
    $region72: #{decoder_layer.1} parent=1 // pred_region
      _
    $region73: #{decoder_layer.1} parent=1 // pred_fallthru
      _
    // Predicated region
    $region74: #{decoder_layer.1} parent=1 // pred_check
      _
    $region75: #{decoder_layer.1} parent=1 // pred_check_branch
      %70 = sbr.rel (0) target = $region77
    $region76: #{decoder_layer.1} parent=1 // pred_region
      _
    $region77: #{decoder_layer.1} parent=1 // pred_fallthru
      _
    // Predicated region
    $region78: #{decoder_layer.1} parent=1 // pred_check
      _
    $region79: #{decoder_layer.1} parent=1 // pred_check_branch
      %72 = sbr.rel (0) target = $region81
    $region80: #{decoder_layer.1} parent=1 // pred_region
      _
    $region81: #{decoder_layer.1} parent=1 // pred_fallthru
      _
    // Predicated region
    $region82: #{decoder_layer.1} parent=1 // pred_check
      _
    $region83: #{decoder_layer.1} parent=1 // pred_check_branch
      %74 = sbr.rel (0) target = $region85
    $region84: #{decoder_layer.1} parent=1 // pred_region
      _
    $region85: #{decoder_layer.1} parent=1 // pred_fallthru
      _
    // Predicated region
    $region86: #{decoder_layer.1} parent=1 // pred_check
      _
    $region87: #{decoder_layer.1} parent=1 // pred_check_branch
      %76 = sbr.rel (0) target = $region89
    $region88: #{decoder_layer.1} parent=1 // pred_region
      _
    $region89: #{decoder_layer.1} parent=1 // pred_fallthru
      _
    // Predicated region
    $region90: #{decoder_layer.1} parent=1 // pred_check
      _
    $region91: #{decoder_layer.1} parent=1 // pred_check_branch
      %78 = sbr.rel (0) target = $region93
    $region92: #{decoder_layer.1} parent=1 // pred_region
      _
    $region93: #{decoder_layer.1} parent=1 // pred_fallthru
      _
    // Predicated region
    $region94: #{decoder_layer.1} parent=1 // pred_check
      _
    $region95: #{decoder_layer.1} parent=1 // pred_check_branch
      %80 = sbr.rel (0) target = $region97
    $region96: #{decoder_layer.1} parent=1 // pred_region
      _
    $region97: #{decoder_layer.1} parent=1 // pred_fallthru
      _
    %v81 = vld [vmem:[%s0] sm:$0xff]
    %v82 = vld [vmem:[%s0 + $0x8] sm:$0xff]
    %v83 = vld [vmem:[%s1] sm:$0xff]
    %v84 = vld [vmem:[%s1 + $0x8] sm:$0xff]
    %v85 = vld [vmem:[%s4] sm:$0xff]
    %v86 = vld [vmem:[%s4 + $0x8] sm:$0xff]
    %v87 = vld [vmem:[%s4 + $0x10] sm:$0xff]
    %v88 = vld [vmem:[%s4 + $0x18] sm:$0xff]
    %v89 = vld [vmem:[%s5] sm:$0x1]
    %v91 = vlaneseq
    %v92 = vshrl.u32 %v91, 7
    %v93 = vsub.s32 0, %v92
    %v94 = vrot.slane %v89, %v93
    %vm96 = vcmask 261120
    %v98 = vsel %vm96, %v81, 0
    %v101 = vsel %vm96, %v82, 0
    %103 = vmatprep.subr.mxu0 0.0
    %104 = vmatpush1.msra.mxu0 %v85
    %105 = vmatprep.subr.mxu0 0.0
    %106 = vmatpush1.msra.mxu0 %v86
    %107 = vmatprep.subr.mxu0 0.0
    %108 = vmatpush1.msra.mxu0 %v87
    %109 = vmatprep.subr.mxu0 0.0
    %110 = vmatpush1.msra.mxu0 %v88
    %111 = vmatprep.subr.mxu0 0.0
    %112 = vmatpush1.msra.mxu0 0.0
    %113 = vmatprep.subr.mxu0 0.0
    %114 = vmatpush1.msra.mxu0 0.0
    %115 = vmatprep.subr.mxu0 0.0
    %116 = vmatpush1.msra.mxu0 0.0
    %117 = vmatprep.subr.mxu0 0.0
    %118 = vmatpush1.msra.mxu0 0.0
    %119 = vmatprep.subr.mxu0 0.0
    %120 = vmatpush1.msra.mxu0 0.0
    %121 = vmatprep.subr.mxu0 0.0
    %122 = vmatpush1.msra.mxu0 0.0
    %123 = vmatprep.subr.mxu0 0.0
    %124 = vmatpush1.msra.mxu0 0.0
    %125 = vmatprep.subr.mxu0 0.0
    %126 = vmatpush1.msra.mxu0 0.0
    %127 = vmatprep.subr.mxu0 0.0
    %128 = vmatpush1.msra.mxu0 0.0
    %129 = vmatprep.subr.mxu0 0.0
    %130 = vmatpush1.msra.mxu0 0.0
    %131 = vmatprep.subr.mxu0 0.0
    %132 = vmatpush1.msra.mxu0 0.0
    %133 = vmatprep.subr.mxu0 0.0
    %134 = vmatpush1.msra.mxu0 0.0
    %135 = vmatprep.subr.mxu0 0.0
    %136 = vmatpush1.msra.mxu0 0.0
    %137 = vmatprep.subr.mxu0 0.0
    %138 = vmatpush1.msra.mxu0 0.0
    %139 = vmatprep.subr.mxu0 0.0
    %140 = vmatpush1.msra.mxu0 0.0
    %141 = vmatprep.subr.mxu0 0.0
    %142 = vmatpush1.msra.mxu0 0.0
    %143 = vmatprep.subr.mxu0 0.0
    %144 = vmatpush1.msra.mxu0 0.0
    %145 = vmatprep.subr.mxu0 0.0
    %146 = vmatpush1.msra.mxu0 0.0
    %147 = vmatprep.subr.mxu0 0.0
    %148 = vmatpush1.msra.mxu0 0.0
    %149 = vmatprep.subr.mxu0 0.0
    %150 = vmatpush1.msra.mxu0 0.0
    %151 = vmatprep.subr.mxu0 0.0
    %152 = vmatpush1.msra.mxu0 0.0
    %153 = vmatprep.subr.mxu0 0.0
    %154 = vmatpush1.msra.mxu0 0.0
    %155 = vmatprep.subr.mxu0 0.0
    %156 = vmatpush1.msra.mxu0 0.0
    %157 = vmatprep.subr.mxu0 0.0
    %158 = vmatpush1.msra.mxu0 0.0
    %159 = vmatprep.subr.mxu0 0.0
    %160 = vmatpush1.msra.mxu0 0.0
    %161 = vmatprep.subr.mxu0 0.0
    %162 = vmatpush1.msra.mxu0 0.0
    %163 = vmatprep.subr.mxu0 0.0
    %164 = vmatpush1.msra.mxu0 0.0
    %165 = vmatprep.subr.mxu0 0.0
    %166 = vmatpush1.msra.mxu0 0.0
    %167 = vmatprep.mubr.f32.mxu0 0.0
    %168 = vmatmul.mubr.f32.gmra.mrb[0].mxu0 %v98
    %v169 = vpop.f32.mrb[0].mxu0
    %v170 = vadd.f32 %v94, %v169
    %v171 = vpop.f32.mrb[0].mxu0
    %172 = vmatprep.mubr.f32.mxu0 0.0
    %173 = vmatmul.mubr.f32.gmra.mrb[0].mxu0 %v101
    %v174 = vpop.f32.mrb[0].mxu0
    %v175 = vadd.f32 %v94, %v174
    %v176 = vpop.f32.mrb[0].mxu0
    %177 = vdwg.mxu0
    %v178 = vld [vmem:[%s2] sm:$0xff]
    %vm179 = vcmp.ne.s32.totalorder %v178, 0
    %181 = vrot.lane.b32.xlu0 %v170, 96
    %v182 = vpop.permute.xlu0 %181
    %vm183 = vcmask 64512
    %v184 = vsel %vm183, %v170, 0
    %v186 = vsel %vm183, %v182, 0
    %188 = vmatprep.subr.mxu0 0.0
    %189 = vmatpush1.xpose.msra.mxu0 %v186
    %190 = vmatprep.subr.mxu0 0.0
    %191 = vmatpush1.xpose.msra.mxu0 0.0
    %192 = vmatprep.subr.mxu0 0.0
    %193 = vmatpush1.xpose.msra.mxu0 0.0
    %194 = vmatprep.subr.mxu0 0.0
    %195 = vmatpush1.xpose.msra.mxu0 0.0
    %196 = vmatprep.subr.mxu0 0.0
    %197 = vmatpush1.xpose.msra.mxu0 0.0
    %198 = vmatprep.subr.mxu0 0.0
    %199 = vmatpush1.xpose.msra.mxu0 0.0
    %200 = vmatprep.subr.mxu0 0.0
    %201 = vmatpush1.xpose.msra.mxu0 0.0
    %202 = vmatprep.subr.mxu0 0.0
    %203 = vmatpush1.xpose.msra.mxu0 0.0
    %204 = vmatprep.subr.mxu0 0.0
    %205 = vmatpush1.xpose.msra.mxu0 0.0
    %206 = vmatprep.subr.mxu0 0.0
    %207 = vmatpush1.xpose.msra.mxu0 0.0
    %208 = vmatprep.subr.mxu0 0.0
    %209 = vmatpush1.xpose.msra.mxu0 0.0
    %210 = vmatprep.subr.mxu0 0.0
    %211 = vmatpush1.xpose.msra.mxu0 0.0
    %212 = vmatprep.subr.mxu0 0.0
    %213 = vmatpush1.xpose.msra.mxu0 0.0
    %214 = vmatprep.subr.mxu0 0.0
    %215 = vmatpush1.xpose.msra.mxu0 0.0
    %216 = vmatprep.subr.mxu0 0.0
    %217 = vmatpush1.xpose.msra.mxu0 0.0
    %218 = vmatprep.subr.mxu0 0.0
    %219 = vmatpush1.xpose.msra.mxu0 0.0
    %220 = vmatprep.subr.mxu0 0.0
    %221 = vmatpush1.xpose.msra.mxu0 0.0
    %222 = vmatprep.subr.mxu0 0.0
    %223 = vmatpush1.xpose.msra.mxu0 0.0
    %224 = vmatprep.subr.mxu0 0.0
    %225 = vmatpush1.xpose.msra.mxu0 0.0
    %226 = vmatprep.subr.mxu0 0.0
    %227 = vmatpush1.xpose.msra.mxu0 0.0
    %228 = vmatprep.subr.mxu0 0.0
    %229 = vmatpush1.xpose.msra.mxu0 0.0
    %230 = vmatprep.subr.mxu0 0.0
    %231 = vmatpush1.xpose.msra.mxu0 0.0
    %232 = vmatprep.subr.mxu0 0.0
    %233 = vmatpush1.xpose.msra.mxu0 0.0
    %234 = vmatprep.subr.mxu0 0.0
    %235 = vmatpush1.xpose.msra.mxu0 0.0
    %236 = vmatprep.subr.mxu0 0.0
    %237 = vmatpush1.xpose.msra.mxu0 0.0
    %238 = vmatprep.subr.mxu0 0.0
    %239 = vmatpush1.xpose.msra.mxu0 0.0
    %240 = vmatprep.subr.mxu0 0.0
    %241 = vmatpush1.xpose.msra.mxu0 0.0
    %242 = vmatprep.subr.mxu0 0.0
    %243 = vmatpush1.xpose.msra.mxu0 0.0
    %244 = vmatprep.subr.mxu0 0.0
    %245 = vmatpush1.xpose.msra.mxu0 0.0
    %246 = vmatprep.subr.mxu0 0.0
    %247 = vmatpush1.xpose.msra.mxu0 0.0
    %248 = vmatprep.subr.mxu0 0.0
    %249 = vmatpush1.xpose.msra.mxu0 0.0
    %250 = vmatprep.subr.mxu0 0.0
    %251 = vmatpush1.xpose.msra.mxu0 0.0
    %252 = vmatprep.mubr.f32.mxu0 0.0
    %253 = vmatmul.mubr.f32.gmra.mrb[0].mxu0 %v184
    %v254 = vpop.f32.mrb[0].mxu0
    %v255 = vadd.f32 0.0, %v254
    %v256 = vpop.f32.mrb[0].mxu0
    %257 = vdwg.mxu0
    %v258 = vsel %vm179, -1e+09, %v255
    %v259 = vsel %vm183, %v258, -inf
    %260 = vmax.xlane.f32.xlu0 %v259
    %v261 = vpop.xlane.xlu0 %260
    %v262 = vsub.f32 %v258, %v261
    %v263 = vmul.f32 %v262, 1.442695
    %v264 = vpow.pop %v263
    %v265 = vsel %vm183, %v264, 0.0
    %266 = vadd.xlane.f32.xlu0 %v265
    %v267 = vpop.xlane.xlu0 %266
    %v268 = vrcp.pop %v267
    %v269 = vmul.f32 %v264, %v268
    %270 = vrot.lane.b32.xlu0 %v170, 64
    %v271 = vpop.permute.xlu0 %270
    %v274 = vsel %vm183, %v269, 0
    %276 = vmatprep.subr.mxu0 0.0
    %277 = vmatpush1.msra.mxu0 %v271
    %278 = vmatprep.subr.mxu0 0.0
    %279 = vmatpush1.msra.mxu0 0.0
    %280 = vmatprep.subr.mxu0 0.0
    %281 = vmatpush1.msra.mxu0 0.0
    %282 = vmatprep.subr.mxu0 0.0
    %283 = vmatpush1.msra.mxu0 0.0
    %284 = vmatprep.subr.mxu0 0.0
    %285 = vmatpush1.msra.mxu0 0.0
    %286 = vmatprep.subr.mxu0 0.0
    %287 = vmatpush1.msra.mxu0 0.0
    %288 = vmatprep.subr.mxu0 0.0
    %289 = vmatpush1.msra.mxu0 0.0
    %290 = vmatprep.subr.mxu0 0.0
    %291 = vmatpush1.msra.mxu0 0.0
    %292 = vmatprep.subr.mxu0 0.0
    %293 = vmatpush1.msra.mxu0 0.0
    %294 = vmatprep.subr.mxu0 0.0
    %295 = vmatpush1.msra.mxu0 0.0
    %296 = vmatprep.subr.mxu0 0.0
    %297 = vmatpush1.msra.mxu0 0.0
    %298 = vmatprep.subr.mxu0 0.0
    %299 = vmatpush1.msra.mxu0 0.0
    %300 = vmatprep.subr.mxu0 0.0
    %301 = vmatpush1.msra.mxu0 0.0
    %302 = vmatprep.subr.mxu0 0.0
    %303 = vmatpush1.msra.mxu0 0.0
    %304 = vmatprep.subr.mxu0 0.0
    %305 = vmatpush1.msra.mxu0 0.0
    %306 = vmatprep.subr.mxu0 0.0
    %307 = vmatpush1.msra.mxu0 0.0
    %308 = vmatprep.subr.mxu0 0.0
    %309 = vmatpush1.msra.mxu0 0.0
    %310 = vmatprep.subr.mxu0 0.0
    %311 = vmatpush1.msra.mxu0 0.0
    %312 = vmatprep.subr.mxu0 0.0
    %313 = vmatpush1.msra.mxu0 0.0
    %314 = vmatprep.subr.mxu0 0.0
    %315 = vmatpush1.msra.mxu0 0.0
    %316 = vmatprep.subr.mxu0 0.0
    %317 = vmatpush1.msra.mxu0 0.0
    %318 = vmatprep.subr.mxu0 0.0
    %319 = vmatpush1.msra.mxu0 0.0
    %320 = vmatprep.subr.mxu0 0.0
    %321 = vmatpush1.msra.mxu0 0.0
    %322 = vmatprep.subr.mxu0 0.0
    %323 = vmatpush1.msra.mxu0 0.0
    %324 = vmatprep.subr.mxu0 0.0
    %325 = vmatpush1.msra.mxu0 0.0
    %326 = vmatprep.subr.mxu0 0.0
    %327 = vmatpush1.msra.mxu0 0.0
    %328 = vmatprep.subr.mxu0 0.0
    %329 = vmatpush1.msra.mxu0 0.0
    %330 = vmatprep.subr.mxu0 0.0
    %331 = vmatpush1.msra.mxu0 0.0
    %332 = vmatprep.subr.mxu0 0.0
    %333 = vmatpush1.msra.mxu0 0.0
    %334 = vmatprep.subr.mxu0 0.0
    %335 = vmatpush1.msra.mxu0 0.0
    %336 = vmatprep.subr.mxu0 0.0
    %337 = vmatpush1.msra.mxu0 0.0
    %338 = vmatprep.subr.mxu0 0.0
    %339 = vmatpush1.msra.mxu0 0.0
    %340 = vmatprep.mubr.f32.mxu0 0.0
    %341 = vmatmul.mubr.f32.gmra.mrb[0].mxu0 %v274
    %v342 = vpop.f32.mrb[0].mxu0
    %v343 = vadd.f32 0.0, %v342
    %v344 = vpop.f32.mrb[0].mxu0
    %345 = vdwg.mxu0
    %346 = vst.msk [vmem:[#allocation2] sm:$0xff] %vm183, %v343
    %347 = vrot.lane.b32.xlu0 %v170, 120
    %v348 = vpop.permute.xlu0 %347
    %349 = vrot.lane.b32.xlu0 %v170, 88
    %v350 = vpop.permute.xlu0 %349
    %v351 = vsel %vm183, %v348, 0
    %v353 = vsel %vm183, %v350, 0
    %355 = vmatprep.subr.mxu0 0.0
    %356 = vmatpush1.xpose.msra.mxu0 %v353
    %357 = vmatprep.subr.mxu0 0.0
    %358 = vmatpush1.xpose.msra.mxu0 0.0
    %359 = vmatprep.subr.mxu0 0.0
    %360 = vmatpush1.xpose.msra.mxu0 0.0
    %361 = vmatprep.subr.mxu0 0.0
    %362 = vmatpush1.xpose.msra.mxu0 0.0
    %363 = vmatprep.subr.mxu0 0.0
    %364 = vmatpush1.xpose.msra.mxu0 0.0
    %365 = vmatprep.subr.mxu0 0.0
    %366 = vmatpush1.xpose.msra.mxu0 0.0
    %367 = vmatprep.subr.mxu0 0.0
    %368 = vmatpush1.xpose.msra.mxu0 0.0
    %369 = vmatprep.subr.mxu0 0.0
    %370 = vmatpush1.xpose.msra.mxu0 0.0
    %371 = vmatprep.subr.mxu0 0.0
    %372 = vmatpush1.xpose.msra.mxu0 0.0
    %373 = vmatprep.subr.mxu0 0.0
    %374 = vmatpush1.xpose.msra.mxu0 0.0
    %375 = vmatprep.subr.mxu0 0.0
    %376 = vmatpush1.xpose.msra.mxu0 0.0
    %377 = vmatprep.subr.mxu0 0.0
    %378 = vmatpush1.xpose.msra.mxu0 0.0
    %379 = vmatprep.subr.mxu0 0.0
    %380 = vmatpush1.xpose.msra.mxu0 0.0
    %381 = vmatprep.subr.mxu0 0.0
    %382 = vmatpush1.xpose.msra.mxu0 0.0
    %383 = vmatprep.subr.mxu0 0.0
    %384 = vmatpush1.xpose.msra.mxu0 0.0
    %385 = vmatprep.subr.mxu0 0.0
    %386 = vmatpush1.xpose.msra.mxu0 0.0
    %387 = vmatprep.subr.mxu0 0.0
    %388 = vmatpush1.xpose.msra.mxu0 0.0
    %389 = vmatprep.subr.mxu0 0.0
    %390 = vmatpush1.xpose.msra.mxu0 0.0
    %391 = vmatprep.subr.mxu0 0.0
    %392 = vmatpush1.xpose.msra.mxu0 0.0
    %393 = vmatprep.subr.mxu0 0.0
    %394 = vmatpush1.xpose.msra.mxu0 0.0
    %395 = vmatprep.subr.mxu0 0.0
    %396 = vmatpush1.xpose.msra.mxu0 0.0
    %397 = vmatprep.subr.mxu0 0.0
    %398 = vmatpush1.xpose.msra.mxu0 0.0
    %399 = vmatprep.subr.mxu0 0.0
    %400 = vmatpush1.xpose.msra.mxu0 0.0
    %401 = vmatprep.subr.mxu0 0.0
    %402 = vmatpush1.xpose.msra.mxu0 0.0
    %403 = vmatprep.subr.mxu0 0.0
    %404 = vmatpush1.xpose.msra.mxu0 0.0
    %405 = vmatprep.subr.mxu0 0.0
    %406 = vmatpush1.xpose.msra.mxu0 0.0
    %407 = vmatprep.subr.mxu0 0.0
    %408 = vmatpush1.xpose.msra.mxu0 0.0
    %409 = vmatprep.subr.mxu0 0.0
    %410 = vmatpush1.xpose.msra.mxu0 0.0
    %411 = vmatprep.subr.mxu0 0.0
    %412 = vmatpush1.xpose.msra.mxu0 0.0
    %413 = vmatprep.subr.mxu0 0.0
    %414 = vmatpush1.xpose.msra.mxu0 0.0
    %415 = vmatprep.subr.mxu0 0.0
    %416 = vmatpush1.xpose.msra.mxu0 0.0
    %417 = vmatprep.subr.mxu0 0.0
    %418 = vmatpush1.xpose.msra.mxu0 0.0
    %419 = vmatprep.mubr.f32.mxu0 0.0
    %420 = vmatmul.mubr.f32.gmra.mrb[0].mxu0 %v351
    %v421 = vpop.f32.mrb[0].mxu0
    %v422 = vadd.f32 0.0, %v421
    %v423 = vpop.f32.mrb[0].mxu0
    %424 = vdwg.mxu0
    %v425 = vsel %vm179, -1e+09, %v422
    %v426 = vsel %vm183, %v425, -inf
    %427 = vmax.xlane.f32.xlu0 %v426
    %v428 = vpop.xlane.xlu0 %427
    %v429 = vsub.f32 %v425, %v428
    %v430 = vmul.f32 %v429, 1.442695
    %v431 = vpow.pop %v430
    %v432 = vsel %vm183, %v431, 0.0
    %433 = vadd.xlane.f32.xlu0 %v432
    %v434 = vpop.xlane.xlu0 %433
    %v435 = vrcp.pop %v434
    %v436 = vmul.f32 %v431, %v435
    %437 = vrot.lane.b32.xlu0 %v170, 56
    %v438 = vpop.permute.xlu0 %437
    %v441 = vsel %vm183, %v436, 0
    %443 = vmatprep.subr.mxu0 0.0
    %444 = vmatpush1.msra.mxu0 %v438
    %445 = vmatprep.subr.mxu0 0.0
    %446 = vmatpush1.msra.mxu0 0.0
    %447 = vmatprep.subr.mxu0 0.0
    %448 = vmatpush1.msra.mxu0 0.0
    %449 = vmatprep.subr.mxu0 0.0
    %450 = vmatpush1.msra.mxu0 0.0
    %451 = vmatprep.subr.mxu0 0.0
    %452 = vmatpush1.msra.mxu0 0.0
    %453 = vmatprep.subr.mxu0 0.0
    %454 = vmatpush1.msra.mxu0 0.0
    %455 = vmatprep.subr.mxu0 0.0
    %456 = vmatpush1.msra.mxu0 0.0
    %457 = vmatprep.subr.mxu0 0.0
    %458 = vmatpush1.msra.mxu0 0.0
    %459 = vmatprep.subr.mxu0 0.0
    %460 = vmatpush1.msra.mxu0 0.0
    %461 = vmatprep.subr.mxu0 0.0
    %462 = vmatpush1.msra.mxu0 0.0
    %463 = vmatprep.subr.mxu0 0.0
    %464 = vmatpush1.msra.mxu0 0.0
    %465 = vmatprep.subr.mxu0 0.0
    %466 = vmatpush1.msra.mxu0 0.0
    %467 = vmatprep.subr.mxu0 0.0
    %468 = vmatpush1.msra.mxu0 0.0
    %469 = vmatprep.subr.mxu0 0.0
    %470 = vmatpush1.msra.mxu0 0.0
    %471 = vmatprep.subr.mxu0 0.0
    %472 = vmatpush1.msra.mxu0 0.0
    %473 = vmatprep.subr.mxu0 0.0
    %474 = vmatpush1.msra.mxu0 0.0
    %475 = vmatprep.subr.mxu0 0.0
    %476 = vmatpush1.msra.mxu0 0.0
    %477 = vmatprep.subr.mxu0 0.0
    %478 = vmatpush1.msra.mxu0 0.0
    %479 = vmatprep.subr.mxu0 0.0
    %480 = vmatpush1.msra.mxu0 0.0
    %481 = vmatprep.subr.mxu0 0.0
    %482 = vmatpush1.msra.mxu0 0.0
    %483 = vmatprep.subr.mxu0 0.0
    %484 = vmatpush1.msra.mxu0 0.0
    %485 = vmatprep.subr.mxu0 0.0
    %486 = vmatpush1.msra.mxu0 0.0
    %487 = vmatprep.subr.mxu0 0.0
    %488 = vmatpush1.msra.mxu0 0.0
    %489 = vmatprep.subr.mxu0 0.0
    %490 = vmatpush1.msra.mxu0 0.0
    %491 = vmatprep.subr.mxu0 0.0
    %492 = vmatpush1.msra.mxu0 0.0
    %493 = vmatprep.subr.mxu0 0.0
    %494 = vmatpush1.msra.mxu0 0.0
    %495 = vmatprep.subr.mxu0 0.0
    %496 = vmatpush1.msra.mxu0 0.0
    %497 = vmatprep.subr.mxu0 0.0
    %498 = vmatpush1.msra.mxu0 0.0
    %499 = vmatprep.subr.mxu0 0.0
    %500 = vmatpush1.msra.mxu0 0.0
    %501 = vmatprep.subr.mxu0 0.0
    %502 = vmatpush1.msra.mxu0 0.0
    %503 = vmatprep.subr.mxu0 0.0
    %504 = vmatpush1.msra.mxu0 0.0
    %505 = vmatprep.subr.mxu0 0.0
    %506 = vmatpush1.msra.mxu0 0.0
    %507 = vmatprep.mubr.f32.mxu0 0.0
    %508 = vmatmul.mubr.f32.gmra.mrb[0].mxu0 %v441
    %v509 = vpop.f32.mrb[0].mxu0
    %v510 = vadd.f32 0.0, %v509
    %v511 = vpop.f32.mrb[0].mxu0
    %512 = vdwg.mxu0
    %513 = vst.msk [vmem:[#allocation2 + $0x8] sm:$0xff] %vm183, %v510
    %514 = vrot.lane.b32.xlu0 %v170, 112
    %v515 = vpop.permute.xlu0 %514
    %516 = vrot.lane.b32.xlu0 %v170, 80
    %v517 = vpop.permute.xlu0 %516
    %v518 = vsel %vm183, %v515, 0
    %v520 = vsel %vm183, %v517, 0
    %522 = vmatprep.subr.mxu0 0.0
    %523 = vmatpush1.xpose.msra.mxu0 %v520
    %524 = vmatprep.subr.mxu0 0.0
    %525 = vmatpush1.xpose.msra.mxu0 0.0
    %526 = vmatprep.subr.mxu0 0.0
    %527 = vmatpush1.xpose.msra.mxu0 0.0
    %528 = vmatprep.subr.mxu0 0.0
    %529 = vmatpush1.xpose.msra.mxu0 0.0
    %530 = vmatprep.subr.mxu0 0.0
    %531 = vmatpush1.xpose.msra.mxu0 0.0
    %532 = vmatprep.subr.mxu0 0.0
    %533 = vmatpush1.xpose.msra.mxu0 0.0
    %534 = vmatprep.subr.mxu0 0.0
    %535 = vmatpush1.xpose.msra.mxu0 0.0
    %536 = vmatprep.subr.mxu0 0.0
    %537 = vmatpush1.xpose.msra.mxu0 0.0
    %538 = vmatprep.subr.mxu0 0.0
    %539 = vmatpush1.xpose.msra.mxu0 0.0
    %540 = vmatprep.subr.mxu0 0.0
    %541 = vmatpush1.xpose.msra.mxu0 0.0
    %542 = vmatprep.subr.mxu0 0.0
    %543 = vmatpush1.xpose.msra.mxu0 0.0
    %544 = vmatprep.subr.mxu0 0.0
    %545 = vmatpush1.xpose.msra.mxu0 0.0
    %546 = vmatprep.subr.mxu0 0.0
    %547 = vmatpush1.xpose.msra.mxu0 0.0
    %548 = vmatprep.subr.mxu0 0.0
    %549 = vmatpush1.xpose.msra.mxu0 0.0
    %550 = vmatprep.subr.mxu0 0.0
    %551 = vmatpush1.xpose.msra.mxu0 0.0
    %552 = vmatprep.subr.mxu0 0.0
    %553 = vmatpush1.xpose.msra.mxu0 0.0
    %554 = vmatprep.subr.mxu0 0.0
    %555 = vmatpush1.xpose.msra.mxu0 0.0
    %556 = vmatprep.subr.mxu0 0.0
    %557 = vmatpush1.xpose.msra.mxu0 0.0
    %558 = vmatprep.subr.mxu0 0.0
    %559 = vmatpush1.xpose.msra.mxu0 0.0
    %560 = vmatprep.subr.mxu0 0.0
    %561 = vmatpush1.xpose.msra.mxu0 0.0
    %562 = vmatprep.subr.mxu0 0.0
    %563 = vmatpush1.xpose.msra.mxu0 0.0
    %564 = vmatprep.subr.mxu0 0.0
    %565 = vmatpush1.xpose.msra.mxu0 0.0
    %566 = vmatprep.subr.mxu0 0.0
    %567 = vmatpush1.xpose.msra.mxu0 0.0
    %568 = vmatprep.subr.mxu0 0.0
    %569 = vmatpush1.xpose.msra.mxu0 0.0
    %570 = vmatprep.subr.mxu0 0.0
    %571 = vmatpush1.xpose.msra.mxu0 0.0
    %572 = vmatprep.subr.mxu0 0.0
    %573 = vmatpush1.xpose.msra.mxu0 0.0
    %574 = vmatprep.subr.mxu0 0.0
    %575 = vmatpush1.xpose.msra.mxu0 0.0
    %576 = vmatprep.subr.mxu0 0.0
    %577 = vmatpush1.xpose.msra.mxu0 0.0
    %578 = vmatprep.subr.mxu0 0.0
    %579 = vmatpush1.xpose.msra.mxu0 0.0
    %580 = vmatprep.subr.mxu0 0.0
    %581 = vmatpush1.xpose.msra.mxu0 0.0
    %582 = vmatprep.subr.mxu0 0.0
    %583 = vmatpush1.xpose.msra.mxu0 0.0
    %584 = vmatprep.subr.mxu0 0.0
    %585 = vmatpush1.xpose.msra.mxu0 0.0
    %586 = vmatprep.mubr.f32.mxu0 0.0
    %587 = vmatmul.mubr.f32.gmra.mrb[0].mxu0 %v518
    %v588 = vpop.f32.mrb[0].mxu0
    %v589 = vadd.f32 0.0, %v588
    %v590 = vpop.f32.mrb[0].mxu0
    %591 = vdwg.mxu0
    %v592 = vsel %vm179, -1e+09, %v589
    %v593 = vsel %vm183, %v592, -inf
    %594 = vmax.xlane.f32.xlu0 %v593
    %v595 = vpop.xlane.xlu0 %594
    %v596 = vsub.f32 %v592, %v595
    %v597 = vmul.f32 %v596, 1.442695
    %v598 = vpow.pop %v597
    %v599 = vsel %vm183, %v598, 0.0
    %600 = vadd.xlane.f32.xlu0 %v599
    %v601 = vpop.xlane.xlu0 %600
    %v602 = vrcp.pop %v601
    %v603 = vmul.f32 %v598, %v602
    %604 = vrot.lane.b32.xlu0 %v170, 48
    %v605 = vpop.permute.xlu0 %604
    %v608 = vsel %vm183, %v603, 0
    %610 = vmatprep.subr.mxu0 0.0
    %611 = vmatpush1.msra.mxu0 %v605
    %612 = vmatprep.subr.mxu0 0.0
    %613 = vmatpush1.msra.mxu0 0.0
    %614 = vmatprep.subr.mxu0 0.0
    %615 = vmatpush1.msra.mxu0 0.0
    %616 = vmatprep.subr.mxu0 0.0
    %617 = vmatpush1.msra.mxu0 0.0
    %618 = vmatprep.subr.mxu0 0.0
    %619 = vmatpush1.msra.mxu0 0.0
    %620 = vmatprep.subr.mxu0 0.0
    %621 = vmatpush1.msra.mxu0 0.0
    %622 = vmatprep.subr.mxu0 0.0
    %623 = vmatpush1.msra.mxu0 0.0
    %624 = vmatprep.subr.mxu0 0.0
    %625 = vmatpush1.msra.mxu0 0.0
    %626 = vmatprep.subr.mxu0 0.0
    %627 = vmatpush1.msra.mxu0 0.0
    %628 = vmatprep.subr.mxu0 0.0
    %629 = vmatpush1.msra.mxu0 0.0
    %630 = vmatprep.subr.mxu0 0.0
    %631 = vmatpush1.msra.mxu0 0.0
    %632 = vmatprep.subr.mxu0 0.0
    %633 = vmatpush1.msra.mxu0 0.0
    %634 = vmatprep.subr.mxu0 0.0
    %635 = vmatpush1.msra.mxu0 0.0
    %636 = vmatprep.subr.mxu0 0.0
    %637 = vmatpush1.msra.mxu0 0.0
    %638 = vmatprep.subr.mxu0 0.0
    %639 = vmatpush1.msra.mxu0 0.0
    %640 = vmatprep.subr.mxu0 0.0
    %641 = vmatpush1.msra.mxu0 0.0
    %642 = vmatprep.subr.mxu0 0.0
    %643 = vmatpush1.msra.mxu0 0.0
    %644 = vmatprep.subr.mxu0 0.0
    %645 = vmatpush1.msra.mxu0 0.0
    %646 = vmatprep.subr.mxu0 0.0
    %647 = vmatpush1.msra.mxu0 0.0
    %648 = vmatprep.subr.mxu0 0.0
    %649 = vmatpush1.msra.mxu0 0.0
    %650 = vmatprep.subr.mxu0 0.0
    %651 = vmatpush1.msra.mxu0 0.0
    %652 = vmatprep.subr.mxu0 0.0
    %653 = vmatpush1.msra.mxu0 0.0
    %654 = vmatprep.subr.mxu0 0.0
    %655 = vmatpush1.msra.mxu0 0.0
    %656 = vmatprep.subr.mxu0 0.0
    %657 = vmatpush1.msra.mxu0 0.0
    %658 = vmatprep.subr.mxu0 0.0
    %659 = vmatpush1.msra.mxu0 0.0
    %660 = vmatprep.subr.mxu0 0.0
    %661 = vmatpush1.msra.mxu0 0.0
    %662 = vmatprep.subr.mxu0 0.0
    %663 = vmatpush1.msra.mxu0 0.0
    %664 = vmatprep.subr.mxu0 0.0
    %665 = vmatpush1.msra.mxu0 0.0
    %666 = vmatprep.subr.mxu0 0.0
    %667 = vmatpush1.msra.mxu0 0.0
    %668 = vmatprep.subr.mxu0 0.0
    %669 = vmatpush1.msra.mxu0 0.0
    %670 = vmatprep.subr.mxu0 0.0
    %671 = vmatpush1.msra.mxu0 0.0
    %672 = vmatprep.subr.mxu0 0.0
    %673 = vmatpush1.msra.mxu0 0.0
    %674 = vmatprep.mubr.f32.mxu0 0.0
    %675 = vmatmul.mubr.f32.gmra.mrb[0].mxu0 %v608
    %v676 = vpop.f32.mrb[0].mxu0
    %v677 = vadd.f32 0.0, %v676
    %v678 = vpop.f32.mrb[0].mxu0
    %679 = vdwg.mxu0
    %680 = vst.msk [vmem:[#allocation2 + $0x10] sm:$0xff] %vm183, %v677
    %681 = vrot.lane.b32.xlu0 %v170, 104
    %v682 = vpop.permute.xlu0 %681
    %683 = vrot.lane.b32.xlu0 %v170, 72
    %v684 = vpop.permute.xlu0 %683
    %v685 = vsel %vm183, %v682, 0
    %v687 = vsel %vm183, %v684, 0
    %689 = vmatprep.subr.mxu0 0.0
    %690 = vmatpush1.xpose.msra.mxu0 %v687
    %691 = vmatprep.subr.mxu0 0.0
    %692 = vmatpush1.xpose.msra.mxu0 0.0
    %693 = vmatprep.subr.mxu0 0.0
    %694 = vmatpush1.xpose.msra.mxu0 0.0
    %695 = vmatprep.subr.mxu0 0.0
    %696 = vmatpush1.xpose.msra.mxu0 0.0
    %697 = vmatprep.subr.mxu0 0.0
    %698 = vmatpush1.xpose.msra.mxu0 0.0
    %699 = vmatprep.subr.mxu0 0.0
    %700 = vmatpush1.xpose.msra.mxu0 0.0
    %701 = vmatprep.subr.mxu0 0.0
    %702 = vmatpush1.xpose.msra.mxu0 0.0
    %703 = vmatprep.subr.mxu0 0.0
    %704 = vmatpush1.xpose.msra.mxu0 0.0
    %705 = vmatprep.subr.mxu0 0.0
    %706 = vmatpush1.xpose.msra.mxu0 0.0
    %707 = vmatprep.subr.mxu0 0.0
    %708 = vmatpush1.xpose.msra.mxu0 0.0
    %709 = vmatprep.subr.mxu0 0.0
    %710 = vmatpush1.xpose.msra.mxu0 0.0
    %711 = vmatprep.subr.mxu0 0.0
    %712 = vmatpush1.xpose.msra.mxu0 0.0
    %713 = vmatprep.subr.mxu0 0.0
    %714 = vmatpush1.xpose.msra.mxu0 0.0
    %715 = vmatprep.subr.mxu0 0.0
    %716 = vmatpush1.xpose.msra.mxu0 0.0
    %717 = vmatprep.subr.mxu0 0.0
    %718 = vmatpush1.xpose.msra.mxu0 0.0
    %719 = vmatprep.subr.mxu0 0.0
    %720 = vmatpush1.xpose.msra.mxu0 0.0
    %721 = vmatprep.subr.mxu0 0.0
    %722 = vmatpush1.xpose.msra.mxu0 0.0
    %723 = vmatprep.subr.mxu0 0.0
    %724 = vmatpush1.xpose.msra.mxu0 0.0
    %725 = vmatprep.subr.mxu0 0.0
    %726 = vmatpush1.xpose.msra.mxu0 0.0
    %727 = vmatprep.subr.mxu0 0.0
    %728 = vmatpush1.xpose.msra.mxu0 0.0
    %729 = vmatprep.subr.mxu0 0.0
    %730 = vmatpush1.xpose.msra.mxu0 0.0
    %731 = vmatprep.subr.mxu0 0.0
    %732 = vmatpush1.xpose.msra.mxu0 0.0
    %733 = vmatprep.subr.mxu0 0.0
    %734 = vmatpush1.xpose.msra.mxu0 0.0
    %735 = vmatprep.subr.mxu0 0.0
    %736 = vmatpush1.xpose.msra.mxu0 0.0
    %737 = vmatprep.subr.mxu0 0.0
    %738 = vmatpush1.xpose.msra.mxu0 0.0
    %739 = vmatprep.subr.mxu0 0.0
    %740 = vmatpush1.xpose.msra.mxu0 0.0
    %741 = vmatprep.subr.mxu0 0.0
    %742 = vmatpush1.xpose.msra.mxu0 0.0
    %743 = vmatprep.subr.mxu0 0.0
    %744 = vmatpush1.xpose.msra.mxu0 0.0
    %745 = vmatprep.subr.mxu0 0.0
    %746 = vmatpush1.xpose.msra.mxu0 0.0
    %747 = vmatprep.subr.mxu0 0.0
    %748 = vmatpush1.xpose.msra.mxu0 0.0
    %749 = vmatprep.subr.mxu0 0.0
    %750 = vmatpush1.xpose.msra.mxu0 0.0
    %751 = vmatprep.subr.mxu0 0.0
    %752 = vmatpush1.xpose.msra.mxu0 0.0
    %753 = vmatprep.mubr.f32.mxu0 0.0
    %754 = vmatmul.mubr.f32.gmra.mrb[0].mxu0 %v685
    %v755 = vpop.f32.mrb[0].mxu0
    %v756 = vadd.f32 0.0, %v755
    %v757 = vpop.f32.mrb[0].mxu0
    %758 = vdwg.mxu0
    %v759 = vsel %vm179, -1e+09, %v756
    %v760 = vsel %vm183, %v759, -inf
    %761 = vmax.xlane.f32.xlu0 %v760
    %v762 = vpop.xlane.xlu0 %761
    %v763 = vsub.f32 %v759, %v762
    %v764 = vmul.f32 %v763, 1.442695
    %v765 = vpow.pop %v764
    %v766 = vsel %vm183, %v765, 0.0
    %767 = vadd.xlane.f32.xlu0 %v766
    %v768 = vpop.xlane.xlu0 %767
    %v769 = vrcp.pop %v768
    %v770 = vmul.f32 %v765, %v769
    %771 = vrot.lane.b32.xlu0 %v170, 40
    %v772 = vpop.permute.xlu0 %771
    %v775 = vsel %vm183, %v770, 0
    %777 = vmatprep.subr.mxu0 0.0
    %778 = vmatpush1.msra.mxu0 %v772
    %779 = vmatprep.subr.mxu0 0.0
    %780 = vmatpush1.msra.mxu0 0.0
    %781 = vmatprep.subr.mxu0 0.0
    %782 = vmatpush1.msra.mxu0 0.0
    %783 = vmatprep.subr.mxu0 0.0
    %784 = vmatpush1.msra.mxu0 0.0
    %785 = vmatprep.subr.mxu0 0.0
    %786 = vmatpush1.msra.mxu0 0.0
    %787 = vmatprep.subr.mxu0 0.0
    %788 = vmatpush1.msra.mxu0 0.0
    %789 = vmatprep.subr.mxu0 0.0
    %790 = vmatpush1.msra.mxu0 0.0
    %791 = vmatprep.subr.mxu0 0.0
    %792 = vmatpush1.msra.mxu0 0.0
    %793 = vmatprep.subr.mxu0 0.0
    %794 = vmatpush1.msra.mxu0 0.0
    %795 = vmatprep.subr.mxu0 0.0
    %796 = vmatpush1.msra.mxu0 0.0
    %797 = vmatprep.subr.mxu0 0.0
    %798 = vmatpush1.msra.mxu0 0.0
    %799 = vmatprep.subr.mxu0 0.0
    %800 = vmatpush1.msra.mxu0 0.0
    %801 = vmatprep.subr.mxu0 0.0
    %802 = vmatpush1.msra.mxu0 0.0
    %803 = vmatprep.subr.mxu0 0.0
    %804 = vmatpush1.msra.mxu0 0.0
    %805 = vmatprep.subr.mxu0 0.0
    %806 = vmatpush1.msra.mxu0 0.0
    %807 = vmatprep.subr.mxu0 0.0
    %808 = vmatpush1.msra.mxu0 0.0
    %809 = vmatprep.subr.mxu0 0.0
    %810 = vmatpush1.msra.mxu0 0.0
    %811 = vmatprep.subr.mxu0 0.0
    %812 = vmatpush1.msra.mxu0 0.0
    %813 = vmatprep.subr.mxu0 0.0
    %814 = vmatpush1.msra.mxu0 0.0
    %815 = vmatprep.subr.mxu0 0.0
    %816 = vmatpush1.msra.mxu0 0.0
    %817 = vmatprep.subr.mxu0 0.0
    %818 = vmatpush1.msra.mxu0 0.0
    %819 = vmatprep.subr.mxu0 0.0
    %820 = vmatpush1.msra.mxu0 0.0
    %821 = vmatprep.subr.mxu0 0.0
    %822 = vmatpush1.msra.mxu0 0.0
    %823 = vmatprep.subr.mxu0 0.0
    %824 = vmatpush1.msra.mxu0 0.0
    %825 = vmatprep.subr.mxu0 0.0
    %826 = vmatpush1.msra.mxu0 0.0
    %827 = vmatprep.subr.mxu0 0.0
    %828 = vmatpush1.msra.mxu0 0.0
    %829 = vmatprep.subr.mxu0 0.0
    %830 = vmatpush1.msra.mxu0 0.0
    %831 = vmatprep.subr.mxu0 0.0
    %832 = vmatpush1.msra.mxu0 0.0
    %833 = vmatprep.subr.mxu0 0.0
    %834 = vmatpush1.msra.mxu0 0.0
    %835 = vmatprep.subr.mxu0 0.0
    %836 = vmatpush1.msra.mxu0 0.0
    %837 = vmatprep.subr.mxu0 0.0
    %838 = vmatpush1.msra.mxu0 0.0
    %839 = vmatprep.subr.mxu0 0.0
    %840 = vmatpush1.msra.mxu0 0.0
    %841 = vmatprep.mubr.f32.mxu0 0.0
    %842 = vmatmul.mubr.f32.gmra.mrb[0].mxu0 %v775
    %v843 = vpop.f32.mrb[0].mxu0
    %v844 = vadd.f32 0.0, %v843
    %v845 = vpop.f32.mrb[0].mxu0
    %846 = vdwg.mxu0
    %847 = vst.msk [vmem:[#allocation2 + $0x18] sm:$0xff] %vm183, %v844
    %848 = vrot.lane.b32.xlu0 %v436, 8
    %v849 = vpop.permute.xlu0 %848
    %851 = vrot.lane.b32.xlu0 %v603, 16
    %v852 = vpop.permute.xlu0 %851
    %854 = vrot.lane.b32.xlu0 %v770, 24
    %v855 = vpop.permute.xlu0 %854
    %v857 = vsel %vm183, %v269, %v849
    %vm858 = vcmask 130048
    %v859 = vsel %vm858, %v857, %v852
    %vm860 = vcmask 195584
    %v861 = vsel %vm860, %v859, %v855
    %s862 = scalar_lea.vmem %s2, 8
    %v863 = vld [vmem:[%s862] sm:$0xff]
    %vm864 = vcmp.ne.s32.totalorder %v863, 0
    %866 = vrot.lane.b32.xlu0 %v175, 96
    %v867 = vpop.permute.xlu0 %866
    %v868 = vsel %vm183, %v175, 0
    %v870 = vsel %vm183, %v867, 0
    %872 = vmatprep.subr.mxu0 0.0
    %873 = vmatpush1.xpose.msra.mxu0 %v870
    %874 = vmatprep.subr.mxu0 0.0
    %875 = vmatpush1.xpose.msra.mxu0 0.0
    %876 = vmatprep.subr.mxu0 0.0
    %877 = vmatpush1.xpose.msra.mxu0 0.0
    %878 = vmatprep.subr.mxu0 0.0
    %879 = vmatpush1.xpose.msra.mxu0 0.0
    %880 = vmatprep.subr.mxu0 0.0
    %881 = vmatpush1.xpose.msra.mxu0 0.0
    %882 = vmatprep.subr.mxu0 0.0
    %883 = vmatpush1.xpose.msra.mxu0 0.0
    %884 = vmatprep.subr.mxu0 0.0
    %885 = vmatpush1.xpose.msra.mxu0 0.0
    %886 = vmatprep.subr.mxu0 0.0
    %887 = vmatpush1.xpose.msra.mxu0 0.0
    %888 = vmatprep.subr.mxu0 0.0
    %889 = vmatpush1.xpose.msra.mxu0 0.0
    %890 = vmatprep.subr.mxu0 0.0
    %891 = vmatpush1.xpose.msra.mxu0 0.0
    %892 = vmatprep.subr.mxu0 0.0
    %893 = vmatpush1.xpose.msra.mxu0 0.0
    %894 = vmatprep.subr.mxu0 0.0
    %895 = vmatpush1.xpose.msra.mxu0 0.0
    %896 = vmatprep.subr.mxu0 0.0
    %897 = vmatpush1.xpose.msra.mxu0 0.0
    %898 = vmatprep.subr.mxu0 0.0
    %899 = vmatpush1.xpose.msra.mxu0 0.0
    %900 = vmatprep.subr.mxu0 0.0
    %901 = vmatpush1.xpose.msra.mxu0 0.0
    %902 = vmatprep.subr.mxu0 0.0
    %903 = vmatpush1.xpose.msra.mxu0 0.0
    %904 = vmatprep.subr.mxu0 0.0
    %905 = vmatpush1.xpose.msra.mxu0 0.0
    %906 = vmatprep.subr.mxu0 0.0
    %907 = vmatpush1.xpose.msra.mxu0 0.0
    %908 = vmatprep.subr.mxu0 0.0
    %909 = vmatpush1.xpose.msra.mxu0 0.0
    %910 = vmatprep.subr.mxu0 0.0
    %911 = vmatpush1.xpose.msra.mxu0 0.0
    %912 = vmatprep.subr.mxu0 0.0
    %913 = vmatpush1.xpose.msra.mxu0 0.0
    %914 = vmatprep.subr.mxu0 0.0
    %915 = vmatpush1.xpose.msra.mxu0 0.0
    %916 = vmatprep.subr.mxu0 0.0
    %917 = vmatpush1.xpose.msra.mxu0 0.0
    %918 = vmatprep.subr.mxu0 0.0
    %919 = vmatpush1.xpose.msra.mxu0 0.0
    %920 = vmatprep.subr.mxu0 0.0
    %921 = vmatpush1.xpose.msra.mxu0 0.0
    %922 = vmatprep.subr.mxu0 0.0
    %923 = vmatpush1.xpose.msra.mxu0 0.0
    %924 = vmatprep.subr.mxu0 0.0
    %925 = vmatpush1.xpose.msra.mxu0 0.0
    %926 = vmatprep.subr.mxu0 0.0
    %927 = vmatpush1.xpose.msra.mxu0 0.0
    %928 = vmatprep.subr.mxu0 0.0
    %929 = vmatpush1.xpose.msra.mxu0 0.0
    %930 = vmatprep.subr.mxu0 0.0
    %931 = vmatpush1.xpose.msra.mxu0 0.0
    %932 = vmatprep.subr.mxu0 0.0
    %933 = vmatpush1.xpose.msra.mxu0 0.0
    %934 = vmatprep.subr.mxu0 0.0
    %935 = vmatpush1.xpose.msra.mxu0 0.0
    %936 = vmatprep.mubr.f32.mxu0 0.0
    %937 = vmatmul.mubr.f32.gmra.mrb[0].mxu0 %v868
    %v938 = vpop.f32.mrb[0].mxu0
    %v939 = vadd.f32 0.0, %v938
    %v940 = vpop.f32.mrb[0].mxu0
    %941 = vdwg.mxu0
    %v942 = vsel %vm864, -1e+09, %v939
    %v943 = vsel %vm183, %v942, -inf
    %944 = vmax.xlane.f32.xlu0 %v943
    %v945 = vpop.xlane.xlu0 %944
    %v946 = vsub.f32 %v942, %v945
    %v947 = vmul.f32 %v946, 1.442695
    %v948 = vpow.pop %v947
    %v949 = vsel %vm183, %v948, 0.0
    %950 = vadd.xlane.f32.xlu0 %v949
    %v951 = vpop.xlane.xlu0 %950
    %v952 = vrcp.pop %v951
    %v953 = vmul.f32 %v948, %v952
    %954 = vrot.lane.b32.xlu0 %v175, 64
    %v955 = vpop.permute.xlu0 %954
    %v958 = vsel %vm183, %v953, 0
    %960 = vmatprep.subr.mxu0 0.0
    %961 = vmatpush1.msra.mxu0 %v955
    %962 = vmatprep.subr.mxu0 0.0
    %963 = vmatpush1.msra.mxu0 0.0
    %964 = vmatprep.subr.mxu0 0.0
    %965 = vmatpush1.msra.mxu0 0.0
    %966 = vmatprep.subr.mxu0 0.0
    %967 = vmatpush1.msra.mxu0 0.0
    %968 = vmatprep.subr.mxu0 0.0
    %969 = vmatpush1.msra.mxu0 0.0
    %970 = vmatprep.subr.mxu0 0.0
    %971 = vmatpush1.msra.mxu0 0.0
    %972 = vmatprep.subr.mxu0 0.0
    %973 = vmatpush1.msra.mxu0 0.0
    %974 = vmatprep.subr.mxu0 0.0
    %975 = vmatpush1.msra.mxu0 0.0
    %976 = vmatprep.subr.mxu0 0.0
    %977 = vmatpush1.msra.mxu0 0.0
    %978 = vmatprep.subr.mxu0 0.0
    %979 = vmatpush1.msra.mxu0 0.0
    %980 = vmatprep.subr.mxu0 0.0
    %981 = vmatpush1.msra.mxu0 0.0
    %982 = vmatprep.subr.mxu0 0.0
    %983 = vmatpush1.msra.mxu0 0.0
    %984 = vmatprep.subr.mxu0 0.0
    %985 = vmatpush1.msra.mxu0 0.0
    %986 = vmatprep.subr.mxu0 0.0
    %987 = vmatpush1.msra.mxu0 0.0
    %988 = vmatprep.subr.mxu0 0.0
    %989 = vmatpush1.msra.mxu0 0.0
    %990 = vmatprep.subr.mxu0 0.0
    %991 = vmatpush1.msra.mxu0 0.0
    %992 = vmatprep.subr.mxu0 0.0
    %993 = vmatpush1.msra.mxu0 0.0
    %994 = vmatprep.subr.mxu0 0.0
    %995 = vmatpush1.msra.mxu0 0.0
    %996 = vmatprep.subr.mxu0 0.0
    %997 = vmatpush1.msra.mxu0 0.0
    %998 = vmatprep.subr.mxu0 0.0
    %999 = vmatpush1.msra.mxu0 0.0
    %1000 = vmatprep.subr.mxu0 0.0
    %1001 = vmatpush1.msra.mxu0 0.0
    %1002 = vmatprep.subr.mxu0 0.0
    %1003 = vmatpush1.msra.mxu0 0.0
    %1004 = vmatprep.subr.mxu0 0.0
    %1005 = vmatpush1.msra.mxu0 0.0
    %1006 = vmatprep.subr.mxu0 0.0
    %1007 = vmatpush1.msra.mxu0 0.0
    %1008 = vmatprep.subr.mxu0 0.0
    %1009 = vmatpush1.msra.mxu0 0.0
    %1010 = vmatprep.subr.mxu0 0.0
    %1011 = vmatpush1.msra.mxu0 0.0
    %1012 = vmatprep.subr.mxu0 0.0
    %1013 = vmatpush1.msra.mxu0 0.0
    %1014 = vmatprep.subr.mxu0 0.0
    %1015 = vmatpush1.msra.mxu0 0.0
    %1016 = vmatprep.subr.mxu0 0.0
    %1017 = vmatpush1.msra.mxu0 0.0
    %1018 = vmatprep.subr.mxu0 0.0
    %1019 = vmatpush1.msra.mxu0 0.0
    %1020 = vmatprep.subr.mxu0 0.0
    %1021 = vmatpush1.msra.mxu0 0.0
    %1022 = vmatprep.subr.mxu0 0.0
    %1023 = vmatpush1.msra.mxu0 0.0
    %1024 = vmatprep.mubr.f32.mxu0 0.0
    %1025 = vmatmul.mubr.f32.gmra.mrb[0].mxu0 %v958
    %v1026 = vpop.f32.mrb[0].mxu0
    %v1027 = vadd.f32 0.0, %v1026
    %v1028 = vpop.f32.mrb[0].mxu0
    %1029 = vdwg.mxu0
    %1030 = vst.msk [vmem:[#allocation2 + $0x20] sm:$0xff] %vm183, %v1027
    %1031 = vrot.lane.b32.xlu0 %v175, 120
    %v1032 = vpop.permute.xlu0 %1031
    %1033 = vrot.lane.b32.xlu0 %v175, 88
    %v1034 = vpop.permute.xlu0 %1033
    %v1035 = vsel %vm183, %v1032, 0
    %v1037 = vsel %vm183, %v1034, 0
    %1039 = vmatprep.subr.mxu0 0.0
    %1040 = vmatpush1.xpose.msra.mxu0 %v1037
    %1041 = vmatprep.subr.mxu0 0.0
    %1042 = vmatpush1.xpose.msra.mxu0 0.0
    %1043 = vmatprep.subr.mxu0 0.0
    %1044 = vmatpush1.xpose.msra.mxu0 0.0
    %1045 = vmatprep.subr.mxu0 0.0
    %1046 = vmatpush1.xpose.msra.mxu0 0.0
    %1047 = vmatprep.subr.mxu0 0.0
    %1048 = vmatpush1.xpose.msra.mxu0 0.0
    %1049 = vmatprep.subr.mxu0 0.0
    %1050 = vmatpush1.xpose.msra.mxu0 0.0
    %1051 = vmatprep.subr.mxu0 0.0
    %1052 = vmatpush1.xpose.msra.mxu0 0.0
    %1053 = vmatprep.subr.mxu0 0.0
    %1054 = vmatpush1.xpose.msra.mxu0 0.0
    %1055 = vmatprep.subr.mxu0 0.0
    %1056 = vmatpush1.xpose.msra.mxu0 0.0
    %1057 = vmatprep.subr.mxu0 0.0
    %1058 = vmatpush1.xpose.msra.mxu0 0.0
    %1059 = vmatprep.subr.mxu0 0.0
    %1060 = vmatpush1.xpose.msra.mxu0 0.0
    %1061 = vmatprep.subr.mxu0 0.0
    %1062 = vmatpush1.xpose.msra.mxu0 0.0
    %1063 = vmatprep.subr.mxu0 0.0
    %1064 = vmatpush1.xpose.msra.mxu0 0.0
    %1065 = vmatprep.subr.mxu0 0.0
    %1066 = vmatpush1.xpose.msra.mxu0 0.0
    %1067 = vmatprep.subr.mxu0 0.0
    %1068 = vmatpush1.xpose.msra.mxu0 0.0
    %1069 = vmatprep.subr.mxu0 0.0
    %1070 = vmatpush1.xpose.msra.mxu0 0.0
    %1071 = vmatprep.subr.mxu0 0.0
    %1072 = vmatpush1.xpose.msra.mxu0 0.0
    %1073 = vmatprep.subr.mxu0 0.0
    %1074 = vmatpush1.xpose.msra.mxu0 0.0
    %1075 = vmatprep.subr.mxu0 0.0
    %1076 = vmatpush1.xpose.msra.mxu0 0.0
    %1077 = vmatprep.subr.mxu0 0.0
    %1078 = vmatpush1.xpose.msra.mxu0 0.0
    %1079 = vmatprep.subr.mxu0 0.0
    %1080 = vmatpush1.xpose.msra.mxu0 0.0
    %1081 = vmatprep.subr.mxu0 0.0
    %1082 = vmatpush1.xpose.msra.mxu0 0.0
    %1083 = vmatprep.subr.mxu0 0.0
    %1084 = vmatpush1.xpose.msra.mxu0 0.0
    %1085 = vmatprep.subr.mxu0 0.0
    %1086 = vmatpush1.xpose.msra.mxu0 0.0
    %1087 = vmatprep.subr.mxu0 0.0
    %1088 = vmatpush1.xpose.msra.mxu0 0.0
    %1089 = vmatprep.subr.mxu0 0.0
    %1090 = vmatpush1.xpose.msra.mxu0 0.0
    %1091 = vmatprep.subr.mxu0 0.0
    %1092 = vmatpush1.xpose.msra.mxu0 0.0
    %1093 = vmatprep.subr.mxu0 0.0
    %1094 = vmatpush1.xpose.msra.mxu0 0.0
    %1095 = vmatprep.subr.mxu0 0.0
    %1096 = vmatpush1.xpose.msra.mxu0 0.0
    %1097 = vmatprep.subr.mxu0 0.0
    %1098 = vmatpush1.xpose.msra.mxu0 0.0
    %1099 = vmatprep.subr.mxu0 0.0
    %1100 = vmatpush1.xpose.msra.mxu0 0.0
    %1101 = vmatprep.subr.mxu0 0.0
    %1102 = vmatpush1.xpose.msra.mxu0 0.0
    %1103 = vmatprep.mubr.f32.mxu0 0.0
    %1104 = vmatmul.mubr.f32.gmra.mrb[0].mxu0 %v1035
    %v1105 = vpop.f32.mrb[0].mxu0
    %v1106 = vadd.f32 0.0, %v1105
    %v1107 = vpop.f32.mrb[0].mxu0
    %1108 = vdwg.mxu0
    %v1109 = vsel %vm864, -1e+09, %v1106
    %v1110 = vsel %vm183, %v1109, -inf
    %1111 = vmax.xlane.f32.xlu0 %v1110
    %v1112 = vpop.xlane.xlu0 %1111
    %v1113 = vsub.f32 %v1109, %v1112
    %v1114 = vmul.f32 %v1113, 1.442695
    %v1115 = vpow.pop %v1114
    %v1116 = vsel %vm183, %v1115, 0.0
    %1117 = vadd.xlane.f32.xlu0 %v1116
    %v1118 = vpop.xlane.xlu0 %1117
    %v1119 = vrcp.pop %v1118
    %v1120 = vmul.f32 %v1115, %v1119
    %1121 = vrot.lane.b32.xlu0 %v175, 56
    %v1122 = vpop.permute.xlu0 %1121
    %v1125 = vsel %vm183, %v1120, 0
    %1127 = vmatprep.subr.mxu0 0.0
    %1128 = vmatpush1.msra.mxu0 %v1122
    %1129 = vmatprep.subr.mxu0 0.0
    %1130 = vmatpush1.msra.mxu0 0.0
    %1131 = vmatprep.subr.mxu0 0.0
    %1132 = vmatpush1.msra.mxu0 0.0
    %1133 = vmatprep.subr.mxu0 0.0
    %1134 = vmatpush1.msra.mxu0 0.0
    %1135 = vmatprep.subr.mxu0 0.0
    %1136 = vmatpush1.msra.mxu0 0.0
    %1137 = vmatprep.subr.mxu0 0.0
    %1138 = vmatpush1.msra.mxu0 0.0
    %1139 = vmatprep.subr.mxu0 0.0
    %1140 = vmatpush1.msra.mxu0 0.0
    %1141 = vmatprep.subr.mxu0 0.0
    %1142 = vmatpush1.msra.mxu0 0.0
    %1143 = vmatprep.subr.mxu0 0.0
    %1144 = vmatpush1.msra.mxu0 0.0
    %1145 = vmatprep.subr.mxu0 0.0
    %1146 = vmatpush1.msra.mxu0 0.0
    %1147 = vmatprep.subr.mxu0 0.0
    %1148 = vmatpush1.msra.mxu0 0.0
    %1149 = vmatprep.subr.mxu0 0.0
    %1150 = vmatpush1.msra.mxu0 0.0
    %1151 = vmatprep.subr.mxu0 0.0
    %1152 = vmatpush1.msra.mxu0 0.0
    %1153 = vmatprep.subr.mxu0 0.0
    %1154 = vmatpush1.msra.mxu0 0.0
    %1155 = vmatprep.subr.mxu0 0.0
    %1156 = vmatpush1.msra.mxu0 0.0
    %1157 = vmatprep.subr.mxu0 0.0
    %1158 = vmatpush1.msra.mxu0 0.0
    %1159 = vmatprep.subr.mxu0 0.0
    %1160 = vmatpush1.msra.mxu0 0.0
    %1161 = vmatprep.subr.mxu0 0.0
    %1162 = vmatpush1.msra.mxu0 0.0
    %1163 = vmatprep.subr.mxu0 0.0
    %1164 = vmatpush1.msra.mxu0 0.0
    %1165 = vmatprep.subr.mxu0 0.0
    %1166 = vmatpush1.msra.mxu0 0.0
    %1167 = vmatprep.subr.mxu0 0.0
    %1168 = vmatpush1.msra.mxu0 0.0
    %1169 = vmatprep.subr.mxu0 0.0
    %1170 = vmatpush1.msra.mxu0 0.0
    %1171 = vmatprep.subr.mxu0 0.0
    %1172 = vmatpush1.msra.mxu0 0.0
    %1173 = vmatprep.subr.mxu0 0.0
    %1174 = vmatpush1.msra.mxu0 0.0
    %1175 = vmatprep.subr.mxu0 0.0
    %1176 = vmatpush1.msra.mxu0 0.0
    %1177 = vmatprep.subr.mxu0 0.0
    %1178 = vmatpush1.msra.mxu0 0.0
    %1179 = vmatprep.subr.mxu0 0.0
    %1180 = vmatpush1.msra.mxu0 0.0
    %1181 = vmatprep.subr.mxu0 0.0
    %1182 = vmatpush1.msra.mxu0 0.0
    %1183 = vmatprep.subr.mxu0 0.0
    %1184 = vmatpush1.msra.mxu0 0.0
    %1185 = vmatprep.subr.mxu0 0.0
    %1186 = vmatpush1.msra.mxu0 0.0
    %1187 = vmatprep.subr.mxu0 0.0
    %1188 = vmatpush1.msra.mxu0 0.0
    %1189 = vmatprep.subr.mxu0 0.0
    %1190 = vmatpush1.msra.mxu0 0.0
    %1191 = vmatprep.mubr.f32.mxu0 0.0
    %1192 = vmatmul.mubr.f32.gmra.mrb[0].mxu0 %v1125
    %v1193 = vpop.f32.mrb[0].mxu0
    %v1194 = vadd.f32 0.0, %v1193
    %v1195 = vpop.f32.mrb[0].mxu0
    %1196 = vdwg.mxu0
    %1197 = vst.msk [vmem:[#allocation2 + $0x28] sm:$0xff] %vm183, %v1194
    %1198 = vrot.lane.b32.xlu0 %v175, 112
    %v1199 = vpop.permute.xlu0 %1198
    %1200 = vrot.lane.b32.xlu0 %v175, 80
    %v1201 = vpop.permute.xlu0 %1200
    %v1202 = vsel %vm183, %v1199, 0
    %v1204 = vsel %vm183, %v1201, 0
    %1206 = vmatprep.subr.mxu0 0.0
    %1207 = vmatpush1.xpose.msra.mxu0 %v1204
    %1208 = vmatprep.subr.mxu0 0.0
    %1209 = vmatpush1.xpose.msra.mxu0 0.0
    %1210 = vmatprep.subr.mxu0 0.0
    %1211 = vmatpush1.xpose.msra.mxu0 0.0
    %1212 = vmatprep.subr.mxu0 0.0
    %1213 = vmatpush1.xpose.msra.mxu0 0.0
    %1214 = vmatprep.subr.mxu0 0.0
    %1215 = vmatpush1.xpose.msra.mxu0 0.0
    %1216 = vmatprep.subr.mxu0 0.0
    %1217 = vmatpush1.xpose.msra.mxu0 0.0
    %1218 = vmatprep.subr.mxu0 0.0
    %1219 = vmatpush1.xpose.msra.mxu0 0.0
    %1220 = vmatprep.subr.mxu0 0.0
    %1221 = vmatpush1.xpose.msra.mxu0 0.0
    %1222 = vmatprep.subr.mxu0 0.0
    %1223 = vmatpush1.xpose.msra.mxu0 0.0
    %1224 = vmatprep.subr.mxu0 0.0
    %1225 = vmatpush1.xpose.msra.mxu0 0.0
    %1226 = vmatprep.subr.mxu0 0.0
    %1227 = vmatpush1.xpose.msra.mxu0 0.0
    %1228 = vmatprep.subr.mxu0 0.0
    %1229 = vmatpush1.xpose.msra.mxu0 0.0
    %1230 = vmatprep.subr.mxu0 0.0
    %1231 = vmatpush1.xpose.msra.mxu0 0.0
    %1232 = vmatprep.subr.mxu0 0.0
    %1233 = vmatpush1.xpose.msra.mxu0 0.0
    %1234 = vmatprep.subr.mxu0 0.0
    %1235 = vmatpush1.xpose.msra.mxu0 0.0
    %1236 = vmatprep.subr.mxu0 0.0
    %1237 = vmatpush1.xpose.msra.mxu0 0.0
    %1238 = vmatprep.subr.mxu0 0.0
    %1239 = vmatpush1.xpose.msra.mxu0 0.0
    %1240 = vmatprep.subr.mxu0 0.0
    %1241 = vmatpush1.xpose.msra.mxu0 0.0
    %1242 = vmatprep.subr.mxu0 0.0
    %1243 = vmatpush1.xpose.msra.mxu0 0.0
    %1244 = vmatprep.subr.mxu0 0.0
    %1245 = vmatpush1.xpose.msra.mxu0 0.0
    %1246 = vmatprep.subr.mxu0 0.0
    %1247 = vmatpush1.xpose.msra.mxu0 0.0
    %1248 = vmatprep.subr.mxu0 0.0
    %1249 = vmatpush1.xpose.msra.mxu0 0.0
    %1250 = vmatprep.subr.mxu0 0.0
    %1251 = vmatpush1.xpose.msra.mxu0 0.0
    %1252 = vmatprep.subr.mxu0 0.0
    %1253 = vmatpush1.xpose.msra.mxu0 0.0
    %1254 = vmatprep.subr.mxu0 0.0
    %1255 = vmatpush1.xpose.msra.mxu0 0.0
    %1256 = vmatprep.subr.mxu0 0.0
    %1257 = vmatpush1.xpose.msra.mxu0 0.0
    %1258 = vmatprep.subr.mxu0 0.0
    %1259 = vmatpush1.xpose.msra.mxu0 0.0
    %1260 = vmatprep.subr.mxu0 0.0
    %1261 = vmatpush1.xpose.msra.mxu0 0.0
    %1262 = vmatprep.subr.mxu0 0.0
    %1263 = vmatpush1.xpose.msra.mxu0 0.0
    %1264 = vmatprep.subr.mxu0 0.0
    %1265 = vmatpush1.xpose.msra.mxu0 0.0
    %1266 = vmatprep.subr.mxu0 0.0
    %1267 = vmatpush1.xpose.msra.mxu0 0.0
    %1268 = vmatprep.subr.mxu0 0.0
    %1269 = vmatpush1.xpose.msra.mxu0 0.0
    %1270 = vmatprep.mubr.f32.mxu0 0.0
    %1271 = vmatmul.mubr.f32.gmra.mrb[0].mxu0 %v1202
    %v1272 = vpop.f32.mrb[0].mxu0
    %v1273 = vadd.f32 0.0, %v1272
    %v1274 = vpop.f32.mrb[0].mxu0
    %1275 = vdwg.mxu0
    %v1276 = vsel %vm864, -1e+09, %v1273
    %v1277 = vsel %vm183, %v1276, -inf
    %1278 = vmax.xlane.f32.xlu0 %v1277
    %v1279 = vpop.xlane.xlu0 %1278
    %v1280 = vsub.f32 %v1276, %v1279
    %v1281 = vmul.f32 %v1280, 1.442695
    %v1282 = vpow.pop %v1281
    %v1283 = vsel %vm183, %v1282, 0.0
    %1284 = vadd.xlane.f32.xlu0 %v1283
    %v1285 = vpop.xlane.xlu0 %1284
    %v1286 = vrcp.pop %v1285
    %v1287 = vmul.f32 %v1282, %v1286
    %1288 = vrot.lane.b32.xlu0 %v175, 48
    %v1289 = vpop.permute.xlu0 %1288
    %v1292 = vsel %vm183, %v1287, 0
    %1294 = vmatprep.subr.mxu0 0.0
    %1295 = vmatpush1.msra.mxu0 %v1289
    %1296 = vmatprep.subr.mxu0 0.0
    %1297 = vmatpush1.msra.mxu0 0.0
    %1298 = vmatprep.subr.mxu0 0.0
    %1299 = vmatpush1.msra.mxu0 0.0
    %1300 = vmatprep.subr.mxu0 0.0
    %1301 = vmatpush1.msra.mxu0 0.0
    %1302 = vmatprep.subr.mxu0 0.0
    %1303 = vmatpush1.msra.mxu0 0.0
    %1304 = vmatprep.subr.mxu0 0.0
    %1305 = vmatpush1.msra.mxu0 0.0
    %1306 = vmatprep.subr.mxu0 0.0
    %1307 = vmatpush1.msra.mxu0 0.0
    %1308 = vmatprep.subr.mxu0 0.0
    %1309 = vmatpush1.msra.mxu0 0.0
    %1310 = vmatprep.subr.mxu0 0.0
    %1311 = vmatpush1.msra.mxu0 0.0
    %1312 = vmatprep.subr.mxu0 0.0
    %1313 = vmatpush1.msra.mxu0 0.0
    %1314 = vmatprep.subr.mxu0 0.0
    %1315 = vmatpush1.msra.mxu0 0.0
    %1316 = vmatprep.subr.mxu0 0.0
    %1317 = vmatpush1.msra.mxu0 0.0
    %1318 = vmatprep.subr.mxu0 0.0
    %1319 = vmatpush1.msra.mxu0 0.0
    %1320 = vmatprep.subr.mxu0 0.0
    %1321 = vmatpush1.msra.mxu0 0.0
    %1322 = vmatprep.subr.mxu0 0.0
    %1323 = vmatpush1.msra.mxu0 0.0
    %1324 = vmatprep.subr.mxu0 0.0
    %1325 = vmatpush1.msra.mxu0 0.0
    %1326 = vmatprep.subr.mxu0 0.0
    %1327 = vmatpush1.msra.mxu0 0.0
    %1328 = vmatprep.subr.mxu0 0.0
    %1329 = vmatpush1.msra.mxu0 0.0
    %1330 = vmatprep.subr.mxu0 0.0
    %1331 = vmatpush1.msra.mxu0 0.0
    %1332 = vmatprep.subr.mxu0 0.0
    %1333 = vmatpush1.msra.mxu0 0.0
    %1334 = vmatprep.subr.mxu0 0.0
    %1335 = vmatpush1.msra.mxu0 0.0
    %1336 = vmatprep.subr.mxu0 0.0
    %1337 = vmatpush1.msra.mxu0 0.0
    %1338 = vmatprep.subr.mxu0 0.0
    %1339 = vmatpush1.msra.mxu0 0.0
    %1340 = vmatprep.subr.mxu0 0.0
    %1341 = vmatpush1.msra.mxu0 0.0
    %1342 = vmatprep.subr.mxu0 0.0
    %1343 = vmatpush1.msra.mxu0 0.0
    %1344 = vmatprep.subr.mxu0 0.0
    %1345 = vmatpush1.msra.mxu0 0.0
    %1346 = vmatprep.subr.mxu0 0.0
    %1347 = vmatpush1.msra.mxu0 0.0
    %1348 = vmatprep.subr.mxu0 0.0
    %1349 = vmatpush1.msra.mxu0 0.0
    %1350 = vmatprep.subr.mxu0 0.0
    %1351 = vmatpush1.msra.mxu0 0.0
    %1352 = vmatprep.subr.mxu0 0.0
    %1353 = vmatpush1.msra.mxu0 0.0
    %1354 = vmatprep.subr.mxu0 0.0
    %1355 = vmatpush1.msra.mxu0 0.0
    %1356 = vmatprep.subr.mxu0 0.0
    %1357 = vmatpush1.msra.mxu0 0.0
    %1358 = vmatprep.mubr.f32.mxu0 0.0
    %1359 = vmatmul.mubr.f32.gmra.mrb[0].mxu0 %v1292
    %v1360 = vpop.f32.mrb[0].mxu0
    %v1361 = vadd.f32 0.0, %v1360
    %v1362 = vpop.f32.mrb[0].mxu0
    %1363 = vdwg.mxu0
    %1364 = vst.msk [vmem:[#allocation2 + $0x30] sm:$0xff] %vm183, %v1361
    %1365 = vrot.lane.b32.xlu0 %v175, 104
    %v1366 = vpop.permute.xlu0 %1365
    %1367 = vrot.lane.b32.xlu0 %v175, 72
    %v1368 = vpop.permute.xlu0 %1367
    %v1369 = vsel %vm183, %v1366, 0
    %v1371 = vsel %vm183, %v1368, 0
    %1373 = vmatprep.subr.mxu0 0.0
    %1374 = vmatpush1.xpose.msra.mxu0 %v1371
    %1375 = vmatprep.subr.mxu0 0.0
    %1376 = vmatpush1.xpose.msra.mxu0 0.0
    %1377 = vmatprep.subr.mxu0 0.0
    %1378 = vmatpush1.xpose.msra.mxu0 0.0
    %1379 = vmatprep.subr.mxu0 0.0
    %1380 = vmatpush1.xpose.msra.mxu0 0.0
    %1381 = vmatprep.subr.mxu0 0.0
    %1382 = vmatpush1.xpose.msra.mxu0 0.0
    %1383 = vmatprep.subr.mxu0 0.0
    %1384 = vmatpush1.xpose.msra.mxu0 0.0
    %1385 = vmatprep.subr.mxu0 0.0
    %1386 = vmatpush1.xpose.msra.mxu0 0.0
    %1387 = vmatprep.subr.mxu0 0.0
    %1388 = vmatpush1.xpose.msra.mxu0 0.0
    %1389 = vmatprep.subr.mxu0 0.0
    %1390 = vmatpush1.xpose.msra.mxu0 0.0
    %1391 = vmatprep.subr.mxu0 0.0
    %1392 = vmatpush1.xpose.msra.mxu0 0.0
    %1393 = vmatprep.subr.mxu0 0.0
    %1394 = vmatpush1.xpose.msra.mxu0 0.0
    %1395 = vmatprep.subr.mxu0 0.0
    %1396 = vmatpush1.xpose.msra.mxu0 0.0
    %1397 = vmatprep.subr.mxu0 0.0
    %1398 = vmatpush1.xpose.msra.mxu0 0.0
    %1399 = vmatprep.subr.mxu0 0.0
    %1400 = vmatpush1.xpose.msra.mxu0 0.0
    %1401 = vmatprep.subr.mxu0 0.0
    %1402 = vmatpush1.xpose.msra.mxu0 0.0
    %1403 = vmatprep.subr.mxu0 0.0
    %1404 = vmatpush1.xpose.msra.mxu0 0.0
    %1405 = vmatprep.subr.mxu0 0.0
    %1406 = vmatpush1.xpose.msra.mxu0 0.0
    %1407 = vmatprep.subr.mxu0 0.0
    %1408 = vmatpush1.xpose.msra.mxu0 0.0
    %1409 = vmatprep.subr.mxu0 0.0
    %1410 = vmatpush1.xpose.msra.mxu0 0.0
    %1411 = vmatprep.subr.mxu0 0.0
    %1412 = vmatpush1.xpose.msra.mxu0 0.0
    %1413 = vmatprep.subr.mxu0 0.0
    %1414 = vmatpush1.xpose.msra.mxu0 0.0
    %1415 = vmatprep.subr.mxu0 0.0
    %1416 = vmatpush1.xpose.msra.mxu0 0.0
    %1417 = vmatprep.subr.mxu0 0.0
    %1418 = vmatpush1.xpose.msra.mxu0 0.0
    %1419 = vmatprep.subr.mxu0 0.0
    %1420 = vmatpush1.xpose.msra.mxu0 0.0
    %1421 = vmatprep.subr.mxu0 0.0
    %1422 = vmatpush1.xpose.msra.mxu0 0.0
    %1423 = vmatprep.subr.mxu0 0.0
    %1424 = vmatpush1.xpose.msra.mxu0 0.0
    %1425 = vmatprep.subr.mxu0 0.0
    %1426 = vmatpush1.xpose.msra.mxu0 0.0
    %1427 = vmatprep.subr.mxu0 0.0
    %1428 = vmatpush1.xpose.msra.mxu0 0.0
    %1429 = vmatprep.subr.mxu0 0.0
    %1430 = vmatpush1.xpose.msra.mxu0 0.0
    %1431 = vmatprep.subr.mxu0 0.0
    %1432 = vmatpush1.xpose.msra.mxu0 0.0
    %1433 = vmatprep.subr.mxu0 0.0
    %1434 = vmatpush1.xpose.msra.mxu0 0.0
    %1435 = vmatprep.subr.mxu0 0.0
    %1436 = vmatpush1.xpose.msra.mxu0 0.0
    %1437 = vmatprep.mubr.f32.mxu0 0.0
    %1438 = vmatmul.mubr.f32.gmra.mrb[0].mxu0 %v1369
    %v1439 = vpop.f32.mrb[0].mxu0
    %v1440 = vadd.f32 0.0, %v1439
    %v1441 = vpop.f32.mrb[0].mxu0
    %1442 = vdwg.mxu0
    %v1443 = vsel %vm864, -1e+09, %v1440
    %v1444 = vsel %vm183, %v1443, -inf
    %1445 = vmax.xlane.f32.xlu0 %v1444
    %v1446 = vpop.xlane.xlu0 %1445
    %v1447 = vsub.f32 %v1443, %v1446
    %v1448 = vmul.f32 %v1447, 1.442695
    %v1449 = vpow.pop %v1448
    %v1450 = vsel %vm183, %v1449, 0.0
    %1451 = vadd.xlane.f32.xlu0 %v1450
    %v1452 = vpop.xlane.xlu0 %1451
    %v1453 = vrcp.pop %v1452
    %v1454 = vmul.f32 %v1449, %v1453
    %1455 = vrot.lane.b32.xlu0 %v175, 40
    %v1456 = vpop.permute.xlu0 %1455
    %v1459 = vsel %vm183, %v1454, 0
    %1461 = vmatprep.subr.mxu0 0.0
    %1462 = vmatpush1.msra.mxu0 %v1456
    %1463 = vmatprep.subr.mxu0 0.0
    %1464 = vmatpush1.msra.mxu0 0.0
    %1465 = vmatprep.subr.mxu0 0.0
    %1466 = vmatpush1.msra.mxu0 0.0
    %1467 = vmatprep.subr.mxu0 0.0
    %1468 = vmatpush1.msra.mxu0 0.0
    %1469 = vmatprep.subr.mxu0 0.0
    %1470 = vmatpush1.msra.mxu0 0.0
    %1471 = vmatprep.subr.mxu0 0.0
    %1472 = vmatpush1.msra.mxu0 0.0
    %1473 = vmatprep.subr.mxu0 0.0
    %1474 = vmatpush1.msra.mxu0 0.0
    %1475 = vmatprep.subr.mxu0 0.0
    %1476 = vmatpush1.msra.mxu0 0.0
    %1477 = vmatprep.subr.mxu0 0.0
    %1478 = vmatpush1.msra.mxu0 0.0
    %1479 = vmatprep.subr.mxu0 0.0
    %1480 = vmatpush1.msra.mxu0 0.0
    %1481 = vmatprep.subr.mxu0 0.0
    %1482 = vmatpush1.msra.mxu0 0.0
    %1483 = vmatprep.subr.mxu0 0.0
    %1484 = vmatpush1.msra.mxu0 0.0
    %1485 = vmatprep.subr.mxu0 0.0
    %1486 = vmatpush1.msra.mxu0 0.0
    %1487 = vmatprep.subr.mxu0 0.0
    %1488 = vmatpush1.msra.mxu0 0.0
    %1489 = vmatprep.subr.mxu0 0.0
    %1490 = vmatpush1.msra.mxu0 0.0
    %1491 = vmatprep.subr.mxu0 0.0
    %1492 = vmatpush1.msra.mxu0 0.0
    %1493 = vmatprep.subr.mxu0 0.0
    %1494 = vmatpush1.msra.mxu0 0.0
    %1495 = vmatprep.subr.mxu0 0.0
    %1496 = vmatpush1.msra.mxu0 0.0
    %1497 = vmatprep.subr.mxu0 0.0
    %1498 = vmatpush1.msra.mxu0 0.0
    %1499 = vmatprep.subr.mxu0 0.0
    %1500 = vmatpush1.msra.mxu0 0.0
    %1501 = vmatprep.subr.mxu0 0.0
    %1502 = vmatpush1.msra.mxu0 0.0
    %1503 = vmatprep.subr.mxu0 0.0
    %1504 = vmatpush1.msra.mxu0 0.0
    %1505 = vmatprep.subr.mxu0 0.0
    %1506 = vmatpush1.msra.mxu0 0.0
    %1507 = vmatprep.subr.mxu0 0.0
    %1508 = vmatpush1.msra.mxu0 0.0
    %1509 = vmatprep.subr.mxu0 0.0
    %1510 = vmatpush1.msra.mxu0 0.0
    %1511 = vmatprep.subr.mxu0 0.0
    %1512 = vmatpush1.msra.mxu0 0.0
    %1513 = vmatprep.subr.mxu0 0.0
    %1514 = vmatpush1.msra.mxu0 0.0
    %1515 = vmatprep.subr.mxu0 0.0
    %1516 = vmatpush1.msra.mxu0 0.0
    %1517 = vmatprep.subr.mxu0 0.0
    %1518 = vmatpush1.msra.mxu0 0.0
    %1519 = vmatprep.subr.mxu0 0.0
    %1520 = vmatpush1.msra.mxu0 0.0
    %1521 = vmatprep.subr.mxu0 0.0
    %1522 = vmatpush1.msra.mxu0 0.0
    %1523 = vmatprep.subr.mxu0 0.0
    %1524 = vmatpush1.msra.mxu0 0.0
    %1525 = vmatprep.mubr.f32.mxu0 0.0
    %1526 = vmatmul.mubr.f32.gmra.mrb[0].mxu0 %v1459
    %v1527 = vpop.f32.mrb[0].mxu0
    %v1528 = vadd.f32 0.0, %v1527
    %v1529 = vpop.f32.mrb[0].mxu0
    %1530 = vdwg.mxu0
    %1531 = vst.msk [vmem:[#allocation2 + $0x38] sm:$0xff] %vm183, %v1528
    %1532 = vrot.lane.b32.xlu0 %v1120, 8
    %v1533 = vpop.permute.xlu0 %1532
    %1535 = vrot.lane.b32.xlu0 %v1287, 16
    %v1536 = vpop.permute.xlu0 %1535
    %1538 = vrot.lane.b32.xlu0 %v1454, 24
    %v1539 = vpop.permute.xlu0 %1538
    %v1541 = vsel %vm183, %v953, %v1533
    %v1542 = vsel %vm858, %v1541, %v1536
    %v1543 = vsel %vm860, %v1542, %v1539
    %v1544 = vld [vmem:[#allocation2] ss:$4 sm:$0xff]
    %s1545 = scalar_lea.vmem [#allocation2], 1
    %v1546 = vld [vmem:[%s1545] ss:$4 sm:$0xff]
    %s1547 = scalar_lea.vmem [#allocation2], 2
    %v1548 = vld [vmem:[%s1547] ss:$4 sm:$0xff]
    %s1549 = scalar_lea.vmem [#allocation2], 3
    %v1550 = vld [vmem:[%s1549] ss:$4 sm:$0xff]
    %1552 = vrot.lane.b32.xlu0 %v1546, 8
    %v1553 = vpop.permute.xlu0 %1552
    %1556 = vrot.lane.b32.xlu0 %v1548, 16
    %v1557 = vpop.permute.xlu0 %1556
    %1560 = vrot.lane.b32.xlu0 %v1550, 24
    %v1561 = vpop.permute.xlu0 %1560
    %v1563 = vsel %vm183, %v1544, %v1553
    %v1564 = vsel %vm858, %v1563, %v1557
    %v1565 = vsel %vm860, %v1564, %v1561
    %s1566 = scalar_lea.vmem [#allocation2], 32
    %v1567 = vld [vmem:[%s1566] ss:$4 sm:$0xff]
    %s1568 = scalar_lea.vmem [#allocation2], 33
    %v1569 = vld [vmem:[%s1568] ss:$4 sm:$0xff]
    %s1570 = scalar_lea.vmem [#allocation2], 34
    %v1571 = vld [vmem:[%s1570] ss:$4 sm:$0xff]
    %s1572 = scalar_lea.vmem [#allocation2], 35
    %v1573 = vld [vmem:[%s1572] ss:$4 sm:$0xff]
    %1575 = vrot.lane.b32.xlu0 %v1569, 8
    %v1576 = vpop.permute.xlu0 %1575
    %1579 = vrot.lane.b32.xlu0 %v1571, 16
    %v1580 = vpop.permute.xlu0 %1579
    %1583 = vrot.lane.b32.xlu0 %v1573, 24
    %v1584 = vpop.permute.xlu0 %1583
    %v1586 = vsel %vm183, %v1567, %v1576
    %v1587 = vsel %vm858, %v1586, %v1580
    %v1588 = vsel %vm860, %v1587, %v1584
    %v1589 = vld [vmem:[%s6] sm:$0xff]
    %v1590 = vld [vmem:[%s6 + $0x8] sm:$0xff]
    %v1591 = vld [vmem:[%s6 + $0x10] sm:$0xff]
    %v1592 = vld [vmem:[%s6 + $0x18] sm:$0xff]
    %v1593 = vld [vmem:[%s7] sm:$0x1]
    %v1595 = vlaneseq
    %v1596 = vshrl.u32 %v1595, 7
    %v1597 = vsub.s32 0, %v1596
    %v1598 = vrot.slane %v1593, %v1597
    %v1601 = vsel %vm96, %v1565, 0
    %v1604 = vsel %vm96, %v1588, 0
    %1606 = vmatprep.subr.mxu0 0.0
    %1607 = vmatpush1.msra.mxu0 %v1589
    %1608 = vmatprep.subr.mxu0 0.0
    %1609 = vmatpush1.msra.mxu0 %v1590
    %1610 = vmatprep.subr.mxu0 0.0
    %1611 = vmatpush1.msra.mxu0 %v1591
    %1612 = vmatprep.subr.mxu0 0.0
    %1613 = vmatpush1.msra.mxu0 %v1592
    %1614 = vmatprep.subr.mxu0 0.0
    %1615 = vmatpush1.msra.mxu0 0.0
    %1616 = vmatprep.subr.mxu0 0.0
    %1617 = vmatpush1.msra.mxu0 0.0
    %1618 = vmatprep.subr.mxu0 0.0
    %1619 = vmatpush1.msra.mxu0 0.0
    %1620 = vmatprep.subr.mxu0 0.0
    %1621 = vmatpush1.msra.mxu0 0.0
    %1622 = vmatprep.subr.mxu0 0.0
    %1623 = vmatpush1.msra.mxu0 0.0
    %1624 = vmatprep.subr.mxu0 0.0
    %1625 = vmatpush1.msra.mxu0 0.0
    %1626 = vmatprep.subr.mxu0 0.0
    %1627 = vmatpush1.msra.mxu0 0.0
    %1628 = vmatprep.subr.mxu0 0.0
    %1629 = vmatpush1.msra.mxu0 0.0
    %1630 = vmatprep.subr.mxu0 0.0
    %1631 = vmatpush1.msra.mxu0 0.0
    %1632 = vmatprep.subr.mxu0 0.0
    %1633 = vmatpush1.msra.mxu0 0.0
    %1634 = vmatprep.subr.mxu0 0.0
    %1635 = vmatpush1.msra.mxu0 0.0
    %1636 = vmatprep.subr.mxu0 0.0
    %1637 = vmatpush1.msra.mxu0 0.0
    %1638 = vmatprep.subr.mxu0 0.0
    %1639 = vmatpush1.msra.mxu0 0.0
    %1640 = vmatprep.subr.mxu0 0.0
    %1641 = vmatpush1.msra.mxu0 0.0
    %1642 = vmatprep.subr.mxu0 0.0
    %1643 = vmatpush1.msra.mxu0 0.0
    %1644 = vmatprep.subr.mxu0 0.0
    %1645 = vmatpush1.msra.mxu0 0.0
    %1646 = vmatprep.subr.mxu0 0.0
    %1647 = vmatpush1.msra.mxu0 0.0
    %1648 = vmatprep.subr.mxu0 0.0
    %1649 = vmatpush1.msra.mxu0 0.0
    %1650 = vmatprep.subr.mxu0 0.0
    %1651 = vmatpush1.msra.mxu0 0.0
    %1652 = vmatprep.subr.mxu0 0.0
    %1653 = vmatpush1.msra.mxu0 0.0
    %1654 = vmatprep.subr.mxu0 0.0
    %1655 = vmatpush1.msra.mxu0 0.0
    %1656 = vmatprep.subr.mxu0 0.0
    %1657 = vmatpush1.msra.mxu0 0.0
    %1658 = vmatprep.subr.mxu0 0.0
    %1659 = vmatpush1.msra.mxu0 0.0
    %1660 = vmatprep.subr.mxu0 0.0
    %1661 = vmatpush1.msra.mxu0 0.0
    %1662 = vmatprep.subr.mxu0 0.0
    %1663 = vmatpush1.msra.mxu0 0.0
    %1664 = vmatprep.subr.mxu0 0.0
    %1665 = vmatpush1.msra.mxu0 0.0
    %1666 = vmatprep.subr.mxu0 0.0
    %1667 = vmatpush1.msra.mxu0 0.0
    %1668 = vmatprep.subr.mxu0 0.0
    %1669 = vmatpush1.msra.mxu0 0.0
    %1670 = vmatprep.mubr.f32.mxu0 0.0
    %1671 = vmatmul.mubr.f32.gmra.mrb[0].mxu0 %v1601
    %v1672 = vpop.f32.mrb[0].mxu0
    %v1673 = vadd.f32 %v1598, %v1672
    %v1674 = vpop.f32.mrb[0].mxu0
    %1675 = vmatprep.mubr.f32.mxu0 0.0
    %1676 = vmatmul.mubr.f32.gmra.mrb[0].mxu0 %v1604
    %v1677 = vpop.f32.mrb[0].mxu0
    %v1678 = vadd.f32 %v1598, %v1677
    %v1679 = vpop.f32.mrb[0].mxu0
    %1680 = vdwg.mxu0
    %1681 = vst.msk [vmem:[%s24] sm:$0xff] %vm96, %v861
    %1682 = vst.msk [vmem:[%s24 + $0x8] sm:$0xff] %vm96, %v1543
    %v1683 = vadd.f32 %v1673, %v81
    %v1684 = vadd.f32 %v1678, %v82
    %v1685 = vsel %vm96, %v1683, 0.0
    %1686 = vadd.xlane.f32.xlu0 %v1685
    %v1687 = vpop.xlane.xlu0 %1686
    %v1688 = vsel %vm96, %v1684, 0.0
    %1689 = vadd.xlane.f32.xlu0 %v1688
    %v1690 = vpop.xlane.xlu0 %1689
    %v1691 = vrcp.pop 32.0
    %v1692 = vmul.f32 %v1687, %v1691
    %v1693 = vmul.f32 %v1690, %v1691
    %v1694 = vsub.f32 %v1683, %v1692
    %v1695 = vsub.f32 %v1684, %v1693
    %v1696 = vmul.f32 %v1694, %v1694
    %v1697 = vmul.f32 %v1695, %v1695
    %v1698 = vsel %vm96, %v1696, 0.0
    %1699 = vadd.xlane.f32.xlu0 %v1698
    %v1700 = vpop.xlane.xlu0 %1699
    %v1701 = vsel %vm96, %v1697, 0.0
    %1702 = vadd.xlane.f32.xlu0 %v1701
    %v1703 = vpop.xlane.xlu0 %1702
    %v1704 = vmul.f32 %v1700, %v1691
    %v1705 = vmul.f32 %v1703, %v1691
    %v1706 = vadd.f32 %v1704, 1e-05
    %v1707 = vadd.f32 %v1705, 1e-05
    %v1708 = vrsqrt.pop %v1706
    %v1709 = vrsqrt.pop %v1707
    %v1710 = vmul.f32 %v1694, %v1708
    %v1711 = vmul.f32 %v1695, %v1709
    %v1712 = vld [vmem:[%s8] sm:$0x1]
    %v1714 = vlaneseq
    %v1715 = vshrl.u32 %v1714, 7
    %v1716 = vsub.s32 0, %v1715
    %v1717 = vrot.slane %v1712, %v1716
    %v1719 = vmul.f32 %v1710, %v1717
    %v1720 = vmul.f32 %v1711, %v1717
    %v1721 = vld [vmem:[%s9] sm:$0x1]
    %v1723 = vlaneseq
    %v1724 = vshrl.u32 %v1723, 7
    %v1725 = vsub.s32 0, %v1724
    %v1726 = vrot.slane %v1721, %v1725
    %v1728 = vadd.f32 %v1719, %v1726
    %v1729 = vadd.f32 %v1720, %v1726
    %v1730 = vld [vmem:[%s10] sm:$0xff]
    %v1731 = vld [vmem:[%s10 + $0x8] sm:$0xff]
    %v1732 = vld [vmem:[%s10 + $0x10] sm:$0xff]
    %v1733 = vld [vmem:[%s10 + $0x18] sm:$0xff]
    %v1734 = vld [vmem:[%s11] sm:$0x1]
    %v1736 = vlaneseq
    %v1737 = vshrl.u32 %v1736, 7
    %v1738 = vsub.s32 0, %v1737
    %v1739 = vrot.slane %v1734, %v1738
    %v1742 = vsel %vm96, %v1728, 0
    %v1745 = vsel %vm96, %v1729, 0
    %1747 = vmatprep.subr.mxu0 0.0
    %1748 = vmatpush1.msra.mxu0 %v1730
    %1749 = vmatprep.subr.mxu0 0.0
    %1750 = vmatpush1.msra.mxu0 %v1731
    %1751 = vmatprep.subr.mxu0 0.0
    %1752 = vmatpush1.msra.mxu0 %v1732
    %1753 = vmatprep.subr.mxu0 0.0
    %1754 = vmatpush1.msra.mxu0 %v1733
    %1755 = vmatprep.subr.mxu0 0.0
    %1756 = vmatpush1.msra.mxu0 0.0
    %1757 = vmatprep.subr.mxu0 0.0
    %1758 = vmatpush1.msra.mxu0 0.0
    %1759 = vmatprep.subr.mxu0 0.0
    %1760 = vmatpush1.msra.mxu0 0.0
    %1761 = vmatprep.subr.mxu0 0.0
    %1762 = vmatpush1.msra.mxu0 0.0
    %1763 = vmatprep.subr.mxu0 0.0
    %1764 = vmatpush1.msra.mxu0 0.0
    %1765 = vmatprep.subr.mxu0 0.0
    %1766 = vmatpush1.msra.mxu0 0.0
    %1767 = vmatprep.subr.mxu0 0.0
    %1768 = vmatpush1.msra.mxu0 0.0
    %1769 = vmatprep.subr.mxu0 0.0
    %1770 = vmatpush1.msra.mxu0 0.0
    %1771 = vmatprep.subr.mxu0 0.0
    %1772 = vmatpush1.msra.mxu0 0.0
    %1773 = vmatprep.subr.mxu0 0.0
    %1774 = vmatpush1.msra.mxu0 0.0
    %1775 = vmatprep.subr.mxu0 0.0
    %1776 = vmatpush1.msra.mxu0 0.0
    %1777 = vmatprep.subr.mxu0 0.0
    %1778 = vmatpush1.msra.mxu0 0.0
    %1779 = vmatprep.subr.mxu0 0.0
    %1780 = vmatpush1.msra.mxu0 0.0
    %1781 = vmatprep.subr.mxu0 0.0
    %1782 = vmatpush1.msra.mxu0 0.0
    %1783 = vmatprep.subr.mxu0 0.0
    %1784 = vmatpush1.msra.mxu0 0.0
    %1785 = vmatprep.subr.mxu0 0.0
    %1786 = vmatpush1.msra.mxu0 0.0
    %1787 = vmatprep.subr.mxu0 0.0
    %1788 = vmatpush1.msra.mxu0 0.0
    %1789 = vmatprep.subr.mxu0 0.0
    %1790 = vmatpush1.msra.mxu0 0.0
    %1791 = vmatprep.subr.mxu0 0.0
    %1792 = vmatpush1.msra.mxu0 0.0
    %1793 = vmatprep.subr.mxu0 0.0
    %1794 = vmatpush1.msra.mxu0 0.0
    %1795 = vmatprep.subr.mxu0 0.0
    %1796 = vmatpush1.msra.mxu0 0.0
    %1797 = vmatprep.subr.mxu0 0.0
    %1798 = vmatpush1.msra.mxu0 0.0
    %1799 = vmatprep.subr.mxu0 0.0
    %1800 = vmatpush1.msra.mxu0 0.0
    %1801 = vmatprep.subr.mxu0 0.0
    %1802 = vmatpush1.msra.mxu0 0.0
    %1803 = vmatprep.subr.mxu0 0.0
    %1804 = vmatpush1.msra.mxu0 0.0
    %1805 = vmatprep.subr.mxu0 0.0
    %1806 = vmatpush1.msra.mxu0 0.0
    %1807 = vmatprep.subr.mxu0 0.0
    %1808 = vmatpush1.msra.mxu0 0.0
    %1809 = vmatprep.subr.mxu0 0.0
    %1810 = vmatpush1.msra.mxu0 0.0
    %1811 = vmatprep.mubr.f32.mxu0 0.0
    %1812 = vmatmul.mubr.f32.gmra.mrb[0].mxu0 %v1742
    %v1813 = vpop.f32.mrb[0].mxu0
    %v1814 = vadd.f32 %v1739, %v1813
    %v1815 = vpop.f32.mrb[0].mxu0
    %1816 = vmatprep.mubr.f32.mxu0 0.0
    %1817 = vmatmul.mubr.f32.gmra.mrb[0].mxu0 %v1745
    %v1818 = vpop.f32.mrb[0].mxu0
    %v1819 = vadd.f32 %v1739, %v1818
    %v1820 = vpop.f32.mrb[0].mxu0
    %1821 = vdwg.mxu0
    %v1822 = vld [vmem:[%s12] sm:$0xff]
    %v1823 = vld [vmem:[%s12 + $0x8] sm:$0xff]
    %v1824 = vld [vmem:[%s12 + $0x10] sm:$0xff]
    %v1825 = vld [vmem:[%s12 + $0x18] sm:$0xff]
    %v1826 = vld [vmem:[%s13] sm:$0x1]
    %v1828 = vlaneseq
    %v1829 = vshrl.u32 %v1828, 7
    %v1830 = vsub.s32 0, %v1829
    %v1831 = vrot.slane %v1826, %v1830
    %v1834 = vsel %vm96, %v83, 0
    %v1837 = vsel %vm96, %v84, 0
    %1839 = vmatprep.subr.mxu0 0.0
    %1840 = vmatpush1.msra.mxu0 %v1822
    %1841 = vmatprep.subr.mxu0 0.0
    %1842 = vmatpush1.msra.mxu0 %v1823
    %1843 = vmatprep.subr.mxu0 0.0
    %1844 = vmatpush1.msra.mxu0 %v1824
    %1845 = vmatprep.subr.mxu0 0.0
    %1846 = vmatpush1.msra.mxu0 %v1825
    %1847 = vmatprep.subr.mxu0 0.0
    %1848 = vmatpush1.msra.mxu0 0.0
    %1849 = vmatprep.subr.mxu0 0.0
    %1850 = vmatpush1.msra.mxu0 0.0
    %1851 = vmatprep.subr.mxu0 0.0
    %1852 = vmatpush1.msra.mxu0 0.0
    %1853 = vmatprep.subr.mxu0 0.0
    %1854 = vmatpush1.msra.mxu0 0.0
    %1855 = vmatprep.subr.mxu0 0.0
    %1856 = vmatpush1.msra.mxu0 0.0
    %1857 = vmatprep.subr.mxu0 0.0
    %1858 = vmatpush1.msra.mxu0 0.0
    %1859 = vmatprep.subr.mxu0 0.0
    %1860 = vmatpush1.msra.mxu0 0.0
    %1861 = vmatprep.subr.mxu0 0.0
    %1862 = vmatpush1.msra.mxu0 0.0
    %1863 = vmatprep.subr.mxu0 0.0
    %1864 = vmatpush1.msra.mxu0 0.0
    %1865 = vmatprep.subr.mxu0 0.0
    %1866 = vmatpush1.msra.mxu0 0.0
    %1867 = vmatprep.subr.mxu0 0.0
    %1868 = vmatpush1.msra.mxu0 0.0
    %1869 = vmatprep.subr.mxu0 0.0
    %1870 = vmatpush1.msra.mxu0 0.0
    %1871 = vmatprep.subr.mxu0 0.0
    %1872 = vmatpush1.msra.mxu0 0.0
    %1873 = vmatprep.subr.mxu0 0.0
    %1874 = vmatpush1.msra.mxu0 0.0
    %1875 = vmatprep.subr.mxu0 0.0
    %1876 = vmatpush1.msra.mxu0 0.0
    %1877 = vmatprep.subr.mxu0 0.0
    %1878 = vmatpush1.msra.mxu0 0.0
    %1879 = vmatprep.subr.mxu0 0.0
    %1880 = vmatpush1.msra.mxu0 0.0
    %1881 = vmatprep.subr.mxu0 0.0
    %1882 = vmatpush1.msra.mxu0 0.0
    %1883 = vmatprep.subr.mxu0 0.0
    %1884 = vmatpush1.msra.mxu0 0.0
    %1885 = vmatprep.subr.mxu0 0.0
    %1886 = vmatpush1.msra.mxu0 0.0
    %1887 = vmatprep.subr.mxu0 0.0
    %1888 = vmatpush1.msra.mxu0 0.0
    %1889 = vmatprep.subr.mxu0 0.0
    %1890 = vmatpush1.msra.mxu0 0.0
    %1891 = vmatprep.subr.mxu0 0.0
    %1892 = vmatpush1.msra.mxu0 0.0
    %1893 = vmatprep.subr.mxu0 0.0
    %1894 = vmatpush1.msra.mxu0 0.0
    %1895 = vmatprep.subr.mxu0 0.0
    %1896 = vmatpush1.msra.mxu0 0.0
    %1897 = vmatprep.subr.mxu0 0.0
    %1898 = vmatpush1.msra.mxu0 0.0
    %1899 = vmatprep.subr.mxu0 0.0
    %1900 = vmatpush1.msra.mxu0 0.0
    %1901 = vmatprep.subr.mxu0 0.0
    %1902 = vmatpush1.msra.mxu0 0.0
    %1903 = vmatprep.mubr.f32.mxu0 0.0
    %1904 = vmatmul.mubr.f32.gmra.mrb[0].mxu0 %v1834
    %v1905 = vpop.f32.mrb[0].mxu0
    %v1906 = vadd.f32 %v1831, %v1905
    %v1907 = vpop.f32.mrb[0].mxu0
    %1908 = vmatprep.mubr.f32.mxu0 0.0
    %1909 = vmatmul.mubr.f32.gmra.mrb[0].mxu0 %v1837
    %v1910 = vpop.f32.mrb[0].mxu0
    %v1911 = vadd.f32 %v1831, %v1910
    %v1912 = vpop.f32.mrb[0].mxu0
    %1913 = vdwg.mxu0
    %v1914 = vld [vmem:[%s3] sm:$0xff]
    %vm1915 = vcmp.ne.s32.totalorder %v1914, 0
    %v1917 = vsel %vm183, %v1814, 0
    %v1920 = vsel %vm183, %v1906, 0
    %1922 = vmatprep.subr.mxu0 0.0
    %1923 = vmatpush1.xpose.msra.mxu0 %v1920
    %1924 = vmatprep.subr.mxu0 0.0
    %1925 = vmatpush1.xpose.msra.mxu0 0.0
    %1926 = vmatprep.subr.mxu0 0.0
    %1927 = vmatpush1.xpose.msra.mxu0 0.0
    %1928 = vmatprep.subr.mxu0 0.0
    %1929 = vmatpush1.xpose.msra.mxu0 0.0
    %1930 = vmatprep.subr.mxu0 0.0
    %1931 = vmatpush1.xpose.msra.mxu0 0.0
    %1932 = vmatprep.subr.mxu0 0.0
    %1933 = vmatpush1.xpose.msra.mxu0 0.0
    %1934 = vmatprep.subr.mxu0 0.0
    %1935 = vmatpush1.xpose.msra.mxu0 0.0
    %1936 = vmatprep.subr.mxu0 0.0
    %1937 = vmatpush1.xpose.msra.mxu0 0.0
    %1938 = vmatprep.subr.mxu0 0.0
    %1939 = vmatpush1.xpose.msra.mxu0 0.0
    %1940 = vmatprep.subr.mxu0 0.0
    %1941 = vmatpush1.xpose.msra.mxu0 0.0
    %1942 = vmatprep.subr.mxu0 0.0
    %1943 = vmatpush1.xpose.msra.mxu0 0.0
    %1944 = vmatprep.subr.mxu0 0.0
    %1945 = vmatpush1.xpose.msra.mxu0 0.0
    %1946 = vmatprep.subr.mxu0 0.0
    %1947 = vmatpush1.xpose.msra.mxu0 0.0
    %1948 = vmatprep.subr.mxu0 0.0
    %1949 = vmatpush1.xpose.msra.mxu0 0.0
    %1950 = vmatprep.subr.mxu0 0.0
    %1951 = vmatpush1.xpose.msra.mxu0 0.0
    %1952 = vmatprep.subr.mxu0 0.0
    %1953 = vmatpush1.xpose.msra.mxu0 0.0
    %1954 = vmatprep.subr.mxu0 0.0
    %1955 = vmatpush1.xpose.msra.mxu0 0.0
    %1956 = vmatprep.subr.mxu0 0.0
    %1957 = vmatpush1.xpose.msra.mxu0 0.0
    %1958 = vmatprep.subr.mxu0 0.0
    %1959 = vmatpush1.xpose.msra.mxu0 0.0
    %1960 = vmatprep.subr.mxu0 0.0
    %1961 = vmatpush1.xpose.msra.mxu0 0.0
    %1962 = vmatprep.subr.mxu0 0.0
    %1963 = vmatpush1.xpose.msra.mxu0 0.0
    %1964 = vmatprep.subr.mxu0 0.0
    %1965 = vmatpush1.xpose.msra.mxu0 0.0
    %1966 = vmatprep.subr.mxu0 0.0
    %1967 = vmatpush1.xpose.msra.mxu0 0.0
    %1968 = vmatprep.subr.mxu0 0.0
    %1969 = vmatpush1.xpose.msra.mxu0 0.0
    %1970 = vmatprep.subr.mxu0 0.0
    %1971 = vmatpush1.xpose.msra.mxu0 0.0
    %1972 = vmatprep.subr.mxu0 0.0
    %1973 = vmatpush1.xpose.msra.mxu0 0.0
    %1974 = vmatprep.subr.mxu0 0.0
    %1975 = vmatpush1.xpose.msra.mxu0 0.0
    %1976 = vmatprep.subr.mxu0 0.0
    %1977 = vmatpush1.xpose.msra.mxu0 0.0
    %1978 = vmatprep.subr.mxu0 0.0
    %1979 = vmatpush1.xpose.msra.mxu0 0.0
    %1980 = vmatprep.subr.mxu0 0.0
    %1981 = vmatpush1.xpose.msra.mxu0 0.0
    %1982 = vmatprep.subr.mxu0 0.0
    %1983 = vmatpush1.xpose.msra.mxu0 0.0
    %1984 = vmatprep.subr.mxu0 0.0
    %1985 = vmatpush1.xpose.msra.mxu0 0.0
    %1986 = vmatprep.mubr.f32.mxu0 0.0
    %1987 = vmatmul.mubr.f32.gmra.mrb[0].mxu0 %v1917
    %v1988 = vpop.f32.mrb[0].mxu0
    %v1989 = vadd.f32 0.0, %v1988
    %v1990 = vpop.f32.mrb[0].mxu0
    %1991 = vdwg.mxu0
    %v1992 = vsel %vm1915, -1e+09, %v1989
    %v1993 = vsel %vm183, %v1992, -inf
    %1994 = vmax.xlane.f32.xlu0 %v1993
    %v1995 = vpop.xlane.xlu0 %1994
    %v1996 = vsub.f32 %v1992, %v1995
    %v1997 = vmul.f32 %v1996, 1.442695
    %v1998 = vpow.pop %v1997
    %v1999 = vsel %vm183, %v1998, 0.0
    %2000 = vadd.xlane.f32.xlu0 %v1999
    %v2001 = vpop.xlane.xlu0 %2000
    %v2002 = vrcp.pop %v2001
    %v2003 = vmul.f32 %v1998, %v2002
    %2004 = vrot.lane.b32.xlu0 %v1906, 96
    %v2005 = vpop.permute.xlu0 %2004
    %v2008 = vsel %vm183, %v2003, 0
    %2010 = vmatprep.subr.mxu0 0.0
    %2011 = vmatpush1.msra.mxu0 %v2005
    %2012 = vmatprep.subr.mxu0 0.0
    %2013 = vmatpush1.msra.mxu0 0.0
    %2014 = vmatprep.subr.mxu0 0.0
    %2015 = vmatpush1.msra.mxu0 0.0
    %2016 = vmatprep.subr.mxu0 0.0
    %2017 = vmatpush1.msra.mxu0 0.0
    %2018 = vmatprep.subr.mxu0 0.0
    %2019 = vmatpush1.msra.mxu0 0.0
    %2020 = vmatprep.subr.mxu0 0.0
    %2021 = vmatpush1.msra.mxu0 0.0
    %2022 = vmatprep.subr.mxu0 0.0
    %2023 = vmatpush1.msra.mxu0 0.0
    %2024 = vmatprep.subr.mxu0 0.0
    %2025 = vmatpush1.msra.mxu0 0.0
    %2026 = vmatprep.subr.mxu0 0.0
    %2027 = vmatpush1.msra.mxu0 0.0
    %2028 = vmatprep.subr.mxu0 0.0
    %2029 = vmatpush1.msra.mxu0 0.0
    %2030 = vmatprep.subr.mxu0 0.0
    %2031 = vmatpush1.msra.mxu0 0.0
    %2032 = vmatprep.subr.mxu0 0.0
    %2033 = vmatpush1.msra.mxu0 0.0
    %2034 = vmatprep.subr.mxu0 0.0
    %2035 = vmatpush1.msra.mxu0 0.0
    %2036 = vmatprep.subr.mxu0 0.0
    %2037 = vmatpush1.msra.mxu0 0.0
    %2038 = vmatprep.subr.mxu0 0.0
    %2039 = vmatpush1.msra.mxu0 0.0
    %2040 = vmatprep.subr.mxu0 0.0
    %2041 = vmatpush1.msra.mxu0 0.0
    %2042 = vmatprep.subr.mxu0 0.0
    %2043 = vmatpush1.msra.mxu0 0.0
    %2044 = vmatprep.subr.mxu0 0.0
    %2045 = vmatpush1.msra.mxu0 0.0
    %2046 = vmatprep.subr.mxu0 0.0
    %2047 = vmatpush1.msra.mxu0 0.0
    %2048 = vmatprep.subr.mxu0 0.0
    %2049 = vmatpush1.msra.mxu0 0.0
    %2050 = vmatprep.subr.mxu0 0.0
    %2051 = vmatpush1.msra.mxu0 0.0
    %2052 = vmatprep.subr.mxu0 0.0
    %2053 = vmatpush1.msra.mxu0 0.0
    %2054 = vmatprep.subr.mxu0 0.0
    %2055 = vmatpush1.msra.mxu0 0.0
    %2056 = vmatprep.subr.mxu0 0.0
    %2057 = vmatpush1.msra.mxu0 0.0
    %2058 = vmatprep.subr.mxu0 0.0
    %2059 = vmatpush1.msra.mxu0 0.0
    %2060 = vmatprep.subr.mxu0 0.0
    %2061 = vmatpush1.msra.mxu0 0.0
    %2062 = vmatprep.subr.mxu0 0.0
    %2063 = vmatpush1.msra.mxu0 0.0
    %2064 = vmatprep.subr.mxu0 0.0
    %2065 = vmatpush1.msra.mxu0 0.0
    %2066 = vmatprep.subr.mxu0 0.0
    %2067 = vmatpush1.msra.mxu0 0.0
    %2068 = vmatprep.subr.mxu0 0.0
    %2069 = vmatpush1.msra.mxu0 0.0
    %2070 = vmatprep.subr.mxu0 0.0
    %2071 = vmatpush1.msra.mxu0 0.0
    %2072 = vmatprep.subr.mxu0 0.0
    %2073 = vmatpush1.msra.mxu0 0.0
    %2074 = vmatprep.mubr.f32.mxu0 0.0
    %2075 = vmatmul.mubr.f32.gmra.mrb[0].mxu0 %v2008
    %v2076 = vpop.f32.mrb[0].mxu0
    %v2077 = vadd.f32 0.0, %v2076
    %v2078 = vpop.f32.mrb[0].mxu0
    %2079 = vdwg.mxu0
    %2080 = vst.msk [vmem:[#allocation2] sm:$0xff] %vm183, %v2077
    %2081 = vrot.lane.b32.xlu0 %v1814, 120
    %v2082 = vpop.permute.xlu0 %2081
    %2083 = vrot.lane.b32.xlu0 %v1906, 120
    %v2084 = vpop.permute.xlu0 %2083
    %v2085 = vsel %vm183, %v2082, 0
    %v2087 = vsel %vm183, %v2084, 0
    %2089 = vmatprep.subr.mxu0 0.0
    %2090 = vmatpush1.xpose.msra.mxu0 %v2087
    %2091 = vmatprep.subr.mxu0 0.0
    %2092 = vmatpush1.xpose.msra.mxu0 0.0
    %2093 = vmatprep.subr.mxu0 0.0
    %2094 = vmatpush1.xpose.msra.mxu0 0.0
    %2095 = vmatprep.subr.mxu0 0.0
    %2096 = vmatpush1.xpose.msra.mxu0 0.0
    %2097 = vmatprep.subr.mxu0 0.0
    %2098 = vmatpush1.xpose.msra.mxu0 0.0
    %2099 = vmatprep.subr.mxu0 0.0
    %2100 = vmatpush1.xpose.msra.mxu0 0.0
    %2101 = vmatprep.subr.mxu0 0.0
    %2102 = vmatpush1.xpose.msra.mxu0 0.0
    %2103 = vmatprep.subr.mxu0 0.0
    %2104 = vmatpush1.xpose.msra.mxu0 0.0
    %2105 = vmatprep.subr.mxu0 0.0
    %2106 = vmatpush1.xpose.msra.mxu0 0.0
    %2107 = vmatprep.subr.mxu0 0.0
    %2108 = vmatpush1.xpose.msra.mxu0 0.0
    %2109 = vmatprep.subr.mxu0 0.0
    %2110 = vmatpush1.xpose.msra.mxu0 0.0
    %2111 = vmatprep.subr.mxu0 0.0
    %2112 = vmatpush1.xpose.msra.mxu0 0.0
    %2113 = vmatprep.subr.mxu0 0.0
    %2114 = vmatpush1.xpose.msra.mxu0 0.0
    %2115 = vmatprep.subr.mxu0 0.0
    %2116 = vmatpush1.xpose.msra.mxu0 0.0
    %2117 = vmatprep.subr.mxu0 0.0
    %2118 = vmatpush1.xpose.msra.mxu0 0.0
    %2119 = vmatprep.subr.mxu0 0.0
    %2120 = vmatpush1.xpose.msra.mxu0 0.0
    %2121 = vmatprep.subr.mxu0 0.0
    %2122 = vmatpush1.xpose.msra.mxu0 0.0
    %2123 = vmatprep.subr.mxu0 0.0
    %2124 = vmatpush1.xpose.msra.mxu0 0.0
    %2125 = vmatprep.subr.mxu0 0.0
    %2126 = vmatpush1.xpose.msra.mxu0 0.0
    %2127 = vmatprep.subr.mxu0 0.0
    %2128 = vmatpush1.xpose.msra.mxu0 0.0
    %2129 = vmatprep.subr.mxu0 0.0
    %2130 = vmatpush1.xpose.msra.mxu0 0.0
    %2131 = vmatprep.subr.mxu0 0.0
    %2132 = vmatpush1.xpose.msra.mxu0 0.0
    %2133 = vmatprep.subr.mxu0 0.0
    %2134 = vmatpush1.xpose.msra.mxu0 0.0
    %2135 = vmatprep.subr.mxu0 0.0
    %2136 = vmatpush1.xpose.msra.mxu0 0.0
    %2137 = vmatprep.subr.mxu0 0.0
    %2138 = vmatpush1.xpose.msra.mxu0 0.0
    %2139 = vmatprep.subr.mxu0 0.0
    %2140 = vmatpush1.xpose.msra.mxu0 0.0
    %2141 = vmatprep.subr.mxu0 0.0
    %2142 = vmatpush1.xpose.msra.mxu0 0.0
    %2143 = vmatprep.subr.mxu0 0.0
    %2144 = vmatpush1.xpose.msra.mxu0 0.0
    %2145 = vmatprep.subr.mxu0 0.0
    %2146 = vmatpush1.xpose.msra.mxu0 0.0
    %2147 = vmatprep.subr.mxu0 0.0
    %2148 = vmatpush1.xpose.msra.mxu0 0.0
    %2149 = vmatprep.subr.mxu0 0.0
    %2150 = vmatpush1.xpose.msra.mxu0 0.0
    %2151 = vmatprep.subr.mxu0 0.0
    %2152 = vmatpush1.xpose.msra.mxu0 0.0
    %2153 = vmatprep.mubr.f32.mxu0 0.0
    %2154 = vmatmul.mubr.f32.gmra.mrb[0].mxu0 %v2085
    %v2155 = vpop.f32.mrb[0].mxu0
    %v2156 = vadd.f32 0.0, %v2155
    %v2157 = vpop.f32.mrb[0].mxu0
    %2158 = vdwg.mxu0
    %v2159 = vsel %vm1915, -1e+09, %v2156
    %v2160 = vsel %vm183, %v2159, -inf
    %2161 = vmax.xlane.f32.xlu0 %v2160
    %v2162 = vpop.xlane.xlu0 %2161
    %v2163 = vsub.f32 %v2159, %v2162
    %v2164 = vmul.f32 %v2163, 1.442695
    %v2165 = vpow.pop %v2164
    %v2166 = vsel %vm183, %v2165, 0.0
    %2167 = vadd.xlane.f32.xlu0 %v2166
    %v2168 = vpop.xlane.xlu0 %2167
    %v2169 = vrcp.pop %v2168
    %v2170 = vmul.f32 %v2165, %v2169
    %2171 = vrot.lane.b32.xlu0 %v1906, 88
    %v2172 = vpop.permute.xlu0 %2171
    %v2175 = vsel %vm183, %v2170, 0
    %2177 = vmatprep.subr.mxu0 0.0
    %2178 = vmatpush1.msra.mxu0 %v2172
    %2179 = vmatprep.subr.mxu0 0.0
    %2180 = vmatpush1.msra.mxu0 0.0
    %2181 = vmatprep.subr.mxu0 0.0
    %2182 = vmatpush1.msra.mxu0 0.0
    %2183 = vmatprep.subr.mxu0 0.0
    %2184 = vmatpush1.msra.mxu0 0.0
    %2185 = vmatprep.subr.mxu0 0.0
    %2186 = vmatpush1.msra.mxu0 0.0
    %2187 = vmatprep.subr.mxu0 0.0
    %2188 = vmatpush1.msra.mxu0 0.0
    %2189 = vmatprep.subr.mxu0 0.0
    %2190 = vmatpush1.msra.mxu0 0.0
    %2191 = vmatprep.subr.mxu0 0.0
    %2192 = vmatpush1.msra.mxu0 0.0
    %2193 = vmatprep.subr.mxu0 0.0
    %2194 = vmatpush1.msra.mxu0 0.0
    %2195 = vmatprep.subr.mxu0 0.0
    %2196 = vmatpush1.msra.mxu0 0.0
    %2197 = vmatprep.subr.mxu0 0.0
    %2198 = vmatpush1.msra.mxu0 0.0
    %2199 = vmatprep.subr.mxu0 0.0
    %2200 = vmatpush1.msra.mxu0 0.0
    %2201 = vmatprep.subr.mxu0 0.0
    %2202 = vmatpush1.msra.mxu0 0.0
    %2203 = vmatprep.subr.mxu0 0.0
    %2204 = vmatpush1.msra.mxu0 0.0
    %2205 = vmatprep.subr.mxu0 0.0
    %2206 = vmatpush1.msra.mxu0 0.0
    %2207 = vmatprep.subr.mxu0 0.0
    %2208 = vmatpush1.msra.mxu0 0.0
    %2209 = vmatprep.subr.mxu0 0.0
    %2210 = vmatpush1.msra.mxu0 0.0
    %2211 = vmatprep.subr.mxu0 0.0
    %2212 = vmatpush1.msra.mxu0 0.0
    %2213 = vmatprep.subr.mxu0 0.0
    %2214 = vmatpush1.msra.mxu0 0.0
    %2215 = vmatprep.subr.mxu0 0.0
    %2216 = vmatpush1.msra.mxu0 0.0
    %2217 = vmatprep.subr.mxu0 0.0
    %2218 = vmatpush1.msra.mxu0 0.0
    %2219 = vmatprep.subr.mxu0 0.0
    %2220 = vmatpush1.msra.mxu0 0.0
    %2221 = vmatprep.subr.mxu0 0.0
    %2222 = vmatpush1.msra.mxu0 0.0
    %2223 = vmatprep.subr.mxu0 0.0
    %2224 = vmatpush1.msra.mxu0 0.0
    %2225 = vmatprep.subr.mxu0 0.0
    %2226 = vmatpush1.msra.mxu0 0.0
    %2227 = vmatprep.subr.mxu0 0.0
    %2228 = vmatpush1.msra.mxu0 0.0
    %2229 = vmatprep.subr.mxu0 0.0
    %2230 = vmatpush1.msra.mxu0 0.0
    %2231 = vmatprep.subr.mxu0 0.0
    %2232 = vmatpush1.msra.mxu0 0.0
    %2233 = vmatprep.subr.mxu0 0.0
    %2234 = vmatpush1.msra.mxu0 0.0
    %2235 = vmatprep.subr.mxu0 0.0
    %2236 = vmatpush1.msra.mxu0 0.0
    %2237 = vmatprep.subr.mxu0 0.0
    %2238 = vmatpush1.msra.mxu0 0.0
    %2239 = vmatprep.subr.mxu0 0.0
    %2240 = vmatpush1.msra.mxu0 0.0
    %2241 = vmatprep.mubr.f32.mxu0 0.0
    %2242 = vmatmul.mubr.f32.gmra.mrb[0].mxu0 %v2175
    %v2243 = vpop.f32.mrb[0].mxu0
    %v2244 = vadd.f32 0.0, %v2243
    %v2245 = vpop.f32.mrb[0].mxu0
    %2246 = vdwg.mxu0
    %2247 = vst.msk [vmem:[#allocation2 + $0x8] sm:$0xff] %vm183, %v2244
    %2248 = vrot.lane.b32.xlu0 %v1814, 112
    %v2249 = vpop.permute.xlu0 %2248
    %2250 = vrot.lane.b32.xlu0 %v1906, 112
    %v2251 = vpop.permute.xlu0 %2250
    %v2252 = vsel %vm183, %v2249, 0
    %v2254 = vsel %vm183, %v2251, 0
    %2256 = vmatprep.subr.mxu0 0.0
    %2257 = vmatpush1.xpose.msra.mxu0 %v2254
    %2258 = vmatprep.subr.mxu0 0.0
    %2259 = vmatpush1.xpose.msra.mxu0 0.0
    %2260 = vmatprep.subr.mxu0 0.0
    %2261 = vmatpush1.xpose.msra.mxu0 0.0
    %2262 = vmatprep.subr.mxu0 0.0
    %2263 = vmatpush1.xpose.msra.mxu0 0.0
    %2264 = vmatprep.subr.mxu0 0.0
    %2265 = vmatpush1.xpose.msra.mxu0 0.0
    %2266 = vmatprep.subr.mxu0 0.0
    %2267 = vmatpush1.xpose.msra.mxu0 0.0
    %2268 = vmatprep.subr.mxu0 0.0
    %2269 = vmatpush1.xpose.msra.mxu0 0.0
    %2270 = vmatprep.subr.mxu0 0.0
    %2271 = vmatpush1.xpose.msra.mxu0 0.0
    %2272 = vmatprep.subr.mxu0 0.0
    %2273 = vmatpush1.xpose.msra.mxu0 0.0
    %2274 = vmatprep.subr.mxu0 0.0
    %2275 = vmatpush1.xpose.msra.mxu0 0.0
    %2276 = vmatprep.subr.mxu0 0.0
    %2277 = vmatpush1.xpose.msra.mxu0 0.0
    %2278 = vmatprep.subr.mxu0 0.0
    %2279 = vmatpush1.xpose.msra.mxu0 0.0
    %2280 = vmatprep.subr.mxu0 0.0
    %2281 = vmatpush1.xpose.msra.mxu0 0.0
    %2282 = vmatprep.subr.mxu0 0.0
    %2283 = vmatpush1.xpose.msra.mxu0 0.0
    %2284 = vmatprep.subr.mxu0 0.0
    %2285 = vmatpush1.xpose.msra.mxu0 0.0
    %2286 = vmatprep.subr.mxu0 0.0
    %2287 = vmatpush1.xpose.msra.mxu0 0.0
    %2288 = vmatprep.subr.mxu0 0.0
    %2289 = vmatpush1.xpose.msra.mxu0 0.0
    %2290 = vmatprep.subr.mxu0 0.0
    %2291 = vmatpush1.xpose.msra.mxu0 0.0
    %2292 = vmatprep.subr.mxu0 0.0
    %2293 = vmatpush1.xpose.msra.mxu0 0.0
    %2294 = vmatprep.subr.mxu0 0.0
    %2295 = vmatpush1.xpose.msra.mxu0 0.0
    %2296 = vmatprep.subr.mxu0 0.0
    %2297 = vmatpush1.xpose.msra.mxu0 0.0
    %2298 = vmatprep.subr.mxu0 0.0
    %2299 = vmatpush1.xpose.msra.mxu0 0.0
    %2300 = vmatprep.subr.mxu0 0.0
    %2301 = vmatpush1.xpose.msra.mxu0 0.0
    %2302 = vmatprep.subr.mxu0 0.0
    %2303 = vmatpush1.xpose.msra.mxu0 0.0
    %2304 = vmatprep.subr.mxu0 0.0
    %2305 = vmatpush1.xpose.msra.mxu0 0.0
    %2306 = vmatprep.subr.mxu0 0.0
    %2307 = vmatpush1.xpose.msra.mxu0 0.0
    %2308 = vmatprep.subr.mxu0 0.0
    %2309 = vmatpush1.xpose.msra.mxu0 0.0
    %2310 = vmatprep.subr.mxu0 0.0
    %2311 = vmatpush1.xpose.msra.mxu0 0.0
    %2312 = vmatprep.subr.mxu0 0.0
    %2313 = vmatpush1.xpose.msra.mxu0 0.0
    %2314 = vmatprep.subr.mxu0 0.0
    %2315 = vmatpush1.xpose.msra.mxu0 0.0
    %2316 = vmatprep.subr.mxu0 0.0
    %2317 = vmatpush1.xpose.msra.mxu0 0.0
    %2318 = vmatprep.subr.mxu0 0.0
    %2319 = vmatpush1.xpose.msra.mxu0 0.0
    %2320 = vmatprep.mubr.f32.mxu0 0.0
    %2321 = vmatmul.mubr.f32.gmra.mrb[0].mxu0 %v2252
    %v2322 = vpop.f32.mrb[0].mxu0
    %v2323 = vadd.f32 0.0, %v2322
    %v2324 = vpop.f32.mrb[0].mxu0
    %2325 = vdwg.mxu0
    %v2326 = vsel %vm1915, -1e+09, %v2323
    %v2327 = vsel %vm183, %v2326, -inf
    %2328 = vmax.xlane.f32.xlu0 %v2327
    %v2329 = vpop.xlane.xlu0 %2328
    %v2330 = vsub.f32 %v2326, %v2329
    %v2331 = vmul.f32 %v2330, 1.442695
    %v2332 = vpow.pop %v2331
    %v2333 = vsel %vm183, %v2332, 0.0
    %2334 = vadd.xlane.f32.xlu0 %v2333
    %v2335 = vpop.xlane.xlu0 %2334
    %v2336 = vrcp.pop %v2335
    %v2337 = vmul.f32 %v2332, %v2336
    %2338 = vrot.lane.b32.xlu0 %v1906, 80
    %v2339 = vpop.permute.xlu0 %2338
    %v2342 = vsel %vm183, %v2337, 0
    %2344 = vmatprep.subr.mxu0 0.0
    %2345 = vmatpush1.msra.mxu0 %v2339
    %2346 = vmatprep.subr.mxu0 0.0
    %2347 = vmatpush1.msra.mxu0 0.0
    %2348 = vmatprep.subr.mxu0 0.0
    %2349 = vmatpush1.msra.mxu0 0.0
    %2350 = vmatprep.subr.mxu0 0.0
    %2351 = vmatpush1.msra.mxu0 0.0
    %2352 = vmatprep.subr.mxu0 0.0
    %2353 = vmatpush1.msra.mxu0 0.0
    %2354 = vmatprep.subr.mxu0 0.0
    %2355 = vmatpush1.msra.mxu0 0.0
    %2356 = vmatprep.subr.mxu0 0.0
    %2357 = vmatpush1.msra.mxu0 0.0
    %2358 = vmatprep.subr.mxu0 0.0
    %2359 = vmatpush1.msra.mxu0 0.0
    %2360 = vmatprep.subr.mxu0 0.0
    %2361 = vmatpush1.msra.mxu0 0.0
    %2362 = vmatprep.subr.mxu0 0.0
    %2363 = vmatpush1.msra.mxu0 0.0
    %2364 = vmatprep.subr.mxu0 0.0
    %2365 = vmatpush1.msra.mxu0 0.0
    %2366 = vmatprep.subr.mxu0 0.0
    %2367 = vmatpush1.msra.mxu0 0.0
    %2368 = vmatprep.subr.mxu0 0.0
    %2369 = vmatpush1.msra.mxu0 0.0
    %2370 = vmatprep.subr.mxu0 0.0
    %2371 = vmatpush1.msra.mxu0 0.0
    %2372 = vmatprep.subr.mxu0 0.0
    %2373 = vmatpush1.msra.mxu0 0.0
    %2374 = vmatprep.subr.mxu0 0.0
    %2375 = vmatpush1.msra.mxu0 0.0
    %2376 = vmatprep.subr.mxu0 0.0
    %2377 = vmatpush1.msra.mxu0 0.0
    %2378 = vmatprep.subr.mxu0 0.0
    %2379 = vmatpush1.msra.mxu0 0.0
    %2380 = vmatprep.subr.mxu0 0.0
    %2381 = vmatpush1.msra.mxu0 0.0
    %2382 = vmatprep.subr.mxu0 0.0
    %2383 = vmatpush1.msra.mxu0 0.0
    %2384 = vmatprep.subr.mxu0 0.0
    %2385 = vmatpush1.msra.mxu0 0.0
    %2386 = vmatprep.subr.mxu0 0.0
    %2387 = vmatpush1.msra.mxu0 0.0
    %2388 = vmatprep.subr.mxu0 0.0
    %2389 = vmatpush1.msra.mxu0 0.0
    %2390 = vmatprep.subr.mxu0 0.0
    %2391 = vmatpush1.msra.mxu0 0.0
    %2392 = vmatprep.subr.mxu0 0.0
    %2393 = vmatpush1.msra.mxu0 0.0
    %2394 = vmatprep.subr.mxu0 0.0
    %2395 = vmatpush1.msra.mxu0 0.0
    %2396 = vmatprep.subr.mxu0 0.0
    %2397 = vmatpush1.msra.mxu0 0.0
    %2398 = vmatprep.subr.mxu0 0.0
    %2399 = vmatpush1.msra.mxu0 0.0
    %2400 = vmatprep.subr.mxu0 0.0
    %2401 = vmatpush1.msra.mxu0 0.0
    %2402 = vmatprep.subr.mxu0 0.0
    %2403 = vmatpush1.msra.mxu0 0.0
    %2404 = vmatprep.subr.mxu0 0.0
    %2405 = vmatpush1.msra.mxu0 0.0
    %2406 = vmatprep.subr.mxu0 0.0
    %2407 = vmatpush1.msra.mxu0 0.0
    %2408 = vmatprep.mubr.f32.mxu0 0.0
    %2409 = vmatmul.mubr.f32.gmra.mrb[0].mxu0 %v2342
    %v2410 = vpop.f32.mrb[0].mxu0
    %v2411 = vadd.f32 0.0, %v2410
    %v2412 = vpop.f32.mrb[0].mxu0
    %2413 = vdwg.mxu0
    %2414 = vst.msk [vmem:[#allocation2 + $0x10] sm:$0xff] %vm183, %v2411
    %2415 = vrot.lane.b32.xlu0 %v1814, 104
    %v2416 = vpop.permute.xlu0 %2415
    %2417 = vrot.lane.b32.xlu0 %v1906, 104
    %v2418 = vpop.permute.xlu0 %2417
    %v2419 = vsel %vm183, %v2416, 0
    %v2421 = vsel %vm183, %v2418, 0
    %2423 = vmatprep.subr.mxu0 0.0
    %2424 = vmatpush1.xpose.msra.mxu0 %v2421
    %2425 = vmatprep.subr.mxu0 0.0
    %2426 = vmatpush1.xpose.msra.mxu0 0.0
    %2427 = vmatprep.subr.mxu0 0.0
    %2428 = vmatpush1.xpose.msra.mxu0 0.0
    %2429 = vmatprep.subr.mxu0 0.0
    %2430 = vmatpush1.xpose.msra.mxu0 0.0
    %2431 = vmatprep.subr.mxu0 0.0
    %2432 = vmatpush1.xpose.msra.mxu0 0.0
    %2433 = vmatprep.subr.mxu0 0.0
    %2434 = vmatpush1.xpose.msra.mxu0 0.0
    %2435 = vmatprep.subr.mxu0 0.0
    %2436 = vmatpush1.xpose.msra.mxu0 0.0
    %2437 = vmatprep.subr.mxu0 0.0
    %2438 = vmatpush1.xpose.msra.mxu0 0.0
    %2439 = vmatprep.subr.mxu0 0.0
    %2440 = vmatpush1.xpose.msra.mxu0 0.0
    %2441 = vmatprep.subr.mxu0 0.0
    %2442 = vmatpush1.xpose.msra.mxu0 0.0
    %2443 = vmatprep.subr.mxu0 0.0
    %2444 = vmatpush1.xpose.msra.mxu0 0.0
    %2445 = vmatprep.subr.mxu0 0.0
    %2446 = vmatpush1.xpose.msra.mxu0 0.0
    %2447 = vmatprep.subr.mxu0 0.0
    %2448 = vmatpush1.xpose.msra.mxu0 0.0
    %2449 = vmatprep.subr.mxu0 0.0
    %2450 = vmatpush1.xpose.msra.mxu0 0.0
    %2451 = vmatprep.subr.mxu0 0.0
    %2452 = vmatpush1.xpose.msra.mxu0 0.0
    %2453 = vmatprep.subr.mxu0 0.0
    %2454 = vmatpush1.xpose.msra.mxu0 0.0
    %2455 = vmatprep.subr.mxu0 0.0
    %2456 = vmatpush1.xpose.msra.mxu0 0.0
    %2457 = vmatprep.subr.mxu0 0.0
    %2458 = vmatpush1.xpose.msra.mxu0 0.0
    %2459 = vmatprep.subr.mxu0 0.0
    %2460 = vmatpush1.xpose.msra.mxu0 0.0
    %2461 = vmatprep.subr.mxu0 0.0
    %2462 = vmatpush1.xpose.msra.mxu0 0.0
    %2463 = vmatprep.subr.mxu0 0.0
    %2464 = vmatpush1.xpose.msra.mxu0 0.0
    %2465 = vmatprep.subr.mxu0 0.0
    %2466 = vmatpush1.xpose.msra.mxu0 0.0
    %2467 = vmatprep.subr.mxu0 0.0
    %2468 = vmatpush1.xpose.msra.mxu0 0.0
    %2469 = vmatprep.subr.mxu0 0.0
    %2470 = vmatpush1.xpose.msra.mxu0 0.0
    %2471 = vmatprep.subr.mxu0 0.0
    %2472 = vmatpush1.xpose.msra.mxu0 0.0
    %2473 = vmatprep.subr.mxu0 0.0
    %2474 = vmatpush1.xpose.msra.mxu0 0.0
    %2475 = vmatprep.subr.mxu0 0.0
    %2476 = vmatpush1.xpose.msra.mxu0 0.0
    %2477 = vmatprep.subr.mxu0 0.0
    %2478 = vmatpush1.xpose.msra.mxu0 0.0
    %2479 = vmatprep.subr.mxu0 0.0
    %2480 = vmatpush1.xpose.msra.mxu0 0.0
    %2481 = vmatprep.subr.mxu0 0.0
    %2482 = vmatpush1.xpose.msra.mxu0 0.0
    %2483 = vmatprep.subr.mxu0 0.0
    %2484 = vmatpush1.xpose.msra.mxu0 0.0
    %2485 = vmatprep.subr.mxu0 0.0
    %2486 = vmatpush1.xpose.msra.mxu0 0.0
    %2487 = vmatprep.mubr.f32.mxu0 0.0
    %2488 = vmatmul.mubr.f32.gmra.mrb[0].mxu0 %v2419
    %v2489 = vpop.f32.mrb[0].mxu0
    %v2490 = vadd.f32 0.0, %v2489
    %v2491 = vpop.f32.mrb[0].mxu0
    %2492 = vdwg.mxu0
    %v2493 = vsel %vm1915, -1e+09, %v2490
    %v2494 = vsel %vm183, %v2493, -inf
    %2495 = vmax.xlane.f32.xlu0 %v2494
    %v2496 = vpop.xlane.xlu0 %2495
    %v2497 = vsub.f32 %v2493, %v2496
    %v2498 = vmul.f32 %v2497, 1.442695
    %v2499 = vpow.pop %v2498
    %v2500 = vsel %vm183, %v2499, 0.0
    %2501 = vadd.xlane.f32.xlu0 %v2500
    %v2502 = vpop.xlane.xlu0 %2501
    %v2503 = vrcp.pop %v2502
    %v2504 = vmul.f32 %v2499, %v2503
    %2505 = vrot.lane.b32.xlu0 %v1906, 72
    %v2506 = vpop.permute.xlu0 %2505
    %v2509 = vsel %vm183, %v2504, 0
    %2511 = vmatprep.subr.mxu0 0.0
    %2512 = vmatpush1.msra.mxu0 %v2506
    %2513 = vmatprep.subr.mxu0 0.0
    %2514 = vmatpush1.msra.mxu0 0.0
    %2515 = vmatprep.subr.mxu0 0.0
    %2516 = vmatpush1.msra.mxu0 0.0
    %2517 = vmatprep.subr.mxu0 0.0
    %2518 = vmatpush1.msra.mxu0 0.0
    %2519 = vmatprep.subr.mxu0 0.0
    %2520 = vmatpush1.msra.mxu0 0.0
    %2521 = vmatprep.subr.mxu0 0.0
    %2522 = vmatpush1.msra.mxu0 0.0
    %2523 = vmatprep.subr.mxu0 0.0
    %2524 = vmatpush1.msra.mxu0 0.0
    %2525 = vmatprep.subr.mxu0 0.0
    %2526 = vmatpush1.msra.mxu0 0.0
    %2527 = vmatprep.subr.mxu0 0.0
    %2528 = vmatpush1.msra.mxu0 0.0
    %2529 = vmatprep.subr.mxu0 0.0
    %2530 = vmatpush1.msra.mxu0 0.0
    %2531 = vmatprep.subr.mxu0 0.0
    %2532 = vmatpush1.msra.mxu0 0.0
    %2533 = vmatprep.subr.mxu0 0.0
    %2534 = vmatpush1.msra.mxu0 0.0
    %2535 = vmatprep.subr.mxu0 0.0
    %2536 = vmatpush1.msra.mxu0 0.0
    %2537 = vmatprep.subr.mxu0 0.0
    %2538 = vmatpush1.msra.mxu0 0.0
    %2539 = vmatprep.subr.mxu0 0.0
    %2540 = vmatpush1.msra.mxu0 0.0
    %2541 = vmatprep.subr.mxu0 0.0
    %2542 = vmatpush1.msra.mxu0 0.0
    %2543 = vmatprep.subr.mxu0 0.0
    %2544 = vmatpush1.msra.mxu0 0.0
    %2545 = vmatprep.subr.mxu0 0.0
    %2546 = vmatpush1.msra.mxu0 0.0
    %2547 = vmatprep.subr.mxu0 0.0
    %2548 = vmatpush1.msra.mxu0 0.0
    %2549 = vmatprep.subr.mxu0 0.0
    %2550 = vmatpush1.msra.mxu0 0.0
    %2551 = vmatprep.subr.mxu0 0.0
    %2552 = vmatpush1.msra.mxu0 0.0
    %2553 = vmatprep.subr.mxu0 0.0
    %2554 = vmatpush1.msra.mxu0 0.0
    %2555 = vmatprep.subr.mxu0 0.0
    %2556 = vmatpush1.msra.mxu0 0.0
    %2557 = vmatprep.subr.mxu0 0.0
    %2558 = vmatpush1.msra.mxu0 0.0
    %2559 = vmatprep.subr.mxu0 0.0
    %2560 = vmatpush1.msra.mxu0 0.0
    %2561 = vmatprep.subr.mxu0 0.0
    %2562 = vmatpush1.msra.mxu0 0.0
    %2563 = vmatprep.subr.mxu0 0.0
    %2564 = vmatpush1.msra.mxu0 0.0
    %2565 = vmatprep.subr.mxu0 0.0
    %2566 = vmatpush1.msra.mxu0 0.0
    %2567 = vmatprep.subr.mxu0 0.0
    %2568 = vmatpush1.msra.mxu0 0.0
    %2569 = vmatprep.subr.mxu0 0.0
    %2570 = vmatpush1.msra.mxu0 0.0
    %2571 = vmatprep.subr.mxu0 0.0
    %2572 = vmatpush1.msra.mxu0 0.0
    %2573 = vmatprep.subr.mxu0 0.0
    %2574 = vmatpush1.msra.mxu0 0.0
    %2575 = vmatprep.mubr.f32.mxu0 0.0
    %2576 = vmatmul.mubr.f32.gmra.mrb[0].mxu0 %v2509
    %v2577 = vpop.f32.mrb[0].mxu0
    %v2578 = vadd.f32 0.0, %v2577
    %v2579 = vpop.f32.mrb[0].mxu0
    %2580 = vdwg.mxu0
    %2581 = vst.msk [vmem:[#allocation2 + $0x18] sm:$0xff] %vm183, %v2578
    %2582 = vrot.lane.b32.xlu0 %v2170, 8
    %v2583 = vpop.permute.xlu0 %2582
    %2585 = vrot.lane.b32.xlu0 %v2337, 16
    %v2586 = vpop.permute.xlu0 %2585
    %2588 = vrot.lane.b32.xlu0 %v2504, 24
    %v2589 = vpop.permute.xlu0 %2588
    %v2591 = vsel %vm183, %v2003, %v2583
    %v2592 = vsel %vm858, %v2591, %v2586
    %v2593 = vsel %vm860, %v2592, %v2589
    %s2594 = scalar_lea.vmem %s3, 8
    %v2595 = vld [vmem:[%s2594] sm:$0xff]
    %vm2596 = vcmp.ne.s32.totalorder %v2595, 0
    %v2598 = vsel %vm183, %v1819, 0
    %v2601 = vsel %vm183, %v1911, 0
    %2603 = vmatprep.subr.mxu0 0.0
    %2604 = vmatpush1.xpose.msra.mxu0 %v2601
    %2605 = vmatprep.subr.mxu0 0.0
    %2606 = vmatpush1.xpose.msra.mxu0 0.0
    %2607 = vmatprep.subr.mxu0 0.0
    %2608 = vmatpush1.xpose.msra.mxu0 0.0
    %2609 = vmatprep.subr.mxu0 0.0
    %2610 = vmatpush1.xpose.msra.mxu0 0.0
    %2611 = vmatprep.subr.mxu0 0.0
    %2612 = vmatpush1.xpose.msra.mxu0 0.0
    %2613 = vmatprep.subr.mxu0 0.0
    %2614 = vmatpush1.xpose.msra.mxu0 0.0
    %2615 = vmatprep.subr.mxu0 0.0
    %2616 = vmatpush1.xpose.msra.mxu0 0.0
    %2617 = vmatprep.subr.mxu0 0.0
    %2618 = vmatpush1.xpose.msra.mxu0 0.0
    %2619 = vmatprep.subr.mxu0 0.0
    %2620 = vmatpush1.xpose.msra.mxu0 0.0
    %2621 = vmatprep.subr.mxu0 0.0
    %2622 = vmatpush1.xpose.msra.mxu0 0.0
    %2623 = vmatprep.subr.mxu0 0.0
    %2624 = vmatpush1.xpose.msra.mxu0 0.0
    %2625 = vmatprep.subr.mxu0 0.0
    %2626 = vmatpush1.xpose.msra.mxu0 0.0
    %2627 = vmatprep.subr.mxu0 0.0
    %2628 = vmatpush1.xpose.msra.mxu0 0.0
    %2629 = vmatprep.subr.mxu0 0.0
    %2630 = vmatpush1.xpose.msra.mxu0 0.0
    %2631 = vmatprep.subr.mxu0 0.0
    %2632 = vmatpush1.xpose.msra.mxu0 0.0
    %2633 = vmatprep.subr.mxu0 0.0
    %2634 = vmatpush1.xpose.msra.mxu0 0.0
    %2635 = vmatprep.subr.mxu0 0.0
    %2636 = vmatpush1.xpose.msra.mxu0 0.0
    %2637 = vmatprep.subr.mxu0 0.0
    %2638 = vmatpush1.xpose.msra.mxu0 0.0
    %2639 = vmatprep.subr.mxu0 0.0
    %2640 = vmatpush1.xpose.msra.mxu0 0.0
    %2641 = vmatprep.subr.mxu0 0.0
    %2642 = vmatpush1.xpose.msra.mxu0 0.0
    %2643 = vmatprep.subr.mxu0 0.0
    %2644 = vmatpush1.xpose.msra.mxu0 0.0
    %2645 = vmatprep.subr.mxu0 0.0
    %2646 = vmatpush1.xpose.msra.mxu0 0.0
    %2647 = vmatprep.subr.mxu0 0.0
    %2648 = vmatpush1.xpose.msra.mxu0 0.0
    %2649 = vmatprep.subr.mxu0 0.0
    %2650 = vmatpush1.xpose.msra.mxu0 0.0
    %2651 = vmatprep.subr.mxu0 0.0
    %2652 = vmatpush1.xpose.msra.mxu0 0.0
    %2653 = vmatprep.subr.mxu0 0.0
    %2654 = vmatpush1.xpose.msra.mxu0 0.0
    %2655 = vmatprep.subr.mxu0 0.0
    %2656 = vmatpush1.xpose.msra.mxu0 0.0
    %2657 = vmatprep.subr.mxu0 0.0
    %2658 = vmatpush1.xpose.msra.mxu0 0.0
    %2659 = vmatprep.subr.mxu0 0.0
    %2660 = vmatpush1.xpose.msra.mxu0 0.0
    %2661 = vmatprep.subr.mxu0 0.0
    %2662 = vmatpush1.xpose.msra.mxu0 0.0
    %2663 = vmatprep.subr.mxu0 0.0
    %2664 = vmatpush1.xpose.msra.mxu0 0.0
    %2665 = vmatprep.subr.mxu0 0.0
    %2666 = vmatpush1.xpose.msra.mxu0 0.0
    %2667 = vmatprep.mubr.f32.mxu0 0.0
    %2668 = vmatmul.mubr.f32.gmra.mrb[0].mxu0 %v2598
    %v2669 = vpop.f32.mrb[0].mxu0
    %v2670 = vadd.f32 0.0, %v2669
    %v2671 = vpop.f32.mrb[0].mxu0
    %2672 = vdwg.mxu0
    %v2673 = vsel %vm2596, -1e+09, %v2670
    %v2674 = vsel %vm183, %v2673, -inf
    %2675 = vmax.xlane.f32.xlu0 %v2674
    %v2676 = vpop.xlane.xlu0 %2675
    %v2677 = vsub.f32 %v2673, %v2676
    %v2678 = vmul.f32 %v2677, 1.442695
    %v2679 = vpow.pop %v2678
    %v2680 = vsel %vm183, %v2679, 0.0
    %2681 = vadd.xlane.f32.xlu0 %v2680
    %v2682 = vpop.xlane.xlu0 %2681
    %v2683 = vrcp.pop %v2682
    %v2684 = vmul.f32 %v2679, %v2683
    %2685 = vrot.lane.b32.xlu0 %v1911, 96
    %v2686 = vpop.permute.xlu0 %2685
    %v2689 = vsel %vm183, %v2684, 0
    %2691 = vmatprep.subr.mxu0 0.0
    %2692 = vmatpush1.msra.mxu0 %v2686
    %2693 = vmatprep.subr.mxu0 0.0
    %2694 = vmatpush1.msra.mxu0 0.0
    %2695 = vmatprep.subr.mxu0 0.0
    %2696 = vmatpush1.msra.mxu0 0.0
    %2697 = vmatprep.subr.mxu0 0.0
    %2698 = vmatpush1.msra.mxu0 0.0
    %2699 = vmatprep.subr.mxu0 0.0
    %2700 = vmatpush1.msra.mxu0 0.0
    %2701 = vmatprep.subr.mxu0 0.0
    %2702 = vmatpush1.msra.mxu0 0.0
    %2703 = vmatprep.subr.mxu0 0.0
    %2704 = vmatpush1.msra.mxu0 0.0
    %2705 = vmatprep.subr.mxu0 0.0
    %2706 = vmatpush1.msra.mxu0 0.0
    %2707 = vmatprep.subr.mxu0 0.0
    %2708 = vmatpush1.msra.mxu0 0.0
    %2709 = vmatprep.subr.mxu0 0.0
    %2710 = vmatpush1.msra.mxu0 0.0
    %2711 = vmatprep.subr.mxu0 0.0
    %2712 = vmatpush1.msra.mxu0 0.0
    %2713 = vmatprep.subr.mxu0 0.0
    %2714 = vmatpush1.msra.mxu0 0.0
    %2715 = vmatprep.subr.mxu0 0.0
    %2716 = vmatpush1.msra.mxu0 0.0
    %2717 = vmatprep.subr.mxu0 0.0
    %2718 = vmatpush1.msra.mxu0 0.0
    %2719 = vmatprep.subr.mxu0 0.0
    %2720 = vmatpush1.msra.mxu0 0.0
    %2721 = vmatprep.subr.mxu0 0.0
    %2722 = vmatpush1.msra.mxu0 0.0
    %2723 = vmatprep.subr.mxu0 0.0
    %2724 = vmatpush1.msra.mxu0 0.0
    %2725 = vmatprep.subr.mxu0 0.0
    %2726 = vmatpush1.msra.mxu0 0.0
    %2727 = vmatprep.subr.mxu0 0.0
    %2728 = vmatpush1.msra.mxu0 0.0
    %2729 = vmatprep.subr.mxu0 0.0
    %2730 = vmatpush1.msra.mxu0 0.0
    %2731 = vmatprep.subr.mxu0 0.0
    %2732 = vmatpush1.msra.mxu0 0.0
    %2733 = vmatprep.subr.mxu0 0.0
    %2734 = vmatpush1.msra.mxu0 0.0
    %2735 = vmatprep.subr.mxu0 0.0
    %2736 = vmatpush1.msra.mxu0 0.0
    %2737 = vmatprep.subr.mxu0 0.0
    %2738 = vmatpush1.msra.mxu0 0.0
    %2739 = vmatprep.subr.mxu0 0.0
    %2740 = vmatpush1.msra.mxu0 0.0
    %2741 = vmatprep.subr.mxu0 0.0
    %2742 = vmatpush1.msra.mxu0 0.0
    %2743 = vmatprep.subr.mxu0 0.0
    %2744 = vmatpush1.msra.mxu0 0.0
    %2745 = vmatprep.subr.mxu0 0.0
    %2746 = vmatpush1.msra.mxu0 0.0
    %2747 = vmatprep.subr.mxu0 0.0
    %2748 = vmatpush1.msra.mxu0 0.0
    %2749 = vmatprep.subr.mxu0 0.0
    %2750 = vmatpush1.msra.mxu0 0.0
    %2751 = vmatprep.subr.mxu0 0.0
    %2752 = vmatpush1.msra.mxu0 0.0
    %2753 = vmatprep.subr.mxu0 0.0
    %2754 = vmatpush1.msra.mxu0 0.0
    %2755 = vmatprep.mubr.f32.mxu0 0.0
    %2756 = vmatmul.mubr.f32.gmra.mrb[0].mxu0 %v2689
    %v2757 = vpop.f32.mrb[0].mxu0
    %v2758 = vadd.f32 0.0, %v2757
    %v2759 = vpop.f32.mrb[0].mxu0
    %2760 = vdwg.mxu0
    %2761 = vst.msk [vmem:[#allocation2 + $0x20] sm:$0xff] %vm183, %v2758
    %2762 = vrot.lane.b32.xlu0 %v1819, 120
    %v2763 = vpop.permute.xlu0 %2762
    %2764 = vrot.lane.b32.xlu0 %v1911, 120
    %v2765 = vpop.permute.xlu0 %2764
    %v2766 = vsel %vm183, %v2763, 0
    %v2768 = vsel %vm183, %v2765, 0
    %2770 = vmatprep.subr.mxu0 0.0
    %2771 = vmatpush1.xpose.msra.mxu0 %v2768
    %2772 = vmatprep.subr.mxu0 0.0
    %2773 = vmatpush1.xpose.msra.mxu0 0.0
    %2774 = vmatprep.subr.mxu0 0.0
    %2775 = vmatpush1.xpose.msra.mxu0 0.0
    %2776 = vmatprep.subr.mxu0 0.0
    %2777 = vmatpush1.xpose.msra.mxu0 0.0
    %2778 = vmatprep.subr.mxu0 0.0
    %2779 = vmatpush1.xpose.msra.mxu0 0.0
    %2780 = vmatprep.subr.mxu0 0.0
    %2781 = vmatpush1.xpose.msra.mxu0 0.0
    %2782 = vmatprep.subr.mxu0 0.0
    %2783 = vmatpush1.xpose.msra.mxu0 0.0
    %2784 = vmatprep.subr.mxu0 0.0
    %2785 = vmatpush1.xpose.msra.mxu0 0.0
    %2786 = vmatprep.subr.mxu0 0.0
    %2787 = vmatpush1.xpose.msra.mxu0 0.0
    %2788 = vmatprep.subr.mxu0 0.0
    %2789 = vmatpush1.xpose.msra.mxu0 0.0
    %2790 = vmatprep.subr.mxu0 0.0
    %2791 = vmatpush1.xpose.msra.mxu0 0.0
    %2792 = vmatprep.subr.mxu0 0.0
    %2793 = vmatpush1.xpose.msra.mxu0 0.0
    %2794 = vmatprep.subr.mxu0 0.0
    %2795 = vmatpush1.xpose.msra.mxu0 0.0
    %2796 = vmatprep.subr.mxu0 0.0
    %2797 = vmatpush1.xpose.msra.mxu0 0.0
    %2798 = vmatprep.subr.mxu0 0.0
    %2799 = vmatpush1.xpose.msra.mxu0 0.0
    %2800 = vmatprep.subr.mxu0 0.0
    %2801 = vmatpush1.xpose.msra.mxu0 0.0
    %2802 = vmatprep.subr.mxu0 0.0
    %2803 = vmatpush1.xpose.msra.mxu0 0.0
    %2804 = vmatprep.subr.mxu0 0.0
    %2805 = vmatpush1.xpose.msra.mxu0 0.0
    %2806 = vmatprep.subr.mxu0 0.0
    %2807 = vmatpush1.xpose.msra.mxu0 0.0
    %2808 = vmatprep.subr.mxu0 0.0
    %2809 = vmatpush1.xpose.msra.mxu0 0.0
    %2810 = vmatprep.subr.mxu0 0.0
    %2811 = vmatpush1.xpose.msra.mxu0 0.0
    %2812 = vmatprep.subr.mxu0 0.0
    %2813 = vmatpush1.xpose.msra.mxu0 0.0
    %2814 = vmatprep.subr.mxu0 0.0
    %2815 = vmatpush1.xpose.msra.mxu0 0.0
    %2816 = vmatprep.subr.mxu0 0.0
    %2817 = vmatpush1.xpose.msra.mxu0 0.0
    %2818 = vmatprep.subr.mxu0 0.0
    %2819 = vmatpush1.xpose.msra.mxu0 0.0
    %2820 = vmatprep.subr.mxu0 0.0
    %2821 = vmatpush1.xpose.msra.mxu0 0.0
    %2822 = vmatprep.subr.mxu0 0.0
    %2823 = vmatpush1.xpose.msra.mxu0 0.0
    %2824 = vmatprep.subr.mxu0 0.0
    %2825 = vmatpush1.xpose.msra.mxu0 0.0
    %2826 = vmatprep.subr.mxu0 0.0
    %2827 = vmatpush1.xpose.msra.mxu0 0.0
    %2828 = vmatprep.subr.mxu0 0.0
    %2829 = vmatpush1.xpose.msra.mxu0 0.0
    %2830 = vmatprep.subr.mxu0 0.0
    %2831 = vmatpush1.xpose.msra.mxu0 0.0
    %2832 = vmatprep.subr.mxu0 0.0
    %2833 = vmatpush1.xpose.msra.mxu0 0.0
    %2834 = vmatprep.mubr.f32.mxu0 0.0
    %2835 = vmatmul.mubr.f32.gmra.mrb[0].mxu0 %v2766
    %v2836 = vpop.f32.mrb[0].mxu0
    %v2837 = vadd.f32 0.0, %v2836
    %v2838 = vpop.f32.mrb[0].mxu0
    %2839 = vdwg.mxu0
    %v2840 = vsel %vm2596, -1e+09, %v2837
    %v2841 = vsel %vm183, %v2840, -inf
    %2842 = vmax.xlane.f32.xlu0 %v2841
    %v2843 = vpop.xlane.xlu0 %2842
    %v2844 = vsub.f32 %v2840, %v2843
    %v2845 = vmul.f32 %v2844, 1.442695
    %v2846 = vpow.pop %v2845
    %v2847 = vsel %vm183, %v2846, 0.0
    %2848 = vadd.xlane.f32.xlu0 %v2847
    %v2849 = vpop.xlane.xlu0 %2848
    %v2850 = vrcp.pop %v2849
    %v2851 = vmul.f32 %v2846, %v2850
    %2852 = vrot.lane.b32.xlu0 %v1911, 88
    %v2853 = vpop.permute.xlu0 %2852
    %v2856 = vsel %vm183, %v2851, 0
    %2858 = vmatprep.subr.mxu0 0.0
    %2859 = vmatpush1.msra.mxu0 %v2853
    %2860 = vmatprep.subr.mxu0 0.0
    %2861 = vmatpush1.msra.mxu0 0.0
    %2862 = vmatprep.subr.mxu0 0.0
    %2863 = vmatpush1.msra.mxu0 0.0
    %2864 = vmatprep.subr.mxu0 0.0
    %2865 = vmatpush1.msra.mxu0 0.0
    %2866 = vmatprep.subr.mxu0 0.0
    %2867 = vmatpush1.msra.mxu0 0.0
    %2868 = vmatprep.subr.mxu0 0.0
    %2869 = vmatpush1.msra.mxu0 0.0
    %2870 = vmatprep.subr.mxu0 0.0
    %2871 = vmatpush1.msra.mxu0 0.0
    %2872 = vmatprep.subr.mxu0 0.0
    %2873 = vmatpush1.msra.mxu0 0.0
    %2874 = vmatprep.subr.mxu0 0.0
    %2875 = vmatpush1.msra.mxu0 0.0
    %2876 = vmatprep.subr.mxu0 0.0
    %2877 = vmatpush1.msra.mxu0 0.0
    %2878 = vmatprep.subr.mxu0 0.0
    %2879 = vmatpush1.msra.mxu0 0.0
    %2880 = vmatprep.subr.mxu0 0.0
    %2881 = vmatpush1.msra.mxu0 0.0
    %2882 = vmatprep.subr.mxu0 0.0
    %2883 = vmatpush1.msra.mxu0 0.0
    %2884 = vmatprep.subr.mxu0 0.0
    %2885 = vmatpush1.msra.mxu0 0.0
    %2886 = vmatprep.subr.mxu0 0.0
    %2887 = vmatpush1.msra.mxu0 0.0
    %2888 = vmatprep.subr.mxu0 0.0
    %2889 = vmatpush1.msra.mxu0 0.0
    %2890 = vmatprep.subr.mxu0 0.0
    %2891 = vmatpush1.msra.mxu0 0.0
    %2892 = vmatprep.subr.mxu0 0.0
    %2893 = vmatpush1.msra.mxu0 0.0
    %2894 = vmatprep.subr.mxu0 0.0
    %2895 = vmatpush1.msra.mxu0 0.0
    %2896 = vmatprep.subr.mxu0 0.0
    %2897 = vmatpush1.msra.mxu0 0.0
    %2898 = vmatprep.subr.mxu0 0.0
    %2899 = vmatpush1.msra.mxu0 0.0
    %2900 = vmatprep.subr.mxu0 0.0
    %2901 = vmatpush1.msra.mxu0 0.0
    %2902 = vmatprep.subr.mxu0 0.0
    %2903 = vmatpush1.msra.mxu0 0.0
    %2904 = vmatprep.subr.mxu0 0.0
    %2905 = vmatpush1.msra.mxu0 0.0
    %2906 = vmatprep.subr.mxu0 0.0
    %2907 = vmatpush1.msra.mxu0 0.0
    %2908 = vmatprep.subr.mxu0 0.0
    %2909 = vmatpush1.msra.mxu0 0.0
    %2910 = vmatprep.subr.mxu0 0.0
    %2911 = vmatpush1.msra.mxu0 0.0
    %2912 = vmatprep.subr.mxu0 0.0
    %2913 = vmatpush1.msra.mxu0 0.0
    %2914 = vmatprep.subr.mxu0 0.0
    %2915 = vmatpush1.msra.mxu0 0.0
    %2916 = vmatprep.subr.mxu0 0.0
    %2917 = vmatpush1.msra.mxu0 0.0
    %2918 = vmatprep.subr.mxu0 0.0
    %2919 = vmatpush1.msra.mxu0 0.0
    %2920 = vmatprep.subr.mxu0 0.0
    %2921 = vmatpush1.msra.mxu0 0.0
    %2922 = vmatprep.mubr.f32.mxu0 0.0
    %2923 = vmatmul.mubr.f32.gmra.mrb[0].mxu0 %v2856
    %v2924 = vpop.f32.mrb[0].mxu0
    %v2925 = vadd.f32 0.0, %v2924
    %v2926 = vpop.f32.mrb[0].mxu0
    %2927 = vdwg.mxu0
    %2928 = vst.msk [vmem:[#allocation2 + $0x28] sm:$0xff] %vm183, %v2925
    %2929 = vrot.lane.b32.xlu0 %v1819, 112
    %v2930 = vpop.permute.xlu0 %2929
    %2931 = vrot.lane.b32.xlu0 %v1911, 112
    %v2932 = vpop.permute.xlu0 %2931
    %v2933 = vsel %vm183, %v2930, 0
    %v2935 = vsel %vm183, %v2932, 0
    %2937 = vmatprep.subr.mxu0 0.0
    %2938 = vmatpush1.xpose.msra.mxu0 %v2935
    %2939 = vmatprep.subr.mxu0 0.0
    %2940 = vmatpush1.xpose.msra.mxu0 0.0
    %2941 = vmatprep.subr.mxu0 0.0
    %2942 = vmatpush1.xpose.msra.mxu0 0.0
    %2943 = vmatprep.subr.mxu0 0.0
    %2944 = vmatpush1.xpose.msra.mxu0 0.0
    %2945 = vmatprep.subr.mxu0 0.0
    %2946 = vmatpush1.xpose.msra.mxu0 0.0
    %2947 = vmatprep.subr.mxu0 0.0
    %2948 = vmatpush1.xpose.msra.mxu0 0.0
    %2949 = vmatprep.subr.mxu0 0.0
    %2950 = vmatpush1.xpose.msra.mxu0 0.0
    %2951 = vmatprep.subr.mxu0 0.0
    %2952 = vmatpush1.xpose.msra.mxu0 0.0
    %2953 = vmatprep.subr.mxu0 0.0
    %2954 = vmatpush1.xpose.msra.mxu0 0.0
    %2955 = vmatprep.subr.mxu0 0.0
    %2956 = vmatpush1.xpose.msra.mxu0 0.0
    %2957 = vmatprep.subr.mxu0 0.0
    %2958 = vmatpush1.xpose.msra.mxu0 0.0
    %2959 = vmatprep.subr.mxu0 0.0
    %2960 = vmatpush1.xpose.msra.mxu0 0.0
    %2961 = vmatprep.subr.mxu0 0.0
    %2962 = vmatpush1.xpose.msra.mxu0 0.0
    %2963 = vmatprep.subr.mxu0 0.0
    %2964 = vmatpush1.xpose.msra.mxu0 0.0
    %2965 = vmatprep.subr.mxu0 0.0
    %2966 = vmatpush1.xpose.msra.mxu0 0.0
    %2967 = vmatprep.subr.mxu0 0.0
    %2968 = vmatpush1.xpose.msra.mxu0 0.0
    %2969 = vmatprep.subr.mxu0 0.0
    %2970 = vmatpush1.xpose.msra.mxu0 0.0
    %2971 = vmatprep.subr.mxu0 0.0
    %2972 = vmatpush1.xpose.msra.mxu0 0.0
    %2973 = vmatprep.subr.mxu0 0.0
    %2974 = vmatpush1.xpose.msra.mxu0 0.0
    %2975 = vmatprep.subr.mxu0 0.0
    %2976 = vmatpush1.xpose.msra.mxu0 0.0
    %2977 = vmatprep.subr.mxu0 0.0
    %2978 = vmatpush1.xpose.msra.mxu0 0.0
    %2979 = vmatprep.subr.mxu0 0.0
    %2980 = vmatpush1.xpose.msra.mxu0 0.0
    %2981 = vmatprep.subr.mxu0 0.0
    %2982 = vmatpush1.xpose.msra.mxu0 0.0
    %2983 = vmatprep.subr.mxu0 0.0
    %2984 = vmatpush1.xpose.msra.mxu0 0.0
    %2985 = vmatprep.subr.mxu0 0.0
    %2986 = vmatpush1.xpose.msra.mxu0 0.0
    %2987 = vmatprep.subr.mxu0 0.0
    %2988 = vmatpush1.xpose.msra.mxu0 0.0
    %2989 = vmatprep.subr.mxu0 0.0
    %2990 = vmatpush1.xpose.msra.mxu0 0.0
    %2991 = vmatprep.subr.mxu0 0.0
    %2992 = vmatpush1.xpose.msra.mxu0 0.0
    %2993 = vmatprep.subr.mxu0 0.0
    %2994 = vmatpush1.xpose.msra.mxu0 0.0
    %2995 = vmatprep.subr.mxu0 0.0
    %2996 = vmatpush1.xpose.msra.mxu0 0.0
    %2997 = vmatprep.subr.mxu0 0.0
    %2998 = vmatpush1.xpose.msra.mxu0 0.0
    %2999 = vmatprep.subr.mxu0 0.0
    %3000 = vmatpush1.xpose.msra.mxu0 0.0
    %3001 = vmatprep.mubr.f32.mxu0 0.0
    %3002 = vmatmul.mubr.f32.gmra.mrb[0].mxu0 %v2933
    %v3003 = vpop.f32.mrb[0].mxu0
    %v3004 = vadd.f32 0.0, %v3003
    %v3005 = vpop.f32.mrb[0].mxu0
    %3006 = vdwg.mxu0
    %v3007 = vsel %vm2596, -1e+09, %v3004
    %v3008 = vsel %vm183, %v3007, -inf
    %3009 = vmax.xlane.f32.xlu0 %v3008
    %v3010 = vpop.xlane.xlu0 %3009
    %v3011 = vsub.f32 %v3007, %v3010
    %v3012 = vmul.f32 %v3011, 1.442695
    %v3013 = vpow.pop %v3012
    %v3014 = vsel %vm183, %v3013, 0.0
    %3015 = vadd.xlane.f32.xlu0 %v3014
    %v3016 = vpop.xlane.xlu0 %3015
    %v3017 = vrcp.pop %v3016
    %v3018 = vmul.f32 %v3013, %v3017
    %3019 = vrot.lane.b32.xlu0 %v1911, 80
    %v3020 = vpop.permute.xlu0 %3019
    %v3023 = vsel %vm183, %v3018, 0
    %3025 = vmatprep.subr.mxu0 0.0
    %3026 = vmatpush1.msra.mxu0 %v3020
    %3027 = vmatprep.subr.mxu0 0.0
    %3028 = vmatpush1.msra.mxu0 0.0
    %3029 = vmatprep.subr.mxu0 0.0
    %3030 = vmatpush1.msra.mxu0 0.0
    %3031 = vmatprep.subr.mxu0 0.0
    %3032 = vmatpush1.msra.mxu0 0.0
    %3033 = vmatprep.subr.mxu0 0.0
    %3034 = vmatpush1.msra.mxu0 0.0
    %3035 = vmatprep.subr.mxu0 0.0
    %3036 = vmatpush1.msra.mxu0 0.0
    %3037 = vmatprep.subr.mxu0 0.0
    %3038 = vmatpush1.msra.mxu0 0.0
    %3039 = vmatprep.subr.mxu0 0.0
    %3040 = vmatpush1.msra.mxu0 0.0
    %3041 = vmatprep.subr.mxu0 0.0
    %3042 = vmatpush1.msra.mxu0 0.0
    %3043 = vmatprep.subr.mxu0 0.0
    %3044 = vmatpush1.msra.mxu0 0.0
    %3045 = vmatprep.subr.mxu0 0.0
    %3046 = vmatpush1.msra.mxu0 0.0
    %3047 = vmatprep.subr.mxu0 0.0
    %3048 = vmatpush1.msra.mxu0 0.0
    %3049 = vmatprep.subr.mxu0 0.0
    %3050 = vmatpush1.msra.mxu0 0.0
    %3051 = vmatprep.subr.mxu0 0.0
    %3052 = vmatpush1.msra.mxu0 0.0
    %3053 = vmatprep.subr.mxu0 0.0
    %3054 = vmatpush1.msra.mxu0 0.0
    %3055 = vmatprep.subr.mxu0 0.0
    %3056 = vmatpush1.msra.mxu0 0.0
    %3057 = vmatprep.subr.mxu0 0.0
    %3058 = vmatpush1.msra.mxu0 0.0
    %3059 = vmatprep.subr.mxu0 0.0
    %3060 = vmatpush1.msra.mxu0 0.0
    %3061 = vmatprep.subr.mxu0 0.0
    %3062 = vmatpush1.msra.mxu0 0.0
    %3063 = vmatprep.subr.mxu0 0.0
    %3064 = vmatpush1.msra.mxu0 0.0
    %3065 = vmatprep.subr.mxu0 0.0
    %3066 = vmatpush1.msra.mxu0 0.0
    %3067 = vmatprep.subr.mxu0 0.0
    %3068 = vmatpush1.msra.mxu0 0.0
    %3069 = vmatprep.subr.mxu0 0.0
    %3070 = vmatpush1.msra.mxu0 0.0
    %3071 = vmatprep.subr.mxu0 0.0
    %3072 = vmatpush1.msra.mxu0 0.0
    %3073 = vmatprep.subr.mxu0 0.0
    %3074 = vmatpush1.msra.mxu0 0.0
    %3075 = vmatprep.subr.mxu0 0.0
    %3076 = vmatpush1.msra.mxu0 0.0
    %3077 = vmatprep.subr.mxu0 0.0
    %3078 = vmatpush1.msra.mxu0 0.0
    %3079 = vmatprep.subr.mxu0 0.0
    %3080 = vmatpush1.msra.mxu0 0.0
    %3081 = vmatprep.subr.mxu0 0.0
    %3082 = vmatpush1.msra.mxu0 0.0
    %3083 = vmatprep.subr.mxu0 0.0
    %3084 = vmatpush1.msra.mxu0 0.0
    %3085 = vmatprep.subr.mxu0 0.0
    %3086 = vmatpush1.msra.mxu0 0.0
    %3087 = vmatprep.subr.mxu0 0.0
    %3088 = vmatpush1.msra.mxu0 0.0
    %3089 = vmatprep.mubr.f32.mxu0 0.0
    %3090 = vmatmul.mubr.f32.gmra.mrb[0].mxu0 %v3023
    %v3091 = vpop.f32.mrb[0].mxu0
    %v3092 = vadd.f32 0.0, %v3091
    %v3093 = vpop.f32.mrb[0].mxu0
    %3094 = vdwg.mxu0
    %3095 = vst.msk [vmem:[#allocation2 + $0x30] sm:$0xff] %vm183, %v3092
    %3096 = vrot.lane.b32.xlu0 %v1819, 104
    %v3097 = vpop.permute.xlu0 %3096
    %3098 = vrot.lane.b32.xlu0 %v1911, 104
    %v3099 = vpop.permute.xlu0 %3098
    %v3100 = vsel %vm183, %v3097, 0
    %v3102 = vsel %vm183, %v3099, 0
    %3104 = vmatprep.subr.mxu0 0.0
    %3105 = vmatpush1.xpose.msra.mxu0 %v3102
    %3106 = vmatprep.subr.mxu0 0.0
    %3107 = vmatpush1.xpose.msra.mxu0 0.0
    %3108 = vmatprep.subr.mxu0 0.0
    %3109 = vmatpush1.xpose.msra.mxu0 0.0
    %3110 = vmatprep.subr.mxu0 0.0
    %3111 = vmatpush1.xpose.msra.mxu0 0.0
    %3112 = vmatprep.subr.mxu0 0.0
    %3113 = vmatpush1.xpose.msra.mxu0 0.0
    %3114 = vmatprep.subr.mxu0 0.0
    %3115 = vmatpush1.xpose.msra.mxu0 0.0
    %3116 = vmatprep.subr.mxu0 0.0
    %3117 = vmatpush1.xpose.msra.mxu0 0.0
    %3118 = vmatprep.subr.mxu0 0.0
    %3119 = vmatpush1.xpose.msra.mxu0 0.0
    %3120 = vmatprep.subr.mxu0 0.0
    %3121 = vmatpush1.xpose.msra.mxu0 0.0
    %3122 = vmatprep.subr.mxu0 0.0
    %3123 = vmatpush1.xpose.msra.mxu0 0.0
    %3124 = vmatprep.subr.mxu0 0.0
    %3125 = vmatpush1.xpose.msra.mxu0 0.0
    %3126 = vmatprep.subr.mxu0 0.0
    %3127 = vmatpush1.xpose.msra.mxu0 0.0
    %3128 = vmatprep.subr.mxu0 0.0
    %3129 = vmatpush1.xpose.msra.mxu0 0.0
    %3130 = vmatprep.subr.mxu0 0.0
    %3131 = vmatpush1.xpose.msra.mxu0 0.0
    %3132 = vmatprep.subr.mxu0 0.0
    %3133 = vmatpush1.xpose.msra.mxu0 0.0
    %3134 = vmatprep.subr.mxu0 0.0
    %3135 = vmatpush1.xpose.msra.mxu0 0.0
    %3136 = vmatprep.subr.mxu0 0.0
    %3137 = vmatpush1.xpose.msra.mxu0 0.0
    %3138 = vmatprep.subr.mxu0 0.0
    %3139 = vmatpush1.xpose.msra.mxu0 0.0
    %3140 = vmatprep.subr.mxu0 0.0
    %3141 = vmatpush1.xpose.msra.mxu0 0.0
    %3142 = vmatprep.subr.mxu0 0.0
    %3143 = vmatpush1.xpose.msra.mxu0 0.0
    %3144 = vmatprep.subr.mxu0 0.0
    %3145 = vmatpush1.xpose.msra.mxu0 0.0
    %3146 = vmatprep.subr.mxu0 0.0
    %3147 = vmatpush1.xpose.msra.mxu0 0.0
    %3148 = vmatprep.subr.mxu0 0.0
    %3149 = vmatpush1.xpose.msra.mxu0 0.0
    %3150 = vmatprep.subr.mxu0 0.0
    %3151 = vmatpush1.xpose.msra.mxu0 0.0
    %3152 = vmatprep.subr.mxu0 0.0
    %3153 = vmatpush1.xpose.msra.mxu0 0.0
    %3154 = vmatprep.subr.mxu0 0.0
    %3155 = vmatpush1.xpose.msra.mxu0 0.0
    %3156 = vmatprep.subr.mxu0 0.0
    %3157 = vmatpush1.xpose.msra.mxu0 0.0
    %3158 = vmatprep.subr.mxu0 0.0
    %3159 = vmatpush1.xpose.msra.mxu0 0.0
    %3160 = vmatprep.subr.mxu0 0.0
    %3161 = vmatpush1.xpose.msra.mxu0 0.0
    %3162 = vmatprep.subr.mxu0 0.0
    %3163 = vmatpush1.xpose.msra.mxu0 0.0
    %3164 = vmatprep.subr.mxu0 0.0
    %3165 = vmatpush1.xpose.msra.mxu0 0.0
    %3166 = vmatprep.subr.mxu0 0.0
    %3167 = vmatpush1.xpose.msra.mxu0 0.0
    %3168 = vmatprep.mubr.f32.mxu0 0.0
    %3169 = vmatmul.mubr.f32.gmra.mrb[0].mxu0 %v3100
    %v3170 = vpop.f32.mrb[0].mxu0
    %v3171 = vadd.f32 0.0, %v3170
    %v3172 = vpop.f32.mrb[0].mxu0
    %3173 = vdwg.mxu0
    %v3174 = vsel %vm2596, -1e+09, %v3171
    %v3175 = vsel %vm183, %v3174, -inf
    %3176 = vmax.xlane.f32.xlu0 %v3175
    %v3177 = vpop.xlane.xlu0 %3176
    %v3178 = vsub.f32 %v3174, %v3177
    %v3179 = vmul.f32 %v3178, 1.442695
    %v3180 = vpow.pop %v3179
    %v3181 = vsel %vm183, %v3180, 0.0
    %3182 = vadd.xlane.f32.xlu0 %v3181
    %v3183 = vpop.xlane.xlu0 %3182
    %v3184 = vrcp.pop %v3183
    %v3185 = vmul.f32 %v3180, %v3184
    %3186 = vrot.lane.b32.xlu0 %v1911, 72
    %v3187 = vpop.permute.xlu0 %3186
    %v3190 = vsel %vm183, %v3185, 0
    %3192 = vmatprep.subr.mxu0 0.0
    %3193 = vmatpush1.msra.mxu0 %v3187
    %3194 = vmatprep.subr.mxu0 0.0
    %3195 = vmatpush1.msra.mxu0 0.0
    %3196 = vmatprep.subr.mxu0 0.0
    %3197 = vmatpush1.msra.mxu0 0.0
    %3198 = vmatprep.subr.mxu0 0.0
    %3199 = vmatpush1.msra.mxu0 0.0
    %3200 = vmatprep.subr.mxu0 0.0
    %3201 = vmatpush1.msra.mxu0 0.0
    %3202 = vmatprep.subr.mxu0 0.0
    %3203 = vmatpush1.msra.mxu0 0.0
    %3204 = vmatprep.subr.mxu0 0.0
    %3205 = vmatpush1.msra.mxu0 0.0
    %3206 = vmatprep.subr.mxu0 0.0
    %3207 = vmatpush1.msra.mxu0 0.0
    %3208 = vmatprep.subr.mxu0 0.0
    %3209 = vmatpush1.msra.mxu0 0.0
    %3210 = vmatprep.subr.mxu0 0.0
    %3211 = vmatpush1.msra.mxu0 0.0
    %3212 = vmatprep.subr.mxu0 0.0
    %3213 = vmatpush1.msra.mxu0 0.0
    %3214 = vmatprep.subr.mxu0 0.0
    %3215 = vmatpush1.msra.mxu0 0.0
    %3216 = vmatprep.subr.mxu0 0.0
    %3217 = vmatpush1.msra.mxu0 0.0
    %3218 = vmatprep.subr.mxu0 0.0
    %3219 = vmatpush1.msra.mxu0 0.0
    %3220 = vmatprep.subr.mxu0 0.0
    %3221 = vmatpush1.msra.mxu0 0.0
    %3222 = vmatprep.subr.mxu0 0.0
    %3223 = vmatpush1.msra.mxu0 0.0
    %3224 = vmatprep.subr.mxu0 0.0
    %3225 = vmatpush1.msra.mxu0 0.0
    %3226 = vmatprep.subr.mxu0 0.0
    %3227 = vmatpush1.msra.mxu0 0.0
    %3228 = vmatprep.subr.mxu0 0.0
    %3229 = vmatpush1.msra.mxu0 0.0
    %3230 = vmatprep.subr.mxu0 0.0
    %3231 = vmatpush1.msra.mxu0 0.0
    %3232 = vmatprep.subr.mxu0 0.0
    %3233 = vmatpush1.msra.mxu0 0.0
    %3234 = vmatprep.subr.mxu0 0.0
    %3235 = vmatpush1.msra.mxu0 0.0
    %3236 = vmatprep.subr.mxu0 0.0
    %3237 = vmatpush1.msra.mxu0 0.0
    %3238 = vmatprep.subr.mxu0 0.0
    %3239 = vmatpush1.msra.mxu0 0.0
    %3240 = vmatprep.subr.mxu0 0.0
    %3241 = vmatpush1.msra.mxu0 0.0
    %3242 = vmatprep.subr.mxu0 0.0
    %3243 = vmatpush1.msra.mxu0 0.0
    %3244 = vmatprep.subr.mxu0 0.0
    %3245 = vmatpush1.msra.mxu0 0.0
    %3246 = vmatprep.subr.mxu0 0.0
    %3247 = vmatpush1.msra.mxu0 0.0
    %3248 = vmatprep.subr.mxu0 0.0
    %3249 = vmatpush1.msra.mxu0 0.0
    %3250 = vmatprep.subr.mxu0 0.0
    %3251 = vmatpush1.msra.mxu0 0.0
    %3252 = vmatprep.subr.mxu0 0.0
    %3253 = vmatpush1.msra.mxu0 0.0
    %3254 = vmatprep.subr.mxu0 0.0
    %3255 = vmatpush1.msra.mxu0 0.0
    %3256 = vmatprep.mubr.f32.mxu0 0.0
    %3257 = vmatmul.mubr.f32.gmra.mrb[0].mxu0 %v3190
    %v3258 = vpop.f32.mrb[0].mxu0
    %v3259 = vadd.f32 0.0, %v3258
    %v3260 = vpop.f32.mrb[0].mxu0
    %3261 = vdwg.mxu0
    %3262 = vst.msk [vmem:[#allocation2 + $0x38] sm:$0xff] %vm183, %v3259
    %3263 = vrot.lane.b32.xlu0 %v2851, 8
    %v3264 = vpop.permute.xlu0 %3263
    %3266 = vrot.lane.b32.xlu0 %v3018, 16
    %v3267 = vpop.permute.xlu0 %3266
    %3269 = vrot.lane.b32.xlu0 %v3185, 24
    %v3270 = vpop.permute.xlu0 %3269
    %v3272 = vsel %vm183, %v2684, %v3264
    %v3273 = vsel %vm858, %v3272, %v3267
    %v3274 = vsel %vm860, %v3273, %v3270
    %v3275 = vld [vmem:[#allocation2] ss:$4 sm:$0xff]
    %v3276 = vld [vmem:[%s1545] ss:$4 sm:$0xff]
    %v3277 = vld [vmem:[%s1547] ss:$4 sm:$0xff]
    %v3278 = vld [vmem:[%s1549] ss:$4 sm:$0xff]
    %3280 = vrot.lane.b32.xlu0 %v3276, 8
    %v3281 = vpop.permute.xlu0 %3280
    %3284 = vrot.lane.b32.xlu0 %v3277, 16
    %v3285 = vpop.permute.xlu0 %3284
    %3288 = vrot.lane.b32.xlu0 %v3278, 24
    %v3289 = vpop.permute.xlu0 %3288
    %v3291 = vsel %vm183, %v3275, %v3281
    %v3292 = vsel %vm858, %v3291, %v3285
    %v3293 = vsel %vm860, %v3292, %v3289
    %v3294 = vld [vmem:[%s1566] ss:$4 sm:$0xff]
    %v3295 = vld [vmem:[%s1568] ss:$4 sm:$0xff]
    %v3296 = vld [vmem:[%s1570] ss:$4 sm:$0xff]
    %v3297 = vld [vmem:[%s1572] ss:$4 sm:$0xff]
    %3299 = vrot.lane.b32.xlu0 %v3295, 8
    %v3300 = vpop.permute.xlu0 %3299
    %3303 = vrot.lane.b32.xlu0 %v3296, 16
    %v3304 = vpop.permute.xlu0 %3303
    %3307 = vrot.lane.b32.xlu0 %v3297, 24
    %v3308 = vpop.permute.xlu0 %3307
    %v3310 = vsel %vm183, %v3294, %v3300
    %v3311 = vsel %vm858, %v3310, %v3304
    %v3312 = vsel %vm860, %v3311, %v3308
    %v3313 = vld [vmem:[%s14] sm:$0xff]
    %v3314 = vld [vmem:[%s14 + $0x8] sm:$0xff]
    %v3315 = vld [vmem:[%s14 + $0x10] sm:$0xff]
    %v3316 = vld [vmem:[%s14 + $0x18] sm:$0xff]
    %v3317 = vld [vmem:[%s15] sm:$0x1]
    %v3319 = vlaneseq
    %v3320 = vshrl.u32 %v3319, 7
    %v3321 = vsub.s32 0, %v3320
    %v3322 = vrot.slane %v3317, %v3321
    %v3325 = vsel %vm96, %v3293, 0
    %v3328 = vsel %vm96, %v3312, 0
    %3330 = vmatprep.subr.mxu0 0.0
    %3331 = vmatpush1.msra.mxu0 %v3313
    %3332 = vmatprep.subr.mxu0 0.0
    %3333 = vmatpush1.msra.mxu0 %v3314
    %3334 = vmatprep.subr.mxu0 0.0
    %3335 = vmatpush1.msra.mxu0 %v3315
    %3336 = vmatprep.subr.mxu0 0.0
    %3337 = vmatpush1.msra.mxu0 %v3316
    %3338 = vmatprep.subr.mxu0 0.0
    %3339 = vmatpush1.msra.mxu0 0.0
    %3340 = vmatprep.subr.mxu0 0.0
    %3341 = vmatpush1.msra.mxu0 0.0
    %3342 = vmatprep.subr.mxu0 0.0
    %3343 = vmatpush1.msra.mxu0 0.0
    %3344 = vmatprep.subr.mxu0 0.0
    %3345 = vmatpush1.msra.mxu0 0.0
    %3346 = vmatprep.subr.mxu0 0.0
    %3347 = vmatpush1.msra.mxu0 0.0
    %3348 = vmatprep.subr.mxu0 0.0
    %3349 = vmatpush1.msra.mxu0 0.0
    %3350 = vmatprep.subr.mxu0 0.0
    %3351 = vmatpush1.msra.mxu0 0.0
    %3352 = vmatprep.subr.mxu0 0.0
    %3353 = vmatpush1.msra.mxu0 0.0
    %3354 = vmatprep.subr.mxu0 0.0
    %3355 = vmatpush1.msra.mxu0 0.0
    %3356 = vmatprep.subr.mxu0 0.0
    %3357 = vmatpush1.msra.mxu0 0.0
    %3358 = vmatprep.subr.mxu0 0.0
    %3359 = vmatpush1.msra.mxu0 0.0
    %3360 = vmatprep.subr.mxu0 0.0
    %3361 = vmatpush1.msra.mxu0 0.0
    %3362 = vmatprep.subr.mxu0 0.0
    %3363 = vmatpush1.msra.mxu0 0.0
    %3364 = vmatprep.subr.mxu0 0.0
    %3365 = vmatpush1.msra.mxu0 0.0
    %3366 = vmatprep.subr.mxu0 0.0
    %3367 = vmatpush1.msra.mxu0 0.0
    %3368 = vmatprep.subr.mxu0 0.0
    %3369 = vmatpush1.msra.mxu0 0.0
    %3370 = vmatprep.subr.mxu0 0.0
    %3371 = vmatpush1.msra.mxu0 0.0
    %3372 = vmatprep.subr.mxu0 0.0
    %3373 = vmatpush1.msra.mxu0 0.0
    %3374 = vmatprep.subr.mxu0 0.0
    %3375 = vmatpush1.msra.mxu0 0.0
    %3376 = vmatprep.subr.mxu0 0.0
    %3377 = vmatpush1.msra.mxu0 0.0
    %3378 = vmatprep.subr.mxu0 0.0
    %3379 = vmatpush1.msra.mxu0 0.0
    %3380 = vmatprep.subr.mxu0 0.0
    %3381 = vmatpush1.msra.mxu0 0.0
    %3382 = vmatprep.subr.mxu0 0.0
    %3383 = vmatpush1.msra.mxu0 0.0
    %3384 = vmatprep.subr.mxu0 0.0
    %3385 = vmatpush1.msra.mxu0 0.0
    %3386 = vmatprep.subr.mxu0 0.0
    %3387 = vmatpush1.msra.mxu0 0.0
    %3388 = vmatprep.subr.mxu0 0.0
    %3389 = vmatpush1.msra.mxu0 0.0
    %3390 = vmatprep.subr.mxu0 0.0
    %3391 = vmatpush1.msra.mxu0 0.0
    %3392 = vmatprep.subr.mxu0 0.0
    %3393 = vmatpush1.msra.mxu0 0.0
    %3394 = vmatprep.mubr.f32.mxu0 0.0
    %3395 = vmatmul.mubr.f32.gmra.mrb[0].mxu0 %v3325
    %v3396 = vpop.f32.mrb[0].mxu0
    %v3397 = vadd.f32 %v3322, %v3396
    %v3398 = vpop.f32.mrb[0].mxu0
    %3399 = vmatprep.mubr.f32.mxu0 0.0
    %3400 = vmatmul.mubr.f32.gmra.mrb[0].mxu0 %v3328
    %v3401 = vpop.f32.mrb[0].mxu0
    %v3402 = vadd.f32 %v3322, %v3401
    %v3403 = vpop.f32.mrb[0].mxu0
    %3404 = vdwg.mxu0
    %3405 = vst.msk [vmem:[%s25] sm:$0xff] %vm96, %v2593
    %3406 = vst.msk [vmem:[%s25 + $0x8] sm:$0xff] %vm96, %v3274
    %v3407 = vadd.f32 %v3397, %v1728
    %v3408 = vadd.f32 %v3402, %v1729
    %v3409 = vsel %vm96, %v3407, 0.0
    %3410 = vadd.xlane.f32.xlu0 %v3409
    %v3411 = vpop.xlane.xlu0 %3410
    %v3412 = vsel %vm96, %v3408, 0.0
    %3413 = vadd.xlane.f32.xlu0 %v3412
    %v3414 = vpop.xlane.xlu0 %3413
    %v3415 = vmul.f32 %v3411, %v1691
    %v3416 = vmul.f32 %v3414, %v1691
    %v3417 = vsub.f32 %v3407, %v3415
    %v3418 = vsub.f32 %v3408, %v3416
    %v3419 = vmul.f32 %v3417, %v3417
    %v3420 = vmul.f32 %v3418, %v3418
    %v3421 = vsel %vm96, %v3419, 0.0
    %3422 = vadd.xlane.f32.xlu0 %v3421
    %v3423 = vpop.xlane.xlu0 %3422
    %v3424 = vsel %vm96, %v3420, 0.0
    %3425 = vadd.xlane.f32.xlu0 %v3424
    %v3426 = vpop.xlane.xlu0 %3425
    %v3427 = vmul.f32 %v3423, %v1691
    %v3428 = vmul.f32 %v3426, %v1691
    %v3429 = vadd.f32 %v3427, 1e-05
    %v3430 = vadd.f32 %v3428, 1e-05
    %v3431 = vrsqrt.pop %v3429
    %v3432 = vrsqrt.pop %v3430
    %v3433 = vmul.f32 %v3417, %v3431
    %v3434 = vmul.f32 %v3418, %v3432
    %v3435 = vld [vmem:[%s16] sm:$0x1]
    %v3437 = vlaneseq
    %v3438 = vshrl.u32 %v3437, 7
    %v3439 = vsub.s32 0, %v3438
    %v3440 = vrot.slane %v3435, %v3439
    %v3442 = vmul.f32 %v3433, %v3440
    %v3443 = vmul.f32 %v3434, %v3440
    %v3444 = vld [vmem:[%s17] sm:$0x1]
    %v3446 = vlaneseq
    %v3447 = vshrl.u32 %v3446, 7
    %v3448 = vsub.s32 0, %v3447
    %v3449 = vrot.slane %v3444, %v3448
    %v3451 = vadd.f32 %v3442, %v3449
    %v3452 = vadd.f32 %v3443, %v3449
    %v3453 = vld [vmem:[%s18] sm:$0xff]
    %v3454 = vld [vmem:[%s18 + $0x8] sm:$0xff]
    %v3455 = vld [vmem:[%s18 + $0x10] sm:$0xff]
    %v3456 = vld [vmem:[%s18 + $0x18] sm:$0xff]
    %v3457 = vld [vmem:[%s18 + $0x20] sm:$0xff]
    %v3458 = vld [vmem:[%s18 + $0x28] sm:$0xff]
    %v3459 = vld [vmem:[%s18 + $0x30] sm:$0xff]
    %v3460 = vld [vmem:[%s18 + $0x38] sm:$0xff]
    %v3461 = vld [vmem:[%s18 + $0x40] sm:$0xff]
    %v3462 = vld [vmem:[%s18 + $0x48] sm:$0xff]
    %v3463 = vld [vmem:[%s18 + $0x50] sm:$0xff]
    %v3464 = vld [vmem:[%s18 + $0x58] sm:$0xff]
    %v3465 = vld [vmem:[%s18 + $0x60] sm:$0xff]
    %v3466 = vld [vmem:[%s18 + $0x68] sm:$0xff]
    %v3467 = vld [vmem:[%s18 + $0x70] sm:$0xff]
    %v3468 = vld [vmem:[%s18 + $0x78] sm:$0xff]
    %v3469 = vld [vmem:[%s18 + $0x80] sm:$0xff]
    %v3470 = vld [vmem:[%s18 + $0x88] sm:$0xff]
    %v3471 = vld [vmem:[%s18 + $0x90] sm:$0xff]
    %v3472 = vld [vmem:[%s18 + $0x98] sm:$0xff]
    %v3473 = vld [vmem:[%s18 + $0xa0] sm:$0xff]
    %v3474 = vld [vmem:[%s18 + $0xa8] sm:$0xff]
    %v3475 = vld [vmem:[%s18 + $0xb0] sm:$0xff]
    %v3476 = vld [vmem:[%s18 + $0xb8] sm:$0xff]
    %v3477 = vld [vmem:[%s18 + $0xc0] sm:$0xff]
    %v3478 = vld [vmem:[%s18 + $0xc8] sm:$0xff]
    %v3479 = vld [vmem:[%s18 + $0xd0] sm:$0xff]
    %v3480 = vld [vmem:[%s18 + $0xd8] sm:$0xff]
    %v3481 = vld [vmem:[%s18 + $0xe0] sm:$0xff]
    %v3482 = vld [vmem:[%s18 + $0xe8] sm:$0xff]
    %v3483 = vld [vmem:[%s18 + $0xf0] sm:$0xff]
    %v3484 = vld [vmem:[%s18 + $0xf8] sm:$0xff]
    %v3485 = vld [vmem:[%s19] sm:$0xff]
    %v3487 = vlaneseq
    %v3488 = vshrl.u32 %v3487, 7
    %v3489 = vsub.s32 0, %v3488
    %v3490 = vrot.slane %v3485, %v3489
    %v3491 = vlaneseq
    %v3492 = vshrl.u32 %v3491, 7
    %v3493 = vsub.s32 1, %v3492
    %v3494 = vrot.slane %v3485, %v3493
    %v3495 = vlaneseq
    %v3496 = vshrl.u32 %v3495, 7
    %v3497 = vsub.s32 2, %v3496
    %v3498 = vrot.slane %v3485, %v3497
    %v3499 = vlaneseq
    %v3500 = vshrl.u32 %v3499, 7
    %v3501 = vsub.s32 3, %v3500
    %v3502 = vrot.slane %v3485, %v3501
    %v3503 = vlaneseq
    %v3504 = vshrl.u32 %v3503, 7
    %v3505 = vsub.s32 4, %v3504
    %v3506 = vrot.slane %v3485, %v3505
    %v3507 = vlaneseq
    %v3508 = vshrl.u32 %v3507, 7
    %v3509 = vsub.s32 5, %v3508
    %v3510 = vrot.slane %v3485, %v3509
    %v3511 = vlaneseq
    %v3512 = vshrl.u32 %v3511, 7
    %v3513 = vsub.s32 6, %v3512
    %v3514 = vrot.slane %v3485, %v3513
    %v3515 = vlaneseq
    %v3516 = vshrl.u32 %v3515, 7
    %v3517 = vsub.s32 7, %v3516
    %v3518 = vrot.slane %v3485, %v3517
    %v3528 = vsel %vm96, %v3451, 0
    %v3531 = vsel %vm96, %v3452, 0
    %3533 = vmatprep.subr.mxu0 %v3454
    %3534 = vmatpush1.msra.mxu0 %v3453
    %3535 = vmatprep.subr.mxu0 %v3462
    %3536 = vmatpush1.msra.mxu0 %v3461
    %3537 = vmatprep.subr.mxu0 %v3470
    %3538 = vmatpush1.msra.mxu0 %v3469
    %3539 = vmatprep.subr.mxu0 %v3478
    %3540 = vmatpush1.msra.mxu0 %v3477
    %3541 = vmatprep.subr.mxu0 0.0
    %3542 = vmatpush1.msra.mxu0 0.0
    %3543 = vmatprep.subr.mxu0 0.0
    %3544 = vmatpush1.msra.mxu0 0.0
    %3545 = vmatprep.subr.mxu0 0.0
    %3546 = vmatpush1.msra.mxu0 0.0
    %3547 = vmatprep.subr.mxu0 0.0
    %3548 = vmatpush1.msra.mxu0 0.0
    %3549 = vmatprep.subr.mxu0 0.0
    %3550 = vmatpush1.msra.mxu0 0.0
    %3551 = vmatprep.subr.mxu0 0.0
    %3552 = vmatpush1.msra.mxu0 0.0
    %3553 = vmatprep.subr.mxu0 0.0
    %3554 = vmatpush1.msra.mxu0 0.0
    %3555 = vmatprep.subr.mxu0 0.0
    %3556 = vmatpush1.msra.mxu0 0.0
    %3557 = vmatprep.subr.mxu0 0.0
    %3558 = vmatpush1.msra.mxu0 0.0
    %3559 = vmatprep.subr.mxu0 0.0
    %3560 = vmatpush1.msra.mxu0 0.0
    %3561 = vmatprep.subr.mxu0 0.0
    %3562 = vmatpush1.msra.mxu0 0.0
    %3563 = vmatprep.subr.mxu0 0.0
    %3564 = vmatpush1.msra.mxu0 0.0
    %3565 = vmatprep.subr.mxu0 0.0
    %3566 = vmatpush1.msra.mxu0 0.0
    %3567 = vmatprep.subr.mxu0 0.0
    %3568 = vmatpush1.msra.mxu0 0.0
    %3569 = vmatprep.subr.mxu0 0.0
    %3570 = vmatpush1.msra.mxu0 0.0
    %3571 = vmatprep.subr.mxu0 0.0
    %3572 = vmatpush1.msra.mxu0 0.0
    %3573 = vmatprep.subr.mxu0 0.0
    %3574 = vmatpush1.msra.mxu0 0.0
    %3575 = vmatprep.subr.mxu0 0.0
    %3576 = vmatpush1.msra.mxu0 0.0
    %3577 = vmatprep.subr.mxu0 0.0
    %3578 = vmatpush1.msra.mxu0 0.0
    %3579 = vmatprep.subr.mxu0 0.0
    %3580 = vmatpush1.msra.mxu0 0.0
    %3581 = vmatprep.subr.mxu0 0.0
    %3582 = vmatpush1.msra.mxu0 0.0
    %3583 = vmatprep.subr.mxu0 0.0
    %3584 = vmatpush1.msra.mxu0 0.0
    %3585 = vmatprep.subr.mxu0 0.0
    %3586 = vmatpush1.msra.mxu0 0.0
    %3587 = vmatprep.subr.mxu0 0.0
    %3588 = vmatpush1.msra.mxu0 0.0
    %3589 = vmatprep.subr.mxu0 0.0
    %3590 = vmatpush1.msra.mxu0 0.0
    %3591 = vmatprep.subr.mxu0 0.0
    %3592 = vmatpush1.msra.mxu0 0.0
    %3593 = vmatprep.subr.mxu0 0.0
    %3594 = vmatpush1.msra.mxu0 0.0
    %3595 = vmatprep.subr.mxu0 0.0
    %3596 = vmatpush1.msra.mxu0 0.0
    %3597 = vmatprep.mubr.f32.mxu0 0.0
    %3598 = vmatmul.mubr.f32.gmra.mrb[0].mxu0 %v3528
    %v3599 = vpop.f32.mrb[0].mxu0
    %v3600 = vadd.f32 %v3490, %v3599
    %v3601 = vpop.f32.mrb[0].mxu0
    %v3602 = vadd.f32 %v3494, %v3601
    %3603 = vmatprep.mubr.f32.mxu0 0.0
    %3604 = vmatmul.mubr.f32.gmra.mrb[0].mxu0 %v3531
    %v3605 = vpop.f32.mrb[0].mxu0
    %v3606 = vadd.f32 %v3490, %v3605
    %v3607 = vpop.f32.mrb[0].mxu0
    %v3608 = vadd.f32 %v3494, %v3607
    %3609 = vdwg.mxu0
    %3610 = vmatprep.subr.mxu0 %v3456
    %3611 = vmatpush1.msra.mxu0 %v3455
    %3612 = vmatprep.subr.mxu0 %v3464
    %3613 = vmatpush1.msra.mxu0 %v3463
    %3614 = vmatprep.subr.mxu0 %v3472
    %3615 = vmatpush1.msra.mxu0 %v3471
    %3616 = vmatprep.subr.mxu0 %v3480
    %3617 = vmatpush1.msra.mxu0 %v3479
    %3618 = vmatprep.subr.mxu0 0.0
    %3619 = vmatpush1.msra.mxu0 0.0
    %3620 = vmatprep.subr.mxu0 0.0
    %3621 = vmatpush1.msra.mxu0 0.0
    %3622 = vmatprep.subr.mxu0 0.0
    %3623 = vmatpush1.msra.mxu0 0.0
    %3624 = vmatprep.subr.mxu0 0.0
    %3625 = vmatpush1.msra.mxu0 0.0
    %3626 = vmatprep.subr.mxu0 0.0
    %3627 = vmatpush1.msra.mxu0 0.0
    %3628 = vmatprep.subr.mxu0 0.0
    %3629 = vmatpush1.msra.mxu0 0.0
    %3630 = vmatprep.subr.mxu0 0.0
    %3631 = vmatpush1.msra.mxu0 0.0
    %3632 = vmatprep.subr.mxu0 0.0
    %3633 = vmatpush1.msra.mxu0 0.0
    %3634 = vmatprep.subr.mxu0 0.0
    %3635 = vmatpush1.msra.mxu0 0.0
    %3636 = vmatprep.subr.mxu0 0.0
    %3637 = vmatpush1.msra.mxu0 0.0
    %3638 = vmatprep.subr.mxu0 0.0
    %3639 = vmatpush1.msra.mxu0 0.0
    %3640 = vmatprep.subr.mxu0 0.0
    %3641 = vmatpush1.msra.mxu0 0.0
    %3642 = vmatprep.subr.mxu0 0.0
    %3643 = vmatpush1.msra.mxu0 0.0
    %3644 = vmatprep.subr.mxu0 0.0
    %3645 = vmatpush1.msra.mxu0 0.0
    %3646 = vmatprep.subr.mxu0 0.0
    %3647 = vmatpush1.msra.mxu0 0.0
    %3648 = vmatprep.subr.mxu0 0.0
    %3649 = vmatpush1.msra.mxu0 0.0
    %3650 = vmatprep.subr.mxu0 0.0
    %3651 = vmatpush1.msra.mxu0 0.0
    %3652 = vmatprep.subr.mxu0 0.0
    %3653 = vmatpush1.msra.mxu0 0.0
    %3654 = vmatprep.subr.mxu0 0.0
    %3655 = vmatpush1.msra.mxu0 0.0
    %3656 = vmatprep.subr.mxu0 0.0
    %3657 = vmatpush1.msra.mxu0 0.0
    %3658 = vmatprep.subr.mxu0 0.0
    %3659 = vmatpush1.msra.mxu0 0.0
    %3660 = vmatprep.subr.mxu0 0.0
    %3661 = vmatpush1.msra.mxu0 0.0
    %3662 = vmatprep.subr.mxu0 0.0
    %3663 = vmatpush1.msra.mxu0 0.0
    %3664 = vmatprep.subr.mxu0 0.0
    %3665 = vmatpush1.msra.mxu0 0.0
    %3666 = vmatprep.subr.mxu0 0.0
    %3667 = vmatpush1.msra.mxu0 0.0
    %3668 = vmatprep.subr.mxu0 0.0
    %3669 = vmatpush1.msra.mxu0 0.0
    %3670 = vmatprep.subr.mxu0 0.0
    %3671 = vmatpush1.msra.mxu0 0.0
    %3672 = vmatprep.subr.mxu0 0.0
    %3673 = vmatpush1.msra.mxu0 0.0
    %3674 = vmatprep.mubr.f32.mxu0 0.0
    %3675 = vmatmul.mubr.f32.gmra.mrb[0].mxu0 %v3528
    %v3676 = vpop.f32.mrb[0].mxu0
    %v3677 = vadd.f32 %v3498, %v3676
    %v3678 = vpop.f32.mrb[0].mxu0
    %v3679 = vadd.f32 %v3502, %v3678
    %3680 = vmatprep.mubr.f32.mxu0 0.0
    %3681 = vmatmul.mubr.f32.gmra.mrb[0].mxu0 %v3531
    %v3682 = vpop.f32.mrb[0].mxu0
    %v3683 = vadd.f32 %v3498, %v3682
    %v3684 = vpop.f32.mrb[0].mxu0
    %v3685 = vadd.f32 %v3502, %v3684
    %3686 = vdwg.mxu0
    %3687 = vmatprep.subr.mxu0 %v3458
    %3688 = vmatpush1.msra.mxu0 %v3457
    %3689 = vmatprep.subr.mxu0 %v3466
    %3690 = vmatpush1.msra.mxu0 %v3465
    %3691 = vmatprep.subr.mxu0 %v3474
    %3692 = vmatpush1.msra.mxu0 %v3473
    %3693 = vmatprep.subr.mxu0 %v3482
    %3694 = vmatpush1.msra.mxu0 %v3481
    %3695 = vmatprep.subr.mxu0 0.0
    %3696 = vmatpush1.msra.mxu0 0.0
    %3697 = vmatprep.subr.mxu0 0.0
    %3698 = vmatpush1.msra.mxu0 0.0
    %3699 = vmatprep.subr.mxu0 0.0
    %3700 = vmatpush1.msra.mxu0 0.0
    %3701 = vmatprep.subr.mxu0 0.0
    %3702 = vmatpush1.msra.mxu0 0.0
    %3703 = vmatprep.subr.mxu0 0.0
    %3704 = vmatpush1.msra.mxu0 0.0
    %3705 = vmatprep.subr.mxu0 0.0
    %3706 = vmatpush1.msra.mxu0 0.0
    %3707 = vmatprep.subr.mxu0 0.0
    %3708 = vmatpush1.msra.mxu0 0.0
    %3709 = vmatprep.subr.mxu0 0.0
    %3710 = vmatpush1.msra.mxu0 0.0
    %3711 = vmatprep.subr.mxu0 0.0
    %3712 = vmatpush1.msra.mxu0 0.0
    %3713 = vmatprep.subr.mxu0 0.0
    %3714 = vmatpush1.msra.mxu0 0.0
    %3715 = vmatprep.subr.mxu0 0.0
    %3716 = vmatpush1.msra.mxu0 0.0
    %3717 = vmatprep.subr.mxu0 0.0
    %3718 = vmatpush1.msra.mxu0 0.0
    %3719 = vmatprep.subr.mxu0 0.0
    %3720 = vmatpush1.msra.mxu0 0.0
    %3721 = vmatprep.subr.mxu0 0.0
    %3722 = vmatpush1.msra.mxu0 0.0
    %3723 = vmatprep.subr.mxu0 0.0
    %3724 = vmatpush1.msra.mxu0 0.0
    %3725 = vmatprep.subr.mxu0 0.0
    %3726 = vmatpush1.msra.mxu0 0.0
    %3727 = vmatprep.subr.mxu0 0.0
    %3728 = vmatpush1.msra.mxu0 0.0
    %3729 = vmatprep.subr.mxu0 0.0
    %3730 = vmatpush1.msra.mxu0 0.0
    %3731 = vmatprep.subr.mxu0 0.0
    %3732 = vmatpush1.msra.mxu0 0.0
    %3733 = vmatprep.subr.mxu0 0.0
    %3734 = vmatpush1.msra.mxu0 0.0
    %3735 = vmatprep.subr.mxu0 0.0
    %3736 = vmatpush1.msra.mxu0 0.0
    %3737 = vmatprep.subr.mxu0 0.0
    %3738 = vmatpush1.msra.mxu0 0.0
    %3739 = vmatprep.subr.mxu0 0.0
    %3740 = vmatpush1.msra.mxu0 0.0
    %3741 = vmatprep.subr.mxu0 0.0
    %3742 = vmatpush1.msra.mxu0 0.0
    %3743 = vmatprep.subr.mxu0 0.0
    %3744 = vmatpush1.msra.mxu0 0.0
    %3745 = vmatprep.subr.mxu0 0.0
    %3746 = vmatpush1.msra.mxu0 0.0
    %3747 = vmatprep.subr.mxu0 0.0
    %3748 = vmatpush1.msra.mxu0 0.0
    %3749 = vmatprep.subr.mxu0 0.0
    %3750 = vmatpush1.msra.mxu0 0.0
    %3751 = vmatprep.mubr.f32.mxu0 0.0
    %3752 = vmatmul.mubr.f32.gmra.mrb[0].mxu0 %v3528
    %v3753 = vpop.f32.mrb[0].mxu0
    %v3754 = vadd.f32 %v3506, %v3753
    %v3755 = vpop.f32.mrb[0].mxu0
    %v3756 = vadd.f32 %v3510, %v3755
    %3757 = vmatprep.mubr.f32.mxu0 0.0
    %3758 = vmatmul.mubr.f32.gmra.mrb[0].mxu0 %v3531
    %v3759 = vpop.f32.mrb[0].mxu0
    %v3760 = vadd.f32 %v3506, %v3759
    %v3761 = vpop.f32.mrb[0].mxu0
    %v3762 = vadd.f32 %v3510, %v3761
    %3763 = vdwg.mxu0
    %3764 = vmatprep.subr.mxu0 %v3460
    %3765 = vmatpush1.msra.mxu0 %v3459
    %3766 = vmatprep.subr.mxu0 %v3468
    %3767 = vmatpush1.msra.mxu0 %v3467
    %3768 = vmatprep.subr.mxu0 %v3476
    %3769 = vmatpush1.msra.mxu0 %v3475
    %3770 = vmatprep.subr.mxu0 %v3484
    %3771 = vmatpush1.msra.mxu0 %v3483
    %3772 = vmatprep.subr.mxu0 0.0
    %3773 = vmatpush1.msra.mxu0 0.0
    %3774 = vmatprep.subr.mxu0 0.0
    %3775 = vmatpush1.msra.mxu0 0.0
    %3776 = vmatprep.subr.mxu0 0.0
    %3777 = vmatpush1.msra.mxu0 0.0
    %3778 = vmatprep.subr.mxu0 0.0
    %3779 = vmatpush1.msra.mxu0 0.0
    %3780 = vmatprep.subr.mxu0 0.0
    %3781 = vmatpush1.msra.mxu0 0.0
    %3782 = vmatprep.subr.mxu0 0.0
    %3783 = vmatpush1.msra.mxu0 0.0
    %3784 = vmatprep.subr.mxu0 0.0
    %3785 = vmatpush1.msra.mxu0 0.0
    %3786 = vmatprep.subr.mxu0 0.0
    %3787 = vmatpush1.msra.mxu0 0.0
    %3788 = vmatprep.subr.mxu0 0.0
    %3789 = vmatpush1.msra.mxu0 0.0
    %3790 = vmatprep.subr.mxu0 0.0
    %3791 = vmatpush1.msra.mxu0 0.0
    %3792 = vmatprep.subr.mxu0 0.0
    %3793 = vmatpush1.msra.mxu0 0.0
    %3794 = vmatprep.subr.mxu0 0.0
    %3795 = vmatpush1.msra.mxu0 0.0
    %3796 = vmatprep.subr.mxu0 0.0
    %3797 = vmatpush1.msra.mxu0 0.0
    %3798 = vmatprep.subr.mxu0 0.0
    %3799 = vmatpush1.msra.mxu0 0.0
    %3800 = vmatprep.subr.mxu0 0.0
    %3801 = vmatpush1.msra.mxu0 0.0
    %3802 = vmatprep.subr.mxu0 0.0
    %3803 = vmatpush1.msra.mxu0 0.0
    %3804 = vmatprep.subr.mxu0 0.0
    %3805 = vmatpush1.msra.mxu0 0.0
    %3806 = vmatprep.subr.mxu0 0.0
    %3807 = vmatpush1.msra.mxu0 0.0
    %3808 = vmatprep.subr.mxu0 0.0
    %3809 = vmatpush1.msra.mxu0 0.0
    %3810 = vmatprep.subr.mxu0 0.0
    %3811 = vmatpush1.msra.mxu0 0.0
    %3812 = vmatprep.subr.mxu0 0.0
    %3813 = vmatpush1.msra.mxu0 0.0
    %3814 = vmatprep.subr.mxu0 0.0
    %3815 = vmatpush1.msra.mxu0 0.0
    %3816 = vmatprep.subr.mxu0 0.0
    %3817 = vmatpush1.msra.mxu0 0.0
    %3818 = vmatprep.subr.mxu0 0.0
    %3819 = vmatpush1.msra.mxu0 0.0
    %3820 = vmatprep.subr.mxu0 0.0
    %3821 = vmatpush1.msra.mxu0 0.0
    %3822 = vmatprep.subr.mxu0 0.0
    %3823 = vmatpush1.msra.mxu0 0.0
    %3824 = vmatprep.subr.mxu0 0.0
    %3825 = vmatpush1.msra.mxu0 0.0
    %3826 = vmatprep.subr.mxu0 0.0
    %3827 = vmatpush1.msra.mxu0 0.0
    %3828 = vmatprep.mubr.f32.mxu0 0.0
    %3829 = vmatmul.mubr.f32.gmra.mrb[0].mxu0 %v3528
    %v3830 = vpop.f32.mrb[0].mxu0
    %v3831 = vadd.f32 %v3514, %v3830
    %v3832 = vpop.f32.mrb[0].mxu0
    %v3833 = vadd.f32 %v3518, %v3832
    %3834 = vmatprep.mubr.f32.mxu0 0.0
    %3835 = vmatmul.mubr.f32.gmra.mrb[0].mxu0 %v3531
    %v3836 = vpop.f32.mrb[0].mxu0
    %v3837 = vadd.f32 %v3514, %v3836
    %v3838 = vpop.f32.mrb[0].mxu0
    %v3839 = vadd.f32 %v3518, %v3838
    %3840 = vdwg.mxu0
    %v3841 = vld [vmem:[%s20] sm:$0xff]
    %v3842 = vld [vmem:[%s20 + $0x8] sm:$0xff]
    %v3843 = vld [vmem:[%s20 + $0x10] sm:$0xff]
    %v3844 = vld [vmem:[%s20 + $0x18] sm:$0xff]
    %v3845 = vld [vmem:[%s20 + $0x20] sm:$0xff]
    %v3846 = vld [vmem:[%s20 + $0x28] sm:$0xff]
    %v3847 = vld [vmem:[%s20 + $0x30] sm:$0xff]
    %v3848 = vld [vmem:[%s20 + $0x38] sm:$0xff]
    %v3849 = vld [vmem:[%s20 + $0x40] sm:$0xff]
    %v3850 = vld [vmem:[%s20 + $0x48] sm:$0xff]
    %v3851 = vld [vmem:[%s20 + $0x50] sm:$0xff]
    %v3852 = vld [vmem:[%s20 + $0x58] sm:$0xff]
    %v3853 = vld [vmem:[%s20 + $0x60] sm:$0xff]
    %v3854 = vld [vmem:[%s20 + $0x68] sm:$0xff]
    %v3855 = vld [vmem:[%s20 + $0x70] sm:$0xff]
    %v3856 = vld [vmem:[%s20 + $0x78] sm:$0xff]
    %v3857 = vld [vmem:[%s20 + $0x80] sm:$0xff]
    %v3858 = vld [vmem:[%s20 + $0x88] sm:$0xff]
    %v3859 = vld [vmem:[%s20 + $0x90] sm:$0xff]
    %v3860 = vld [vmem:[%s20 + $0x98] sm:$0xff]
    %v3861 = vld [vmem:[%s20 + $0xa0] sm:$0xff]
    %v3862 = vld [vmem:[%s20 + $0xa8] sm:$0xff]
    %v3863 = vld [vmem:[%s20 + $0xb0] sm:$0xff]
    %v3864 = vld [vmem:[%s20 + $0xb8] sm:$0xff]
    %v3865 = vld [vmem:[%s20 + $0xc0] sm:$0xff]
    %v3866 = vld [vmem:[%s20 + $0xc8] sm:$0xff]
    %v3867 = vld [vmem:[%s20 + $0xd0] sm:$0xff]
    %v3868 = vld [vmem:[%s20 + $0xd8] sm:$0xff]
    %v3869 = vld [vmem:[%s20 + $0xe0] sm:$0xff]
    %v3870 = vld [vmem:[%s20 + $0xe8] sm:$0xff]
    %v3871 = vld [vmem:[%s20 + $0xf0] sm:$0xff]
    %v3872 = vld [vmem:[%s20 + $0xf8] sm:$0xff]
    %v3873 = vld [vmem:[%s20 + $0x100] sm:$0xff]
    %v3874 = vld [vmem:[%s20 + $0x108] sm:$0xff]
    %v3875 = vld [vmem:[%s20 + $0x110] sm:$0xff]
    %v3876 = vld [vmem:[%s20 + $0x118] sm:$0xff]
    %v3877 = vld [vmem:[%s20 + $0x120] sm:$0xff]
    %v3878 = vld [vmem:[%s20 + $0x128] sm:$0xff]
    %v3879 = vld [vmem:[%s20 + $0x130] sm:$0xff]
    %v3880 = vld [vmem:[%s20 + $0x138] sm:$0xff]
    %v3881 = vld [vmem:[%s20 + $0x140] sm:$0xff]
    %v3882 = vld [vmem:[%s20 + $0x148] sm:$0xff]
    %v3883 = vld [vmem:[%s20 + $0x150] sm:$0xff]
    %v3884 = vld [vmem:[%s20 + $0x158] sm:$0xff]
    %v3885 = vld [vmem:[%s20 + $0x160] sm:$0xff]
    %v3886 = vld [vmem:[%s20 + $0x168] sm:$0xff]
    %v3887 = vld [vmem:[%s20 + $0x170] sm:$0xff]
    %v3888 = vld [vmem:[%s20 + $0x178] sm:$0xff]
    %v3889 = vld [vmem:[%s20 + $0x180] sm:$0xff]
    %v3890 = vld [vmem:[%s20 + $0x188] sm:$0xff]
    %v3891 = vld [vmem:[%s20 + $0x190] sm:$0xff]
    %v3892 = vld [vmem:[%s20 + $0x198] sm:$0xff]
    %v3893 = vld [vmem:[%s20 + $0x1a0] sm:$0xff]
    %v3894 = vld [vmem:[%s20 + $0x1a8] sm:$0xff]
    %v3895 = vld [vmem:[%s20 + $0x1b0] sm:$0xff]
    %v3896 = vld [vmem:[%s20 + $0x1b8] sm:$0xff]
    %v3897 = vld [vmem:[%s20 + $0x1c0] sm:$0xff]
    %v3898 = vld [vmem:[%s20 + $0x1c8] sm:$0xff]
    %v3899 = vld [vmem:[%s20 + $0x1d0] sm:$0xff]
    %v3900 = vld [vmem:[%s20 + $0x1d8] sm:$0xff]
    %v3901 = vld [vmem:[%s20 + $0x1e0] sm:$0xff]
    %v3902 = vld [vmem:[%s20 + $0x1e8] sm:$0xff]
    %v3903 = vld [vmem:[%s20 + $0x1f0] sm:$0xff]
    %v3904 = vld [vmem:[%s20 + $0x1f8] sm:$0xff]
    %v3905 = vld [vmem:[%s20 + $0x200] sm:$0xff]
    %v3906 = vld [vmem:[%s20 + $0x208] sm:$0xff]
    %v3907 = vld [vmem:[%s20 + $0x210] sm:$0xff]
    %v3908 = vld [vmem:[%s20 + $0x218] sm:$0xff]
    %v3909 = vld [vmem:[%s20 + $0x220] sm:$0xff]
    %v3910 = vld [vmem:[%s20 + $0x228] sm:$0xff]
    %v3911 = vld [vmem:[%s20 + $0x230] sm:$0xff]
    %v3912 = vld [vmem:[%s20 + $0x238] sm:$0xff]
    %v3913 = vld [vmem:[%s20 + $0x240] sm:$0xff]
    %v3914 = vld [vmem:[%s20 + $0x248] sm:$0xff]
    %v3915 = vld [vmem:[%s20 + $0x250] sm:$0xff]
    %v3916 = vld [vmem:[%s20 + $0x258] sm:$0xff]
    %v3917 = vld [vmem:[%s20 + $0x260] sm:$0xff]
    %v3918 = vld [vmem:[%s20 + $0x268] sm:$0xff]
    %v3919 = vld [vmem:[%s20 + $0x270] sm:$0xff]
    %v3920 = vld [vmem:[%s20 + $0x278] sm:$0xff]
    %v3921 = vld [vmem:[%s20 + $0x280] sm:$0xff]
    %v3922 = vld [vmem:[%s20 + $0x288] sm:$0xff]
    %v3923 = vld [vmem:[%s20 + $0x290] sm:$0xff]
    %v3924 = vld [vmem:[%s20 + $0x298] sm:$0xff]
    %v3925 = vld [vmem:[%s20 + $0x2a0] sm:$0xff]
    %v3926 = vld [vmem:[%s20 + $0x2a8] sm:$0xff]
    %v3927 = vld [vmem:[%s20 + $0x2b0] sm:$0xff]
    %v3928 = vld [vmem:[%s20 + $0x2b8] sm:$0xff]
    %v3929 = vld [vmem:[%s20 + $0x2c0] sm:$0xff]
    %v3930 = vld [vmem:[%s20 + $0x2c8] sm:$0xff]
    %v3931 = vld [vmem:[%s20 + $0x2d0] sm:$0xff]
    %v3932 = vld [vmem:[%s20 + $0x2d8] sm:$0xff]
    %v3933 = vld [vmem:[%s20 + $0x2e0] sm:$0xff]
    %v3934 = vld [vmem:[%s20 + $0x2e8] sm:$0xff]
    %v3935 = vld [vmem:[%s20 + $0x2f0] sm:$0xff]
    %v3936 = vld [vmem:[%s20 + $0x2f8] sm:$0xff]
    %v3937 = vld [vmem:[%s20 + $0x300] sm:$0xff]
    %v3938 = vld [vmem:[%s20 + $0x308] sm:$0xff]
    %v3939 = vld [vmem:[%s20 + $0x310] sm:$0xff]
    %v3940 = vld [vmem:[%s20 + $0x318] sm:$0xff]
    %v3941 = vld [vmem:[%s20 + $0x320] sm:$0xff]
    %v3942 = vld [vmem:[%s20 + $0x328] sm:$0xff]
    %v3943 = vld [vmem:[%s20 + $0x330] sm:$0xff]
    %v3944 = vld [vmem:[%s20 + $0x338] sm:$0xff]
    %v3945 = vld [vmem:[%s20 + $0x340] sm:$0xff]
    %v3946 = vld [vmem:[%s20 + $0x348] sm:$0xff]
    %v3947 = vld [vmem:[%s20 + $0x350] sm:$0xff]
    %v3948 = vld [vmem:[%s20 + $0x358] sm:$0xff]
    %v3949 = vld [vmem:[%s20 + $0x360] sm:$0xff]
    %v3950 = vld [vmem:[%s20 + $0x368] sm:$0xff]
    %v3951 = vld [vmem:[%s20 + $0x370] sm:$0xff]
    %v3952 = vld [vmem:[%s20 + $0x378] sm:$0xff]
    %v3953 = vld [vmem:[%s20 + $0x380] sm:$0xff]
    %v3954 = vld [vmem:[%s20 + $0x388] sm:$0xff]
    %v3955 = vld [vmem:[%s20 + $0x390] sm:$0xff]
    %v3956 = vld [vmem:[%s20 + $0x398] sm:$0xff]
    %v3957 = vld [vmem:[%s20 + $0x3a0] sm:$0xff]
    %v3958 = vld [vmem:[%s20 + $0x3a8] sm:$0xff]
    %v3959 = vld [vmem:[%s20 + $0x3b0] sm:$0xff]
    %v3960 = vld [vmem:[%s20 + $0x3b8] sm:$0xff]
    %v3961 = vld [vmem:[%s20 + $0x3c0] sm:$0xff]
    %v3962 = vld [vmem:[%s20 + $0x3c8] sm:$0xff]
    %v3963 = vld [vmem:[%s20 + $0x3d0] sm:$0xff]
    %v3964 = vld [vmem:[%s20 + $0x3d8] sm:$0xff]
    %v3965 = vld [vmem:[%s20 + $0x3e0] sm:$0xff]
    %v3966 = vld [vmem:[%s20 + $0x3e8] sm:$0xff]
    %v3967 = vld [vmem:[%s20 + $0x3f0] sm:$0xff]
    %v3968 = vld [vmem:[%s20 + $0x3f8] sm:$0xff]
    %v3969 = vld [vmem:[%s21] sm:$0x1]
    %v3971 = vlaneseq
    %v3972 = vshrl.u32 %v3971, 7
    %v3973 = vsub.s32 0, %v3972
    %v3974 = vrot.slane %v3969, %v3973
    %3976 = vmatprep.subr.mxu0 0.0
    %3977 = vmatpush1.msra.mxu0 %v3841
    %3978 = vmatprep.subr.mxu0 0.0
    %3979 = vmatpush1.msra.mxu0 %v3842
    %3980 = vmatprep.subr.mxu0 0.0
    %3981 = vmatpush1.msra.mxu0 %v3843
    %3982 = vmatprep.subr.mxu0 0.0
    %3983 = vmatpush1.msra.mxu0 %v3844
    %3984 = vmatprep.subr.mxu0 0.0
    %3985 = vmatpush1.msra.mxu0 %v3845
    %3986 = vmatprep.subr.mxu0 0.0
    %3987 = vmatpush1.msra.mxu0 %v3846
    %3988 = vmatprep.subr.mxu0 0.0
    %3989 = vmatpush1.msra.mxu0 %v3847
    %3990 = vmatprep.subr.mxu0 0.0
    %3991 = vmatpush1.msra.mxu0 %v3848
    %3992 = vmatprep.subr.mxu0 0.0
    %3993 = vmatpush1.msra.mxu0 %v3849
    %3994 = vmatprep.subr.mxu0 0.0
    %3995 = vmatpush1.msra.mxu0 %v3850
    %3996 = vmatprep.subr.mxu0 0.0
    %3997 = vmatpush1.msra.mxu0 %v3851
    %3998 = vmatprep.subr.mxu0 0.0
    %3999 = vmatpush1.msra.mxu0 %v3852
    %4000 = vmatprep.subr.mxu0 0.0
    %4001 = vmatpush1.msra.mxu0 %v3853
    %4002 = vmatprep.subr.mxu0 0.0
    %4003 = vmatpush1.msra.mxu0 %v3854
    %4004 = vmatprep.subr.mxu0 0.0
    %4005 = vmatpush1.msra.mxu0 %v3855
    %4006 = vmatprep.subr.mxu0 0.0
    %4007 = vmatpush1.msra.mxu0 %v3856
    %4008 = vmatprep.subr.mxu0 0.0
    %4009 = vmatpush1.msra.mxu0 %v3857
    %4010 = vmatprep.subr.mxu0 0.0
    %4011 = vmatpush1.msra.mxu0 %v3858
    %4012 = vmatprep.subr.mxu0 0.0
    %4013 = vmatpush1.msra.mxu0 %v3859
    %4014 = vmatprep.subr.mxu0 0.0
    %4015 = vmatpush1.msra.mxu0 %v3860
    %4016 = vmatprep.subr.mxu0 0.0
    %4017 = vmatpush1.msra.mxu0 %v3861
    %4018 = vmatprep.subr.mxu0 0.0
    %4019 = vmatpush1.msra.mxu0 %v3862
    %4020 = vmatprep.subr.mxu0 0.0
    %4021 = vmatpush1.msra.mxu0 %v3863
    %4022 = vmatprep.subr.mxu0 0.0
    %4023 = vmatpush1.msra.mxu0 %v3864
    %4024 = vmatprep.subr.mxu0 0.0
    %4025 = vmatpush1.msra.mxu0 %v3865
    %4026 = vmatprep.subr.mxu0 0.0
    %4027 = vmatpush1.msra.mxu0 %v3866
    %4028 = vmatprep.subr.mxu0 0.0
    %4029 = vmatpush1.msra.mxu0 %v3867
    %4030 = vmatprep.subr.mxu0 0.0
    %4031 = vmatpush1.msra.mxu0 %v3868
    %4032 = vmatprep.subr.mxu0 0.0
    %4033 = vmatpush1.msra.mxu0 %v3869
    %4034 = vmatprep.subr.mxu0 0.0
    %4035 = vmatpush1.msra.mxu0 %v3870
    %4036 = vmatprep.subr.mxu0 0.0
    %4037 = vmatpush1.msra.mxu0 %v3871
    %4038 = vmatprep.subr.mxu0 0.0
    %4039 = vmatpush1.msra.mxu0 %v3872
    %4040 = vmatprep.mubr.f32.mxu0 %v3602
    %4041 = vmatmul.mubr.f32.gmra.mrb[0].mxu0 %v3600
    %v4042 = vpop.f32.mrb[0].mxu0
    %v4043 = vadd.f32 %v3974, %v4042
    %v4044 = vpop.f32.mrb[0].mxu0
    %4045 = vmatprep.mubr.f32.mxu0 %v3608
    %4046 = vmatmul.mubr.f32.gmra.mrb[0].mxu0 %v3606
    %v4047 = vpop.f32.mrb[0].mxu0
    %v4048 = vadd.f32 %v3974, %v4047
    %v4049 = vpop.f32.mrb[0].mxu0
    %4050 = vdwg.mxu0
    %4051 = vmatprep.subr.mxu0 0.0
    %4052 = vmatpush1.msra.mxu0 %v3873
    %4053 = vmatprep.subr.mxu0 0.0
    %4054 = vmatpush1.msra.mxu0 %v3874
    %4055 = vmatprep.subr.mxu0 0.0
    %4056 = vmatpush1.msra.mxu0 %v3875
    %4057 = vmatprep.subr.mxu0 0.0
    %4058 = vmatpush1.msra.mxu0 %v3876
    %4059 = vmatprep.subr.mxu0 0.0
    %4060 = vmatpush1.msra.mxu0 %v3877
    %4061 = vmatprep.subr.mxu0 0.0
    %4062 = vmatpush1.msra.mxu0 %v3878
    %4063 = vmatprep.subr.mxu0 0.0
    %4064 = vmatpush1.msra.mxu0 %v3879
    %4065 = vmatprep.subr.mxu0 0.0
    %4066 = vmatpush1.msra.mxu0 %v3880
    %4067 = vmatprep.subr.mxu0 0.0
    %4068 = vmatpush1.msra.mxu0 %v3881
    %4069 = vmatprep.subr.mxu0 0.0
    %4070 = vmatpush1.msra.mxu0 %v3882
    %4071 = vmatprep.subr.mxu0 0.0
    %4072 = vmatpush1.msra.mxu0 %v3883
    %4073 = vmatprep.subr.mxu0 0.0
    %4074 = vmatpush1.msra.mxu0 %v3884
    %4075 = vmatprep.subr.mxu0 0.0
    %4076 = vmatpush1.msra.mxu0 %v3885
    %4077 = vmatprep.subr.mxu0 0.0
    %4078 = vmatpush1.msra.mxu0 %v3886
    %4079 = vmatprep.subr.mxu0 0.0
    %4080 = vmatpush1.msra.mxu0 %v3887
    %4081 = vmatprep.subr.mxu0 0.0
    %4082 = vmatpush1.msra.mxu0 %v3888
    %4083 = vmatprep.subr.mxu0 0.0
    %4084 = vmatpush1.msra.mxu0 %v3889
    %4085 = vmatprep.subr.mxu0 0.0
    %4086 = vmatpush1.msra.mxu0 %v3890
    %4087 = vmatprep.subr.mxu0 0.0
    %4088 = vmatpush1.msra.mxu0 %v3891
    %4089 = vmatprep.subr.mxu0 0.0
    %4090 = vmatpush1.msra.mxu0 %v3892
    %4091 = vmatprep.subr.mxu0 0.0
    %4092 = vmatpush1.msra.mxu0 %v3893
    %4093 = vmatprep.subr.mxu0 0.0
    %4094 = vmatpush1.msra.mxu0 %v3894
    %4095 = vmatprep.subr.mxu0 0.0
    %4096 = vmatpush1.msra.mxu0 %v3895
    %4097 = vmatprep.subr.mxu0 0.0
    %4098 = vmatpush1.msra.mxu0 %v3896
    %4099 = vmatprep.subr.mxu0 0.0
    %4100 = vmatpush1.msra.mxu0 %v3897
    %4101 = vmatprep.subr.mxu0 0.0
    %4102 = vmatpush1.msra.mxu0 %v3898
    %4103 = vmatprep.subr.mxu0 0.0
    %4104 = vmatpush1.msra.mxu0 %v3899
    %4105 = vmatprep.subr.mxu0 0.0
    %4106 = vmatpush1.msra.mxu0 %v3900
    %4107 = vmatprep.subr.mxu0 0.0
    %4108 = vmatpush1.msra.mxu0 %v3901
    %4109 = vmatprep.subr.mxu0 0.0
    %4110 = vmatpush1.msra.mxu0 %v3902
    %4111 = vmatprep.subr.mxu0 0.0
    %4112 = vmatpush1.msra.mxu0 %v3903
    %4113 = vmatprep.subr.mxu0 0.0
    %4114 = vmatpush1.msra.mxu0 %v3904
    %4115 = vmatprep.mubr.f32.mxu0 %v3679
    %4116 = vmatmul.mubr.f32.gmra.mrb[0].mxu0 %v3677
    %v4117 = vpop.f32.mrb[0].mxu0
    %v4118 = vadd.f32 %v4043, %v4117
    %v4119 = vpop.f32.mrb[0].mxu0
    %4120 = vmatprep.mubr.f32.mxu0 %v3685
    %4121 = vmatmul.mubr.f32.gmra.mrb[0].mxu0 %v3683
    %v4122 = vpop.f32.mrb[0].mxu0
    %v4123 = vadd.f32 %v4048, %v4122
    %v4124 = vpop.f32.mrb[0].mxu0
    %4125 = vdwg.mxu0
    %4126 = vmatprep.subr.mxu0 0.0
    %4127 = vmatpush1.msra.mxu0 %v3905
    %4128 = vmatprep.subr.mxu0 0.0
    %4129 = vmatpush1.msra.mxu0 %v3906
    %4130 = vmatprep.subr.mxu0 0.0
    %4131 = vmatpush1.msra.mxu0 %v3907
    %4132 = vmatprep.subr.mxu0 0.0
    %4133 = vmatpush1.msra.mxu0 %v3908
    %4134 = vmatprep.subr.mxu0 0.0
    %4135 = vmatpush1.msra.mxu0 %v3909
    %4136 = vmatprep.subr.mxu0 0.0
    %4137 = vmatpush1.msra.mxu0 %v3910
    %4138 = vmatprep.subr.mxu0 0.0
    %4139 = vmatpush1.msra.mxu0 %v3911
    %4140 = vmatprep.subr.mxu0 0.0
    %4141 = vmatpush1.msra.mxu0 %v3912
    %4142 = vmatprep.subr.mxu0 0.0
    %4143 = vmatpush1.msra.mxu0 %v3913
    %4144 = vmatprep.subr.mxu0 0.0
    %4145 = vmatpush1.msra.mxu0 %v3914
    %4146 = vmatprep.subr.mxu0 0.0
    %4147 = vmatpush1.msra.mxu0 %v3915
    %4148 = vmatprep.subr.mxu0 0.0
    %4149 = vmatpush1.msra.mxu0 %v3916
    %4150 = vmatprep.subr.mxu0 0.0
    %4151 = vmatpush1.msra.mxu0 %v3917
    %4152 = vmatprep.subr.mxu0 0.0
    %4153 = vmatpush1.msra.mxu0 %v3918
    %4154 = vmatprep.subr.mxu0 0.0
    %4155 = vmatpush1.msra.mxu0 %v3919
    %4156 = vmatprep.subr.mxu0 0.0
    %4157 = vmatpush1.msra.mxu0 %v3920
    %4158 = vmatprep.subr.mxu0 0.0
    %4159 = vmatpush1.msra.mxu0 %v3921
    %4160 = vmatprep.subr.mxu0 0.0
    %4161 = vmatpush1.msra.mxu0 %v3922
    %4162 = vmatprep.subr.mxu0 0.0
    %4163 = vmatpush1.msra.mxu0 %v3923
    %4164 = vmatprep.subr.mxu0 0.0
    %4165 = vmatpush1.msra.mxu0 %v3924
    %4166 = vmatprep.subr.mxu0 0.0
    %4167 = vmatpush1.msra.mxu0 %v3925
    %4168 = vmatprep.subr.mxu0 0.0
    %4169 = vmatpush1.msra.mxu0 %v3926
    %4170 = vmatprep.subr.mxu0 0.0
    %4171 = vmatpush1.msra.mxu0 %v3927
    %4172 = vmatprep.subr.mxu0 0.0
    %4173 = vmatpush1.msra.mxu0 %v3928
    %4174 = vmatprep.subr.mxu0 0.0
    %4175 = vmatpush1.msra.mxu0 %v3929
    %4176 = vmatprep.subr.mxu0 0.0
    %4177 = vmatpush1.msra.mxu0 %v3930
    %4178 = vmatprep.subr.mxu0 0.0
    %4179 = vmatpush1.msra.mxu0 %v3931
    %4180 = vmatprep.subr.mxu0 0.0
    %4181 = vmatpush1.msra.mxu0 %v3932
    %4182 = vmatprep.subr.mxu0 0.0
    %4183 = vmatpush1.msra.mxu0 %v3933
    %4184 = vmatprep.subr.mxu0 0.0
    %4185 = vmatpush1.msra.mxu0 %v3934
    %4186 = vmatprep.subr.mxu0 0.0
    %4187 = vmatpush1.msra.mxu0 %v3935
    %4188 = vmatprep.subr.mxu0 0.0
    %4189 = vmatpush1.msra.mxu0 %v3936
    %4190 = vmatprep.mubr.f32.mxu0 %v3756
    %4191 = vmatmul.mubr.f32.gmra.mrb[0].mxu0 %v3754
    %v4192 = vpop.f32.mrb[0].mxu0
    %v4193 = vadd.f32 %v4118, %v4192
    %v4194 = vpop.f32.mrb[0].mxu0
    %4195 = vmatprep.mubr.f32.mxu0 %v3762
    %4196 = vmatmul.mubr.f32.gmra.mrb[0].mxu0 %v3760
    %v4197 = vpop.f32.mrb[0].mxu0
    %v4198 = vadd.f32 %v4123, %v4197
    %v4199 = vpop.f32.mrb[0].mxu0
    %4200 = vdwg.mxu0
    %4201 = vmatprep.subr.mxu0 0.0
    %4202 = vmatpush1.msra.mxu0 %v3937
    %4203 = vmatprep.subr.mxu0 0.0
    %4204 = vmatpush1.msra.mxu0 %v3938
    %4205 = vmatprep.subr.mxu0 0.0
    %4206 = vmatpush1.msra.mxu0 %v3939
    %4207 = vmatprep.subr.mxu0 0.0
    %4208 = vmatpush1.msra.mxu0 %v3940
    %4209 = vmatprep.subr.mxu0 0.0
    %4210 = vmatpush1.msra.mxu0 %v3941
    %4211 = vmatprep.subr.mxu0 0.0
    %4212 = vmatpush1.msra.mxu0 %v3942
    %4213 = vmatprep.subr.mxu0 0.0
    %4214 = vmatpush1.msra.mxu0 %v3943
    %4215 = vmatprep.subr.mxu0 0.0
    %4216 = vmatpush1.msra.mxu0 %v3944
    %4217 = vmatprep.subr.mxu0 0.0
    %4218 = vmatpush1.msra.mxu0 %v3945
    %4219 = vmatprep.subr.mxu0 0.0
    %4220 = vmatpush1.msra.mxu0 %v3946
    %4221 = vmatprep.subr.mxu0 0.0
    %4222 = vmatpush1.msra.mxu0 %v3947
    %4223 = vmatprep.subr.mxu0 0.0
    %4224 = vmatpush1.msra.mxu0 %v3948
    %4225 = vmatprep.subr.mxu0 0.0
    %4226 = vmatpush1.msra.mxu0 %v3949
    %4227 = vmatprep.subr.mxu0 0.0
    %4228 = vmatpush1.msra.mxu0 %v3950
    %4229 = vmatprep.subr.mxu0 0.0
    %4230 = vmatpush1.msra.mxu0 %v3951
    %4231 = vmatprep.subr.mxu0 0.0
    %4232 = vmatpush1.msra.mxu0 %v3952
    %4233 = vmatprep.subr.mxu0 0.0
    %4234 = vmatpush1.msra.mxu0 %v3953
    %4235 = vmatprep.subr.mxu0 0.0
    %4236 = vmatpush1.msra.mxu0 %v3954
    %4237 = vmatprep.subr.mxu0 0.0
    %4238 = vmatpush1.msra.mxu0 %v3955
    %4239 = vmatprep.subr.mxu0 0.0
    %4240 = vmatpush1.msra.mxu0 %v3956
    %4241 = vmatprep.subr.mxu0 0.0
    %4242 = vmatpush1.msra.mxu0 %v3957
    %4243 = vmatprep.subr.mxu0 0.0
    %4244 = vmatpush1.msra.mxu0 %v3958
    %4245 = vmatprep.subr.mxu0 0.0
    %4246 = vmatpush1.msra.mxu0 %v3959
    %4247 = vmatprep.subr.mxu0 0.0
    %4248 = vmatpush1.msra.mxu0 %v3960
    %4249 = vmatprep.subr.mxu0 0.0
    %4250 = vmatpush1.msra.mxu0 %v3961
    %4251 = vmatprep.subr.mxu0 0.0
    %4252 = vmatpush1.msra.mxu0 %v3962
    %4253 = vmatprep.subr.mxu0 0.0
    %4254 = vmatpush1.msra.mxu0 %v3963
    %4255 = vmatprep.subr.mxu0 0.0
    %4256 = vmatpush1.msra.mxu0 %v3964
    %4257 = vmatprep.subr.mxu0 0.0
    %4258 = vmatpush1.msra.mxu0 %v3965
    %4259 = vmatprep.subr.mxu0 0.0
    %4260 = vmatpush1.msra.mxu0 %v3966
    %4261 = vmatprep.subr.mxu0 0.0
    %4262 = vmatpush1.msra.mxu0 %v3967
    %4263 = vmatprep.subr.mxu0 0.0
    %4264 = vmatpush1.msra.mxu0 %v3968
    %4265 = vmatprep.mubr.f32.mxu0 %v3833
    %4266 = vmatmul.mubr.f32.gmra.mrb[0].mxu0 %v3831
    %v4267 = vpop.f32.mrb[0].mxu0
    %v4268 = vadd.f32 %v4193, %v4267
    %v4269 = vpop.f32.mrb[0].mxu0
    %4270 = vmatprep.mubr.f32.mxu0 %v3839
    %4271 = vmatmul.mubr.f32.gmra.mrb[0].mxu0 %v3837
    %v4272 = vpop.f32.mrb[0].mxu0
    %v4273 = vadd.f32 %v4198, %v4272
    %v4274 = vpop.f32.mrb[0].mxu0
    %4275 = vdwg.mxu0
    %v4276 = vadd.f32 %v4268, %v3451
    %v4277 = vadd.f32 %v4273, %v3452
    %v4278 = vsel %vm96, %v4276, 0.0
    %4279 = vadd.xlane.f32.xlu0 %v4278
    %v4280 = vpop.xlane.xlu0 %4279
    %v4281 = vsel %vm96, %v4277, 0.0
    %4282 = vadd.xlane.f32.xlu0 %v4281
    %v4283 = vpop.xlane.xlu0 %4282
    %v4284 = vmul.f32 %v4280, %v1691
    %v4285 = vmul.f32 %v4283, %v1691
    %v4286 = vsub.f32 %v4276, %v4284
    %v4287 = vsub.f32 %v4277, %v4285
    %v4288 = vmul.f32 %v4286, %v4286
    %v4289 = vmul.f32 %v4287, %v4287
    %v4290 = vsel %vm96, %v4288, 0.0
    %4291 = vadd.xlane.f32.xlu0 %v4290
    %v4292 = vpop.xlane.xlu0 %4291
    %v4293 = vsel %vm96, %v4289, 0.0
    %4294 = vadd.xlane.f32.xlu0 %v4293
    %v4295 = vpop.xlane.xlu0 %4294
    %v4296 = vmul.f32 %v4292, %v1691
    %v4297 = vmul.f32 %v4295, %v1691
    %v4298 = vadd.f32 %v4296, 1e-05
    %v4299 = vadd.f32 %v4297, 1e-05
    %v4300 = vrsqrt.pop %v4298
    %v4301 = vrsqrt.pop %v4299
    %v4302 = vmul.f32 %v4286, %v4300
    %v4303 = vmul.f32 %v4287, %v4301
    %v4304 = vld [vmem:[%s22] sm:$0x1]
    %v4306 = vlaneseq
    %v4307 = vshrl.u32 %v4306, 7
    %v4308 = vsub.s32 0, %v4307
    %v4309 = vrot.slane %v4304, %v4308
    %v4311 = vmul.f32 %v4302, %v4309
    %v4312 = vmul.f32 %v4303, %v4309
    %v4313 = vld [vmem:[%s23] sm:$0x1]
    %v4315 = vlaneseq
    %v4316 = vshrl.u32 %v4315, 7
    %v4317 = vsub.s32 0, %v4316
    %v4318 = vrot.slane %v4313, %v4317
    %v4320 = vadd.f32 %v4311, %v4318
    %v4321 = vadd.f32 %v4312, %v4318
    %4322 = vst.msk [vmem:[#allocation3] sm:$0xff] %vm96, %v4320
    %4323 = vst.msk [vmem:[#allocation3 + $0x8] sm:$0xff] %vm96, %v4321
    // Predicated region
    $region98: #{decoder_layer.1} parent=1 // pred_check
      _
    $region99: #{decoder_layer.1} parent=1 // pred_check_branch
      %4325 = sbr.rel (0) target = $region101
    $region100: #{decoder_layer.1} parent=1 // pred_region
      _
    $region101: #{decoder_layer.1} parent=1 // pred_fallthru
      _
    // Predicated region
    $region102: #{decoder_layer.1} parent=1 // pred_check
      _
    $region103: #{decoder_layer.1} parent=1 // pred_check_branch
      %4327 = sbr.rel (0) target = $region105
    $region104: #{decoder_layer.1} parent=1 // pred_region
      _
    $region105: #{decoder_layer.1} parent=1 // pred_fallthru
      _
    // Predicated region
    $region106: #{decoder_layer.1} parent=1 // pred_check
      _
    $region107: #{decoder_layer.1} parent=1 // pred_check_branch
      %4329 = sbr.rel (0) target = $region109
    $region108: #{decoder_layer.1} parent=1 // pred_region
      %s4331 = ssub.s32 256, 256
      %4332 = vsyncadd [#allocation4], %s4331
      %s4333 = sshll.u32 [#allocation3], 4
      %s4334 = int_to_ptr.vmem [resolvable:$true] %s4333
      %4339 = dma.vmem_to_hbm [thread:$0]  %s4334, 256, %s26, [#allocation4], 128, 128, 8
    $region109: #{decoder_layer.1} parent=1 // pred_fallthru
      _
    // Predicated region
    $region110: #{decoder_layer.1} parent=1 // pred_check
      _
    $region111: #{decoder_layer.1} parent=1 // pred_check_branch
      %4341 = sbr.rel (0) target = $region113
    $region112: #{decoder_layer.1} parent=1 // pred_region
      _
    $region113: #{decoder_layer.1} parent=1 // pred_fallthru
      _
    // Predicated region
    $region114: #{decoder_layer.1} parent=1 // pred_check
      _
    $region115: #{decoder_layer.1} parent=1 // pred_check_branch
      %4343 = sbr.rel (0) target = $region117
    $region116: #{decoder_layer.1} parent=1 // pred_region
      _
    $region117: #{decoder_layer.1} parent=1 // pred_fallthru
      _
    // Predicated region
    $region118: #{decoder_layer.1} parent=1 // pred_check
      _
    $region119: #{decoder_layer.1} parent=1 // pred_check_branch
      %4345 = sbr.rel (0) target = $region121
    $region120: #{decoder_layer.1} parent=1 // pred_region
      %4346 = dma.done [#allocation4], 256
    $region121: #{decoder_layer.1} parent=1 // pred_fallthru
      _
    %4347 = vsyncpa [#allocation4], 1

</llo_original>
